<compile_context>
chip_gen: v5e
topology: v5e:2x2
jax: 0.10.0
libtpu: 0.0.40
codegen_flags: <defaults>
</compile_context>

<pallas_src>
import jax
import jax.numpy as jnp
from jax.experimental import pallas as pl
from jax.experimental.pallas import tpu as pltpu

D_IN = 129 * 129            # 16641
D_PAD = 132 * 128           # 16896  (next multiple of 128 that tiles evenly)
H_PAD = 128                 # padded width for hidden dims 100 / 64 / 12
B_PAD = 8                   # padded batch (sublane multiple)
TILE = 22 * 128             # 2816; D_PAD == 6 * TILE
NUM_TILES = D_PAD // TILE
assert NUM_TILES * TILE == D_PAD

ENC_DIMS = [D_IN, 100, 64, 12, 3]
DEC_DIMS = [3, 12, 64, 100, D_IN]
VMEM_LIMIT = 32 * 1024 * 1024


def _resident_spec(shape):
    """Full-array block whose index never changes (fetched once, stays in VMEM)."""
    return pl.BlockSpec(shape, lambda i, _n=len(shape): (0,) * _n)


# --------------------------------------------------------------------------
# Kernel 1: streamed layer-1 reduction + all small resident layers.
# --------------------------------------------------------------------------
def encoder_mid_kernel(x_ref, w1_ref, b1_ref, w2_ref, b2_ref, w3_ref, b3_ref,
                       w45_ref, b45_ref, w6_ref, b6_ref, w7_ref, b7_ref,
                       h_ref, acc_ref):
    k = pl.program_id(0)

    @pl.when(k == 0)
    def _():
        acc_ref[...] = jnp.zeros_like(acc_ref)

    # bf16 x bf16 -> f32 accumulate on the MXU (W1 stored/streamed as bf16).
    acc_ref[...] += jnp.dot(x_ref[...].astype(jnp.bfloat16), w1_ref[...],
                            preferred_element_type=jnp.float32)

    @pl.when(k == pl.num_programs(0) - 1)
    def _():
        def lin_relu(h, w_ref, b_ref):
            y = jnp.dot(h, w_ref[...], preferred_element_type=jnp.float32)
            return jnp.maximum(y + b_ref[...], 0.0)

        h = jnp.maximum(acc_ref[...] + b1_ref[...], 0.0)   # enc L1 + ReLU
        h = lin_relu(h, w2_ref, b2_ref)                    # enc L2 + ReLU
        h = lin_relu(h, w3_ref, b3_ref)                    # enc L3 + ReLU
        h = lin_relu(h, w45_ref, b45_ref)                  # enc L4 + dec L1 (folded, exact) + ReLU
        h = lin_relu(h, w6_ref, b6_ref)                    # dec L2 + ReLU
        h = lin_relu(h, w7_ref, b7_ref)                    # dec L3 + ReLU
        h_ref[...] = h


# --------------------------------------------------------------------------
# Kernel 2: streamed final layer (100 -> 16641) + Tanh, output in N-slabs.
# --------------------------------------------------------------------------
def decoder_out_kernel(h_ref, w8_ref, b8_ref, out_ref):
    y = jnp.dot(h_ref[...].astype(jnp.bfloat16), w8_ref[...],
                preferred_element_type=jnp.float32) + b8_ref[...]
    out_ref[...] = jnp.tanh(y)


# --------------------------------------------------------------------------
# Parameter handling
# --------------------------------------------------------------------------
def init_params(key):
    """Deterministic init mimicking PyTorch nn.Linear default:
    U(-1/sqrt(fan_in), 1/sqrt(fan_in)); weights produced in (in, out) layout."""
    layer_dims = (list(zip(ENC_DIMS[:-1], ENC_DIMS[1:]))
                  + list(zip(DEC_DIMS[:-1], DEC_DIMS[1:])))
    params = []
    for din, dout in layer_dims:
        key, kw, kb = jax.random.split(key, 3)
        bound = float(din) ** -0.5
        w = jax.random.uniform(kw, (din, dout), jnp.float32, -bound, bound)
        b = jax.random.uniform(kb, (dout,), jnp.float32, -bound, bound)
        params.append((w, b))
    return params


def prepare_params(params):
    """One-time (outside jit) fold + pad + dtype conversion of the weights."""
    (w1, b1), (w2, b2), (w3, b3), (w4, b4), \
        (w5, b5), (w6, b6), (w7, b7), (w8, b8) = params

    # Fold encoder L4 and decoder L1 (no activation in between): exact algebra.
    w45 = jnp.dot(w4, w5, precision=jax.lax.Precision.HIGHEST)
    b45 = jnp.dot(b4, w5, precision=jax.lax.Precision.HIGHEST) + b5

    def pad_w(w, rows, cols, dtype=jnp.float32):
        out = jnp.zeros((rows, cols), jnp.float32)
        out = out.at[: w.shape[0], : w.shape[1]].set(w)
        return out.astype(dtype)

    def pad_b(b, cols):
        return jnp.zeros((1, cols), jnp.float32).at[0, : b.shape[0]].set(b)

    return (
        pad_w(w1, D_PAD, H_PAD, jnp.bfloat16), pad_b(b1, H_PAD),
        pad_w(w2, H_PAD, H_PAD), pad_b(b2, H_PAD),
        pad_w(w3, H_PAD, H_PAD), pad_b(b3, H_PAD),
        pad_w(w45, H_PAD, H_PAD), pad_b(b45, H_PAD),
        pad_w(w6, H_PAD, H_PAD), pad_b(b6, H_PAD),
        pad_w(w7, H_PAD, H_PAD), pad_b(b7, H_PAD),
        pad_w(w8, H_PAD, D_PAD, jnp.bfloat16), pad_b(b8, D_PAD),
    )


# --------------------------------------------------------------------------
# Forward pass
# --------------------------------------------------------------------------
@jax.jit
def autoencoder_forward(x, prepped):
    (w1, b1, w2, b2, w3, b3, w45, b45, w6, b6, w7, b7, w8, b8) = prepped
    b = x.shape[0]
    xp = jnp.zeros((B_PAD, D_PAD), jnp.float32).at[:b, :D_IN].set(
        x.astype(jnp.float32))

    resident = [b1, w2, b2, w3, b3, w45, b45, w6, b6, w7, b7]

    # --- kernel 1: stream x / W1 over K tiles, finish small layers in-place ---
    h7 = pl.pallas_call(
        encoder_mid_kernel,
        out_shape=jax.ShapeDtypeStruct((B_PAD, H_PAD), jnp.float32),
        grid=(NUM_TILES,),
        in_specs=([pl.BlockSpec((B_PAD, TILE), lambda k: (0, k)),
                   pl.BlockSpec((TILE, H_PAD), lambda k: (k, 0))]
                  + [_resident_spec(a.shape) for a in resident]),
        out_specs=_resident_spec((B_PAD, H_PAD)),
        scratch_shapes=[pltpu.VMEM((B_PAD, H_PAD), jnp.float32)],
        compiler_params=pltpu.CompilerParams(
            dimension_semantics=("arbitrary",),
            vmem_limit_bytes=VMEM_LIMIT),
    )(xp, w1, *resident)

    # --- kernel 2: stream W8 / b8 / output over N tiles ---
    out = pl.pallas_call(
        decoder_out_kernel,
        out_shape=jax.ShapeDtypeStruct((B_PAD, D_PAD), jnp.float32),
        grid=(NUM_TILES,),
        in_specs=[_resident_spec((B_PAD, H_PAD)),
                  pl.BlockSpec((H_PAD, TILE), lambda n: (0, n)),
                  pl.BlockSpec((1, TILE), lambda n: (0, n))],
        out_specs=pl.BlockSpec((B_PAD, TILE), lambda n: (0, n)),
        compiler_params=pltpu.CompilerParams(
            dimension_semantics=("parallel",),
            vmem_limit_bytes=VMEM_LIMIT),
    )(h7, w8, b8)

    return out[:b, :D_IN]


def reference_forward(x, params):
    """Plain-JAX reference matching the PyTorch module (unfused, f32)."""
    h = x.astype(jnp.float32)
    for i, (w, b) in enumerate(params):
        h = jnp.dot(h, w, precision=jax.lax.Precision.HIGHEST) + b
        if i in (0, 1, 2, 4, 5, 6):      # ReLU(True) layers
            h = jnp.maximum(h, 0.0)
        elif i == 7:                     # final Tanh
            h = jnp.tanh(h)
    return h


if __name__ == "__main__":
    key = jax.random.PRNGKey(0)
    pkey, xkey = jax.random.split(key)
    params = init_params(pkey)
    prepped = prepare_params(params)     # pad / fold / bf16 once, outside jit

    B = 2
    x = jax.random.normal(xkey, (B, D_IN), jnp.float32)

    y = jax.block_until_ready(autoencoder_forward(x, prepped))
    y_ref = reference_forward(x, params)

    assert y.shape == (B, D_IN)
    err = float(jnp.max(jnp.abs(y - y_ref)))
    # Tolerance slightly looser than pure-f32 because W1/W8 are streamed in
    # bf16 (f32 accumulation); observed error is ~1e-3 scale.
    assert err < 2e-2, f"max abs error {err}"
    print("KERNEL_OK")
</pallas_src>

<mosaic_0001>
module attributes {stable_mosaic.version = 11 : i64} {
  func.func @encoder_mid_kernel(%arg0: i32, %arg1: memref<8x2816xf32, #tpu.memory_space<vmem>>, %arg2: memref<2816x128xbf16, #tpu.memory_space<vmem>>, %arg3: memref<1x128xf32, #tpu.memory_space<vmem>>, %arg4: memref<128x128xf32, #tpu.memory_space<vmem>>, %arg5: memref<1x128xf32, #tpu.memory_space<vmem>>, %arg6: memref<128x128xf32, #tpu.memory_space<vmem>>, %arg7: memref<1x128xf32, #tpu.memory_space<vmem>>, %arg8: memref<128x128xf32, #tpu.memory_space<vmem>>, %arg9: memref<1x128xf32, #tpu.memory_space<vmem>>, %arg10: memref<128x128xf32, #tpu.memory_space<vmem>>, %arg11: memref<1x128xf32, #tpu.memory_space<vmem>>, %arg12: memref<128x128xf32, #tpu.memory_space<vmem>>, %arg13: memref<1x128xf32, #tpu.memory_space<vmem>>, %arg14: memref<8x128xf32, #tpu.memory_space<vmem>>, %arg15: memref<8x128xf32, #tpu.memory_space<vmem>>) attributes {dimension_semantics = [#tpu.dimension_semantics<arbitrary>], iteration_bounds = array<i64: 6>, scalar_prefetch = 0 : i64, scratch_operands = 1 : i64, tpu.core_type = #tpu.core_type<tc>, window_params = [{transform_indices = @transform_0, window_bounds = array<i64: 8, 2816>}, {transform_indices = @transform_1, window_bounds = array<i64: 2816, 128>}, {pipeline_mode = #tpu.pipeline_mode<synchronous>, transform_indices = @transform_2, window_bounds = array<i64: 1, 128>}, {pipeline_mode = #tpu.pipeline_mode<synchronous>, transform_indices = @transform_3, window_bounds = array<i64: 128, 128>}, {pipeline_mode = #tpu.pipeline_mode<synchronous>, transform_indices = @transform_4, window_bounds = array<i64: 1, 128>}, {pipeline_mode = #tpu.pipeline_mode<synchronous>, transform_indices = @transform_5, window_bounds = array<i64: 128, 128>}, {pipeline_mode = #tpu.pipeline_mode<synchronous>, transform_indices = @transform_6, window_bounds = array<i64: 1, 128>}, {pipeline_mode = #tpu.pipeline_mode<synchronous>, transform_indices = @transform_7, window_bounds = array<i64: 128, 128>}, {pipeline_mode = #tpu.pipeline_mode<synchronous>, transform_indices = @transform_8, window_bounds = array<i64: 1, 128>}, {pipeline_mode = #tpu.pipeline_mode<synchronous>, transform_indices = @transform_9, window_bounds = array<i64: 128, 128>}, {pipeline_mode = #tpu.pipeline_mode<synchronous>, transform_indices = @transform_10, window_bounds = array<i64: 1, 128>}, {pipeline_mode = #tpu.pipeline_mode<synchronous>, transform_indices = @transform_11, window_bounds = array<i64: 128, 128>}, {pipeline_mode = #tpu.pipeline_mode<synchronous>, transform_indices = @transform_12, window_bounds = array<i64: 1, 128>}, {pipeline_mode = #tpu.pipeline_mode<synchronous>, transform_indices = @transform_13, window_bounds = array<i64: 8, 128>}]} {
    %c0_i32 = arith.constant 0 : i32
    %0 = arith.cmpi eq, %arg0, %c0_i32 : i32
    %1 = arith.extui %0 : i1 to i32
    %c0_i32_0 = arith.constant 0 : i32
    %2 = arith.cmpi ne, %1, %c0_i32_0 : i32
    scf.if %2 {
      %cst_9 = arith.constant 0.000000e+00 : f32
      %13 = vector.broadcast %cst_9 : f32 to vector<8x128xf32>
      %c0_10 = arith.constant 0 : index
      %c0_11 = arith.constant 0 : index
      %14 = vector.load %arg15[%c0_10, %c0_11] : memref<8x128xf32, #tpu.memory_space<vmem>>, vector<8x128xf32>
      tpu.vector_store %arg15[%c0_10, %c0_11], %13 {strides = array<i32>} : memref<8x128xf32, #tpu.memory_space<vmem>>, vector<8x128xf32>,
    } else {
    }
    %c0 = arith.constant 0 : index
    %c0_1 = arith.constant 0 : index
    %3 = vector.load %arg15[%c0, %c0_1] : memref<8x128xf32, #tpu.memory_space<vmem>>, vector<8x128xf32>
    %c0_2 = arith.constant 0 : index
    %c0_3 = arith.constant 0 : index
    %4 = vector.load %arg1[%c0_2, %c0_3] : memref<8x2816xf32, #tpu.memory_space<vmem>>, vector<8x2816xf32>
    %5 = arith.truncf %4 : vector<8x2816xf32> to vector<8x2816xbf16>
    %c0_4 = arith.constant 0 : index
    %c0_5 = arith.constant 0 : index
    %6 = vector.load %arg2[%c0_4, %c0_5] : memref<2816x128xbf16, #tpu.memory_space<vmem>>, vector<2816x128xbf16>
    %cst = arith.constant dense<0.000000e+00> : vector<8x128xf32>
    %7 = tpu.matmul %5, %6, %cst {dimension_numbers = #tpu.dot_dimension_numbers<[1], [0], [0], [1], [0, 0, 1, 1], [], []>} : vector<8x2816xbf16>, vector<2816x128xbf16>, vector<8x128xf32> -> vector<8x128xf32>
    %8 = arith.addf %3, %7 : vector<8x128xf32>
    %c0_6 = arith.constant 0 : index
    %c0_7 = arith.constant 0 : index
    %9 = vector.load %arg15[%c0_6, %c0_7] : memref<8x128xf32, #tpu.memory_space<vmem>>, vector<8x128xf32>
    tpu.vector_store %arg15[%c0_6, %c0_7], %8 {strides = array<i32>} : memref<8x128xf32, #tpu.memory_space<vmem>>, vector<8x128xf32>,
    %c5_i32 = arith.constant 5 : i32
    %10 = arith.cmpi eq, %arg0, %c5_i32 : i32
    %11 = arith.extui %10 : i1 to i32
    %c0_i32_8 = arith.constant 0 : i32
    %12 = arith.cmpi ne, %11, %c0_i32_8 : i32
    scf.if %12 {
      %c0_9 = arith.constant 0 : index
      %c0_10 = arith.constant 0 : index
      %13 = vector.load %arg15[%c0_9, %c0_10] : memref<8x128xf32, #tpu.memory_space<vmem>>, vector<8x128xf32>
      %c0_11 = arith.constant 0 : index
      %c0_12 = arith.constant 0 : index
      %14 = vector.load %arg3[%c0_11, %c0_12] : memref<1x128xf32, #tpu.memory_space<vmem>>, vector<1x128xf32>
      %15 = vector.broadcast %14 : vector<1x128xf32> to vector<8x128xf32>
      %16 = arith.addf %13, %15 : vector<8x128xf32>
      %cst_13 = arith.constant 0.000000e+00 : f32
      %17 = vector.broadcast %cst_13 : f32 to vector<8x128xf32>
      %18 = arith.maximumf %16, %17 : vector<8x128xf32>
      %c0_14 = arith.constant 0 : index
      %c0_15 = arith.constant 0 : index
      %19 = vector.load %arg4[%c0_14, %c0_15] : memref<128x128xf32, #tpu.memory_space<vmem>>, vector<128x128xf32>
      %cst_16 = arith.constant dense<0.000000e+00> : vector<8x128xf32>
      %20 = tpu.matmul %18, %19, %cst_16 {dimension_numbers = #tpu.dot_dimension_numbers<[1], [0], [0], [1], [0, 0, 1, 1], [], []>} : vector<8x128xf32>, vector<128x128xf32>, vector<8x128xf32> -> vector<8x128xf32>
      %c0_17 = arith.constant 0 : index
      %c0_18 = arith.constant 0 : index
      %21 = vector.load %arg5[%c0_17, %c0_18] : memref<1x128xf32, #tpu.memory_space<vmem>>, vector<1x128xf32>
      %22 = vector.broadcast %21 : vector<1x128xf32> to vector<8x128xf32>
      %23 = arith.addf %20, %22 : vector<8x128xf32>
      %cst_19 = arith.constant 0.000000e+00 : f32
      %24 = vector.broadcast %cst_19 : f32 to vector<8x128xf32>
      %25 = arith.maximumf %23, %24 : vector<8x128xf32>
      %c0_20 = arith.constant 0 : index
      %c0_21 = arith.constant 0 : index
      %26 = vector.load %arg6[%c0_20, %c0_21] : memref<128x128xf32, #tpu.memory_space<vmem>>, vector<128x128xf32>
      %cst_22 = arith.constant dense<0.000000e+00> : vector<8x128xf32>
      %27 = tpu.matmul %25, %26, %cst_22 {dimension_numbers = #tpu.dot_dimension_numbers<[1], [0], [0], [1], [0, 0, 1, 1], [], []>} : vector<8x128xf32>, vector<128x128xf32>, vector<8x128xf32> -> vector<8x128xf32>
      %c0_23 = arith.constant 0 : index
      %c0_24 = arith.constant 0 : index
      %28 = vector.load %arg7[%c0_23, %c0_24] : memref<1x128xf32, #tpu.memory_space<vmem>>, vector<1x128xf32>
      %29 = vector.broadcast %28 : vector<1x128xf32> to vector<8x128xf32>
      %30 = arith.addf %27, %29 : vector<8x128xf32>
      %cst_25 = arith.constant 0.000000e+00 : f32
      %31 = vector.broadcast %cst_25 : f32 to vector<8x128xf32>
      %32 = arith.maximumf %30, %31 : vector<8x128xf32>
      %c0_26 = arith.constant 0 : index
      %c0_27 = arith.constant 0 : index
      %33 = vector.load %arg8[%c0_26, %c0_27] : memref<128x128xf32, #tpu.memory_space<vmem>>, vector<128x128xf32>
      %cst_28 = arith.constant dense<0.000000e+00> : vector<8x128xf32>
      %34 = tpu.matmul %32, %33, %cst_28 {dimension_numbers = #tpu.dot_dimension_numbers<[1], [0], [0], [1], [0, 0, 1, 1], [], []>} : vector<8x128xf32>, vector<128x128xf32>, vector<8x128xf32> -> vector<8x128xf32>
      %c0_29 = arith.constant 0 : index
      %c0_30 = arith.constant 0 : index
      %35 = vector.load %arg9[%c0_29, %c0_30] : memref<1x128xf32, #tpu.memory_space<vmem>>, vector<1x128xf32>
      %36 = vector.broadcast %35 : vector<1x128xf32> to vector<8x128xf32>
      %37 = arith.addf %34, %36 : vector<8x128xf32>
      %cst_31 = arith.constant 0.000000e+00 : f32
      %38 = vector.broadcast %cst_31 : f32 to vector<8x128xf32>
      %39 = arith.maximumf %37, %38 : vector<8x128xf32>
      %c0_32 = arith.constant 0 : index
      %c0_33 = arith.constant 0 : index
      %40 = vector.load %arg10[%c0_32, %c0_33] : memref<128x128xf32, #tpu.memory_space<vmem>>, vector<128x128xf32>
      %cst_34 = arith.constant dense<0.000000e+00> : vector<8x128xf32>
      %41 = tpu.matmul %39, %40, %cst_34 {dimension_numbers = #tpu.dot_dimension_numbers<[1], [0], [0], [1], [0, 0, 1, 1], [], []>} : vector<8x128xf32>, vector<128x128xf32>, vector<8x128xf32> -> vector<8x128xf32>
      %c0_35 = arith.constant 0 : index
      %c0_36 = arith.constant 0 : index
      %42 = vector.load %arg11[%c0_35, %c0_36] : memref<1x128xf32, #tpu.memory_space<vmem>>, vector<1x128xf32>
      %43 = vector.broadcast %42 : vector<1x128xf32> to vector<8x128xf32>
      %44 = arith.addf %41, %43 : vector<8x128xf32>
      %cst_37 = arith.constant 0.000000e+00 : f32
      %45 = vector.broadcast %cst_37 : f32 to vector<8x128xf32>
      %46 = arith.maximumf %44, %45 : vector<8x128xf32>
      %c0_38 = arith.constant 0 : index
      %c0_39 = arith.constant 0 : index
      %47 = vector.load %arg12[%c0_38, %c0_39] : memref<128x128xf32, #tpu.memory_space<vmem>>, vector<128x128xf32>
      %cst_40 = arith.constant dense<0.000000e+00> : vector<8x128xf32>
      %48 = tpu.matmul %46, %47, %cst_40 {dimension_numbers = #tpu.dot_dimension_numbers<[1], [0], [0], [1], [0, 0, 1, 1], [], []>} : vector<8x128xf32>, vector<128x128xf32>, vector<8x128xf32> -> vector<8x128xf32>
      %c0_41 = arith.constant 0 : index
      %c0_42 = arith.constant 0 : index
      %49 = vector.load %arg13[%c0_41, %c0_42] : memref<1x128xf32, #tpu.memory_space<vmem>>, vector<1x128xf32>
      %50 = vector.broadcast %49 : vector<1x128xf32> to vector<8x128xf32>
      %51 = arith.addf %48, %50 : vector<8x128xf32>
      %cst_43 = arith.constant 0.000000e+00 : f32
      %52 = vector.broadcast %cst_43 : f32 to vector<8x128xf32>
      %53 = arith.maximumf %51, %52 : vector<8x128xf32>
      %c0_44 = arith.constant 0 : index
      %c0_45 = arith.constant 0 : index
      %54 = vector.load %arg14[%c0_44, %c0_45] : memref<8x128xf32, #tpu.memory_space<vmem>>, vector<8x128xf32>
      tpu.vector_store %arg14[%c0_44, %c0_45], %53 {strides = array<i32>} : memref<8x128xf32, #tpu.memory_space<vmem>>, vector<8x128xf32>,
    } else {
    }
    return
  }
  func.func @transform_0(%arg0: i32) -> (i32, i32) {
    %c0_i32 = arith.constant 0 : i32
    %c0_i32_0 = arith.constant 0 : i32
    return %c0_i32, %arg0 : i32, i32
  }
  func.func @transform_1(%arg0: i32) -> (i32, i32) {
    %c0_i32 = arith.constant 0 : i32
    %c0_i32_0 = arith.constant 0 : i32
    return %arg0, %c0_i32 : i32, i32
  }
  func.func @transform_2(%arg0: i32) -> (i32, i32) {
    %c0_i32 = arith.constant 0 : i32
    %c0_i32_0 = arith.constant 0 : i32
    %c0_i32_1 = arith.constant 0 : i32
    return %c0_i32, %c0_i32_0 : i32, i32
  }
  func.func @transform_3(%arg0: i32) -> (i32, i32) {
    %c0_i32 = arith.constant 0 : i32
    %c0_i32_0 = arith.constant 0 : i32
    %c0_i32_1 = arith.constant 0 : i32
    return %c0_i32, %c0_i32_0 : i32, i32
  }
  func.func @transform_4(%arg0: i32) -> (i32, i32) {
    %c0_i32 = arith.constant 0 : i32
    %c0_i32_0 = arith.constant 0 : i32
    %c0_i32_1 = arith.constant 0 : i32
    return %c0_i32, %c0_i32_0 : i32, i32
  }
  func.func @transform_5(%arg0: i32) -> (i32, i32) {
    %c0_i32 = arith.constant 0 : i32
    %c0_i32_0 = arith.constant 0 : i32
    %c0_i32_1 = arith.constant 0 : i32
    return %c0_i32, %c0_i32_0 : i32, i32
  }
  func.func @transform_6(%arg0: i32) -> (i32, i32) {
    %c0_i32 = arith.constant 0 : i32
    %c0_i32_0 = arith.constant 0 : i32
    %c0_i32_1 = arith.constant 0 : i32
    return %c0_i32, %c0_i32_0 : i32, i32
  }
  func.func @transform_7(%arg0: i32) -> (i32, i32) {
    %c0_i32 = arith.constant 0 : i32
    %c0_i32_0 = arith.constant 0 : i32
    %c0_i32_1 = arith.constant 0 : i32
    return %c0_i32, %c0_i32_0 : i32, i32
  }
  func.func @transform_8(%arg0: i32) -> (i32, i32) {
    %c0_i32 = arith.constant 0 : i32
    %c0_i32_0 = arith.constant 0 : i32
    %c0_i32_1 = arith.constant 0 : i32
    return %c0_i32, %c0_i32_0 : i32, i32
  }
  func.func @transform_9(%arg0: i32) -> (i32, i32) {
    %c0_i32 = arith.constant 0 : i32
    %c0_i32_0 = arith.constant 0 : i32
    %c0_i32_1 = arith.constant 0 : i32
    return %c0_i32, %c0_i32_0 : i32, i32
  }
  func.func @transform_10(%arg0: i32) -> (i32, i32) {
    %c0_i32 = arith.constant 0 : i32
    %c0_i32_0 = arith.constant 0 : i32
    %c0_i32_1 = arith.constant 0 : i32
    return %c0_i32, %c0_i32_0 : i32, i32
  }
  func.func @transform_11(%arg0: i32) -> (i32, i32) {
    %c0_i32 = arith.constant 0 : i32
    %c0_i32_0 = arith.constant 0 : i32
    %c0_i32_1 = arith.constant 0 : i32
    return %c0_i32, %c0_i32_0 : i32, i32
  }
  func.func @transform_12(%arg0: i32) -> (i32, i32) {
    %c0_i32 = arith.constant 0 : i32
    %c0_i32_0 = arith.constant 0 : i32
    %c0_i32_1 = arith.constant 0 : i32
    return %c0_i32, %c0_i32_0 : i32, i32
  }
  func.func @transform_13(%arg0: i32) -> (i32, i32) {
    %c0_i32 = arith.constant 0 : i32
    %c0_i32_0 = arith.constant 0 : i32
    %c0_i32_1 = arith.constant 0 : i32
    return %c0_i32, %c0_i32_0 : i32, i32
  }
}

module attributes {stable_mosaic.version = 11 : i64} {
  func.func @decoder_out_kernel(%arg0: i32, %arg1: memref<8x128xf32, #tpu.memory_space<vmem>>, %arg2: memref<128x2816xbf16, #tpu.memory_space<vmem>>, %arg3: memref<1x2816xf32, #tpu.memory_space<vmem>>, %arg4: memref<8x2816xf32, #tpu.memory_space<vmem>>) attributes {dimension_semantics = [#tpu.dimension_semantics<parallel>], iteration_bounds = array<i64: 6>, scalar_prefetch = 0 : i64, scratch_operands = 0 : i64, tpu.core_type = #tpu.core_type<tc>, window_params = [{pipeline_mode = #tpu.pipeline_mode<synchronous>, transform_indices = @transform_0, window_bounds = array<i64: 8, 128>}, {transform_indices = @transform_1, window_bounds = array<i64: 128, 2816>}, {transform_indices = @transform_2, window_bounds = array<i64: 1, 2816>}, {transform_indices = @transform_3, window_bounds = array<i64: 8, 2816>}]} {
    %c0 = arith.constant 0 : index
    %c0_0 = arith.constant 0 : index
    %0 = vector.load %arg1[%c0, %c0_0] : memref<8x128xf32, #tpu.memory_space<vmem>>, vector<8x128xf32>
    %1 = arith.truncf %0 : vector<8x128xf32> to vector<8x128xbf16>
    %c0_1 = arith.constant 0 : index
    %c0_2 = arith.constant 0 : index
    %2 = vector.load %arg2[%c0_1, %c0_2] : memref<128x2816xbf16, #tpu.memory_space<vmem>>, vector<128x2816xbf16>
    %cst = arith.constant dense<0.000000e+00> : vector<8x2816xf32>
    %3 = tpu.matmul %1, %2, %cst {dimension_numbers = #tpu.dot_dimension_numbers<[1], [0], [0], [1], [0, 0, 1, 1], [], []>} : vector<8x128xbf16>, vector<128x2816xbf16>, vector<8x2816xf32> -> vector<8x2816xf32>
    %c0_3 = arith.constant 0 : index
    %c0_4 = arith.constant 0 : index
    %4 = vector.load %arg3[%c0_3, %c0_4] : memref<1x2816xf32, #tpu.memory_space<vmem>>, vector<1x2816xf32>
    %5 = vector.broadcast %4 : vector<1x2816xf32> to vector<8x2816xf32>
    %6 = arith.addf %3, %5 : vector<8x2816xf32>
    %7 = math.tanh %6 : vector<8x2816xf32>
    %c0_5 = arith.constant 0 : index
    %c0_6 = arith.constant 0 : index
    %8 = vector.load %arg4[%c0_5, %c0_6] : memref<8x2816xf32, #tpu.memory_space<vmem>>, vector<8x2816xf32>
    tpu.vector_store %arg4[%c0_5, %c0_6], %7 {strides = array<i32>} : memref<8x2816xf32, #tpu.memory_space<vmem>>, vector<8x2816xf32>,
    return
  }
  func.func @transform_0(%arg0: i32) -> (i32, i32) {
    %c0_i32 = arith.constant 0 : i32
    %c0_i32_0 = arith.constant 0 : i32
    %c0_i32_1 = arith.constant 0 : i32
    return %c0_i32, %c0_i32_0 : i32, i32
  }
  func.func @transform_1(%arg0: i32) -> (i32, i32) {
    %c0_i32 = arith.constant 0 : i32
    %c0_i32_0 = arith.constant 0 : i32
    return %c0_i32, %arg0 : i32, i32
  }
  func.func @transform_2(%arg0: i32) -> (i32, i32) {
    %c0_i32 = arith.constant 0 : i32
    %c0_i32_0 = arith.constant 0 : i32
    return %c0_i32, %arg0 : i32, i32
  }
  func.func @transform_3(%arg0: i32) -> (i32, i32) {
    %c0_i32 = arith.constant 0 : i32
    %c0_i32_0 = arith.constant 0 : i32
    return %c0_i32, %arg0 : i32, i32
  }
}

</mosaic_0001>

<llo_original>
// kernel: autoencoder_forward.2
$region0: #{autoencoder_forward.2}
  #allocation0 [shape = 'u32[]', space=smem, size = 0x4, offset = 0x4, fixed_abs, tag = 'smem constant byte address 0x4 - core index']
  #allocation1 [shape = 'u32[72,128]{1,0:T(1,128)}', space=vmem, size = 0x9000, scoped, tag = 'internal scratch']
  #allocation2 [shape = 'f32[8,128]{1,0:T(8,128)}', space=vmem, size = 0x1000, scoped, tag = 'scratch operand']
  %s0 = inlined_call_operand.vmem [shape: f32[8,16896], index: 0, kind: input, shape index: {}]
  %s1 = inlined_call_operand.hbm [shape: bf16[16896,128], index: 1, kind: input, shape index: {}]
  %s2 = inlined_call_operand.hbm [shape: f32[1,128], index: 2, kind: input, shape index: {}]
  %s3 = inlined_call_operand.hbm [shape: f32[128,128], index: 3, kind: input, shape index: {}]
  %s4 = inlined_call_operand.hbm [shape: f32[1,128], index: 4, kind: input, shape index: {}]
  %s5 = inlined_call_operand.hbm [shape: f32[128,128], index: 5, kind: input, shape index: {}]
  %s6 = inlined_call_operand.hbm [shape: f32[1,128], index: 6, kind: input, shape index: {}]
  %s7 = inlined_call_operand.hbm [shape: f32[128,128], index: 7, kind: input, shape index: {}]
  %s8 = inlined_call_operand.hbm [shape: f32[1,128], index: 8, kind: input, shape index: {}]
  %s9 = inlined_call_operand.hbm [shape: f32[128,128], index: 9, kind: input, shape index: {}]
  %s10 = inlined_call_operand.hbm [shape: f32[1,128], index: 10, kind: input, shape index: {}]
  %s11 = inlined_call_operand.hbm [shape: f32[128,128], index: 11, kind: input, shape index: {}]
  %s12 = inlined_call_operand.hbm [shape: f32[1,128], index: 12, kind: input, shape index: {}]
  %s13 = inlined_call_operand.vmem [shape: f32[8,128], index: 13, kind: output, shape index: {}]
  %s14 = sld [smem:[#allocation0]]
  $region141: #{autoencoder_forward.2} parent=0
    _
  %s16 = ssub.s32 1, %s14
  %s17 = scalar_select 0, %s16, %s14
  $region1: #{autoencoder_forward.2} parent=0
    #allocation3 [shape = 'u8[1441792]{0}', space=vmem, size = 0x160000, scoped, tag = 'input window, operand 1']
    #allocation4 [shape = 's32[2]{0}', space=sflag, size = 0x8, scoped, tag = 'scoped memory for autoencoder_forward.2']
    #allocation5 [shape = 'u8[512]{0}', space=vmem, size = 0x400, scoped, tag = 'input window, operand 2, single buffered']
    #allocation6 [shape = 's32[1]{0}', space=sflag, size = 0x4, scoped, tag = 'scoped memory for autoencoder_forward.2']
    #allocation7 [shape = 'u8[65536]{0}', space=vmem, size = 0x10000, scoped, tag = 'input window, operand 3, single buffered']
    #allocation8 [shape = 'u8[512]{0}', space=vmem, size = 0x400, scoped, tag = 'input window, operand 4, single buffered']
    #allocation9 [shape = 's32[1]{0}', space=sflag, size = 0x4, scoped, tag = 'scoped memory for autoencoder_forward.2']
    #allocation10 [shape = 'u8[65536]{0}', space=vmem, size = 0x10000, scoped, tag = 'input window, operand 5, single buffered']
    #allocation11 [shape = 'u8[512]{0}', space=vmem, size = 0x400, scoped, tag = 'input window, operand 6, single buffered']
    #allocation12 [shape = 's32[1]{0}', space=sflag, size = 0x4, scoped, tag = 'scoped memory for autoencoder_forward.2']
    #allocation13 [shape = 'u8[65536]{0}', space=vmem, size = 0x10000, scoped, tag = 'input window, operand 7, single buffered']
    #allocation14 [shape = 'u8[512]{0}', space=vmem, size = 0x400, scoped, tag = 'input window, operand 8, single buffered']
    #allocation15 [shape = 's32[1]{0}', space=sflag, size = 0x4, scoped, tag = 'scoped memory for autoencoder_forward.2']
    #allocation16 [shape = 'u8[65536]{0}', space=vmem, size = 0x10000, scoped, tag = 'input window, operand 9, single buffered']
    #allocation17 [shape = 'u8[512]{0}', space=vmem, size = 0x400, scoped, tag = 'input window, operand 10, single buffered']
    #allocation18 [shape = 's32[1]{0}', space=sflag, size = 0x4, scoped, tag = 'scoped memory for autoencoder_forward.2']
    #allocation19 [shape = 'u8[65536]{0}', space=vmem, size = 0x10000, scoped, tag = 'input window, operand 11, single buffered']
    #allocation20 [shape = 'u8[512]{0}', space=vmem, size = 0x400, scoped, tag = 'input window, operand 12, single buffered']
    #allocation21 [shape = 's32[1]{0}', space=sflag, size = 0x4, scoped, tag = 'scoped memory for autoencoder_forward.2']
    %18 = vsyncpa [#allocation4], 0
    %s19 = scalar_lea.sflag [#allocation4], 1
    %20 = vsyncpa %s19, 0
    %21 = vsyncpa [#allocation6], 0
    %22 = vsyncpa [#allocation9], 0
    %23 = vsyncpa [#allocation12], 0
    %24 = vsyncpa [#allocation15], 0
    %25 = vsyncpa [#allocation18], 0
    %26 = vsyncpa [#allocation21], 0
    loop: start=0, step=1, limit=8
    $region2: #{autoencoder_forward.2} parent=1 // loop_pre_header
      _
    $region3: #{autoencoder_forward.2} parent=1 // loop_header
      %s28 = sphi 0, %s32
      %p29 = scmp.ge.s32.totalorder %s28, 8
      %s38 = sphi 0, %s40
      %s41 = sphi 0, %s38
      %s42 = sphi 0, %s41
      %s58 = sphi 0, %s42
      %s64 = sphi 0, %s66
      %s67 = sphi 0, %s64
      %s68 = sphi 0, %s67
      %s84 = sphi 0, %s68
      %s88 = sphi 0, %s88
      %s90 = sphi 0, %s88
      %s91 = sphi 0, %s90
      %s105 = sphi 0, %s91
      %s109 = sphi 0, %s109
      %s111 = sphi 0, %s109
      %s112 = sphi 0, %s111
      %s126 = sphi 0, %s112
      %s130 = sphi 0, %s130
      %s132 = sphi 0, %s130
      %s133 = sphi 0, %s132
      %s147 = sphi 0, %s133
      %s151 = sphi 0, %s151
      %s153 = sphi 0, %s151
      %s154 = sphi 0, %s153
      %s168 = sphi 0, %s154
      %s172 = sphi 0, %s172
      %s174 = sphi 0, %s172
      %s175 = sphi 0, %s174
      %s189 = sphi 0, %s175
      %s193 = sphi 0, %s193
      %s195 = sphi 0, %s193
      %s196 = sphi 0, %s195
      %s210 = sphi 0, %s196
      %s214 = sphi 0, %s214
      %s216 = sphi 0, %s214
      %s217 = sphi 0, %s216
      %s231 = sphi 0, %s217
      %s235 = sphi 0, %s235
      %s237 = sphi 0, %s235
      %s238 = sphi 0, %s237
      %s252 = sphi 0, %s238
      %s256 = sphi 0, %s256
      %s258 = sphi 0, %s256
      %s259 = sphi 0, %s258
      %s273 = sphi 0, %s259
      %s277 = sphi 0, %s277
      %s279 = sphi 0, %s277
      %s280 = sphi 0, %s279
      %s294 = sphi 0, %s280
      %s298 = sphi 0, %s298
      %s300 = sphi 0, %s298
      %s301 = sphi 0, %s300
      %s315 = sphi 0, %s301
      %s319 = sphi 0, %s319
      %s321 = sphi 0, %s319
      %s322 = sphi 0, %s321
      %s336 = sphi 0, %s322
    $region4: #{autoencoder_forward.2} parent=1 // loop_header_branch
      %31 = sbr.rel (%p29) target = $region8
    $region5: #{autoencoder_forward.2} parent=1 // loop_body
      %s33 = ssub.s32 %s28, 1
      %s34 = ssub.s32 %s28, 2
      %s35 = sadd.s32 %s28, 1
      %s36 = ssub.s32 %s28, %s35
      %p37 = scmp.eq.s32.totalorder %s36, 0
      %s39 = sadd.s32 %s38, 1
      %s40 = scalar_select %p37, %s38, %s39
      %p43 = pneg %p37
      %p44 = scmp.eq.s32.totalorder %s28, 5
      %p45 = por %p43, %p44
      %p46 = scmp.ne.s32.totalorder %s38, %s41
      %p47 = scmp.eq.s32.totalorder %s28, 0
      %p48 = por %p46, %p47
      %p49 = scmp.ne.s32.totalorder %s38, %s41
      %p50 = scmp.eq.s32.totalorder %s33, 5
      %p51 = por %p49, %p50
      %p52 = scmp.ne.s32.totalorder %s41, %s42
      %p53 = scmp.eq.s32.totalorder %s33, 0
      %p54 = por %p52, %p53
      %p55 = scmp.ne.s32.totalorder %s41, %s42
      %p56 = scmp.eq.s32.totalorder %s34, 5
      %p57 = por %p55, %p56
      %p59 = scmp.ne.s32.totalorder %s42, %s58
      %p60 = scmp.eq.s32.totalorder %s34, 0
      %p61 = por %p59, %p60
      %s62 = ssub.s32 %s28, %s35
      %p63 = scmp.eq.s32.totalorder %s62, 0
      %s65 = sadd.s32 %s64, 1
      %s66 = scalar_select %p63, %s64, %s65
      %p69 = pneg %p63
      %p70 = scmp.eq.s32.totalorder %s28, 5
      %p71 = por %p69, %p70
      %p72 = scmp.ne.s32.totalorder %s64, %s67
      %p73 = scmp.eq.s32.totalorder %s28, 0
      %p74 = por %p72, %p73
      %p75 = scmp.ne.s32.totalorder %s64, %s67
      %p76 = scmp.eq.s32.totalorder %s33, 5
      %p77 = por %p75, %p76
      %p78 = scmp.ne.s32.totalorder %s67, %s68
      %p79 = scmp.eq.s32.totalorder %s33, 0
      %p80 = por %p78, %p79
      %p81 = scmp.ne.s32.totalorder %s67, %s68
      %p82 = scmp.eq.s32.totalorder %s34, 5
      %p83 = por %p81, %p82
      %p85 = scmp.ne.s32.totalorder %s68, %s84
      %p86 = scmp.eq.s32.totalorder %s34, 0
      %p87 = por %p85, %p86
      %s89 = sadd.s32 %s88, 1
      %p92 = scmp.eq.s32.totalorder %s28, 5
      %p93 = scmp.ne.s32.totalorder %s88, %s90
      %p94 = scmp.eq.s32.totalorder %s28, 0
      %p95 = por %p93, %p94
      %p96 = scmp.ne.s32.totalorder %s88, %s90
      %p97 = scmp.eq.s32.totalorder %s33, 5
      %p98 = por %p96, %p97
      %p99 = scmp.ne.s32.totalorder %s90, %s91
      %p100 = scmp.eq.s32.totalorder %s33, 0
      %p101 = por %p99, %p100
      %p102 = scmp.ne.s32.totalorder %s90, %s91
      %p103 = scmp.eq.s32.totalorder %s34, 5
      %p104 = por %p102, %p103
      %p106 = scmp.ne.s32.totalorder %s91, %s105
      %p107 = scmp.eq.s32.totalorder %s34, 0
      %p108 = por %p106, %p107
      %s110 = sadd.s32 %s109, 1
      %p113 = scmp.eq.s32.totalorder %s28, 5
      %p114 = scmp.ne.s32.totalorder %s109, %s111
      %p115 = scmp.eq.s32.totalorder %s28, 0
      %p116 = por %p114, %p115
      %p117 = scmp.ne.s32.totalorder %s109, %s111
      %p118 = scmp.eq.s32.totalorder %s33, 5
      %p119 = por %p117, %p118
      %p120 = scmp.ne.s32.totalorder %s111, %s112
      %p121 = scmp.eq.s32.totalorder %s33, 0
      %p122 = por %p120, %p121
      %p123 = scmp.ne.s32.totalorder %s111, %s112
      %p124 = scmp.eq.s32.totalorder %s34, 5
      %p125 = por %p123, %p124
      %p127 = scmp.ne.s32.totalorder %s112, %s126
      %p128 = scmp.eq.s32.totalorder %s34, 0
      %p129 = por %p127, %p128
      %s131 = sadd.s32 %s130, 1
      %p134 = scmp.eq.s32.totalorder %s28, 5
      %p135 = scmp.ne.s32.totalorder %s130, %s132
      %p136 = scmp.eq.s32.totalorder %s28, 0
      %p137 = por %p135, %p136
      %p138 = scmp.ne.s32.totalorder %s130, %s132
      %p139 = scmp.eq.s32.totalorder %s33, 5
      %p140 = por %p138, %p139
      %p141 = scmp.ne.s32.totalorder %s132, %s133
      %p142 = scmp.eq.s32.totalorder %s33, 0
      %p143 = por %p141, %p142
      %p144 = scmp.ne.s32.totalorder %s132, %s133
      %p145 = scmp.eq.s32.totalorder %s34, 5
      %p146 = por %p144, %p145
      %p148 = scmp.ne.s32.totalorder %s133, %s147
      %p149 = scmp.eq.s32.totalorder %s34, 0
      %p150 = por %p148, %p149
      %s152 = sadd.s32 %s151, 1
      %p155 = scmp.eq.s32.totalorder %s28, 5
      %p156 = scmp.ne.s32.totalorder %s151, %s153
      %p157 = scmp.eq.s32.totalorder %s28, 0
      %p158 = por %p156, %p157
      %p159 = scmp.ne.s32.totalorder %s151, %s153
      %p160 = scmp.eq.s32.totalorder %s33, 5
      %p161 = por %p159, %p160
      %p162 = scmp.ne.s32.totalorder %s153, %s154
      %p163 = scmp.eq.s32.totalorder %s33, 0
      %p164 = por %p162, %p163
      %p165 = scmp.ne.s32.totalorder %s153, %s154
      %p166 = scmp.eq.s32.totalorder %s34, 5
      %p167 = por %p165, %p166
      %p169 = scmp.ne.s32.totalorder %s154, %s168
      %p170 = scmp.eq.s32.totalorder %s34, 0
      %p171 = por %p169, %p170
      %s173 = sadd.s32 %s172, 1
      %p176 = scmp.eq.s32.totalorder %s28, 5
      %p177 = scmp.ne.s32.totalorder %s172, %s174
      %p178 = scmp.eq.s32.totalorder %s28, 0
      %p179 = por %p177, %p178
      %p180 = scmp.ne.s32.totalorder %s172, %s174
      %p181 = scmp.eq.s32.totalorder %s33, 5
      %p182 = por %p180, %p181
      %p183 = scmp.ne.s32.totalorder %s174, %s175
      %p184 = scmp.eq.s32.totalorder %s33, 0
      %p185 = por %p183, %p184
      %p186 = scmp.ne.s32.totalorder %s174, %s175
      %p187 = scmp.eq.s32.totalorder %s34, 5
      %p188 = por %p186, %p187
      %p190 = scmp.ne.s32.totalorder %s175, %s189
      %p191 = scmp.eq.s32.totalorder %s34, 0
      %p192 = por %p190, %p191
      %s194 = sadd.s32 %s193, 1
      %p197 = scmp.eq.s32.totalorder %s28, 5
      %p198 = scmp.ne.s32.totalorder %s193, %s195
      %p199 = scmp.eq.s32.totalorder %s28, 0
      %p200 = por %p198, %p199
      %p201 = scmp.ne.s32.totalorder %s193, %s195
      %p202 = scmp.eq.s32.totalorder %s33, 5
      %p203 = por %p201, %p202
      %p204 = scmp.ne.s32.totalorder %s195, %s196
      %p205 = scmp.eq.s32.totalorder %s33, 0
      %p206 = por %p204, %p205
      %p207 = scmp.ne.s32.totalorder %s195, %s196
      %p208 = scmp.eq.s32.totalorder %s34, 5
      %p209 = por %p207, %p208
      %p211 = scmp.ne.s32.totalorder %s196, %s210
      %p212 = scmp.eq.s32.totalorder %s34, 0
      %p213 = por %p211, %p212
      %s215 = sadd.s32 %s214, 1
      %p218 = scmp.eq.s32.totalorder %s28, 5
      %p219 = scmp.ne.s32.totalorder %s214, %s216
      %p220 = scmp.eq.s32.totalorder %s28, 0
      %p221 = por %p219, %p220
      %p222 = scmp.ne.s32.totalorder %s214, %s216
      %p223 = scmp.eq.s32.totalorder %s33, 5
      %p224 = por %p222, %p223
      %p225 = scmp.ne.s32.totalorder %s216, %s217
      %p226 = scmp.eq.s32.totalorder %s33, 0
      %p227 = por %p225, %p226
      %p228 = scmp.ne.s32.totalorder %s216, %s217
      %p229 = scmp.eq.s32.totalorder %s34, 5
      %p230 = por %p228, %p229
      %p232 = scmp.ne.s32.totalorder %s217, %s231
      %p233 = scmp.eq.s32.totalorder %s34, 0
      %p234 = por %p232, %p233
      %s236 = sadd.s32 %s235, 1
      %p239 = scmp.eq.s32.totalorder %s28, 5
      %p240 = scmp.ne.s32.totalorder %s235, %s237
      %p241 = scmp.eq.s32.totalorder %s28, 0
      %p242 = por %p240, %p241
      %p243 = scmp.ne.s32.totalorder %s235, %s237
      %p244 = scmp.eq.s32.totalorder %s33, 5
      %p245 = por %p243, %p244
      %p246 = scmp.ne.s32.totalorder %s237, %s238
      %p247 = scmp.eq.s32.totalorder %s33, 0
      %p248 = por %p246, %p247
      %p249 = scmp.ne.s32.totalorder %s237, %s238
      %p250 = scmp.eq.s32.totalorder %s34, 5
      %p251 = por %p249, %p250
      %p253 = scmp.ne.s32.totalorder %s238, %s252
      %p254 = scmp.eq.s32.totalorder %s34, 0
      %p255 = por %p253, %p254
      %s257 = sadd.s32 %s256, 1
      %p260 = scmp.eq.s32.totalorder %s28, 5
      %p261 = scmp.ne.s32.totalorder %s256, %s258
      %p262 = scmp.eq.s32.totalorder %s28, 0
      %p263 = por %p261, %p262
      %p264 = scmp.ne.s32.totalorder %s256, %s258
      %p265 = scmp.eq.s32.totalorder %s33, 5
      %p266 = por %p264, %p265
      %p267 = scmp.ne.s32.totalorder %s258, %s259
      %p268 = scmp.eq.s32.totalorder %s33, 0
      %p269 = por %p267, %p268
      %p270 = scmp.ne.s32.totalorder %s258, %s259
      %p271 = scmp.eq.s32.totalorder %s34, 5
      %p272 = por %p270, %p271
      %p274 = scmp.ne.s32.totalorder %s259, %s273
      %p275 = scmp.eq.s32.totalorder %s34, 0
      %p276 = por %p274, %p275
      %s278 = sadd.s32 %s277, 1
      %p281 = scmp.eq.s32.totalorder %s28, 5
      %p282 = scmp.ne.s32.totalorder %s277, %s279
      %p283 = scmp.eq.s32.totalorder %s28, 0
      %p284 = por %p282, %p283
      %p285 = scmp.ne.s32.totalorder %s277, %s279
      %p286 = scmp.eq.s32.totalorder %s33, 5
      %p287 = por %p285, %p286
      %p288 = scmp.ne.s32.totalorder %s279, %s280
      %p289 = scmp.eq.s32.totalorder %s33, 0
      %p290 = por %p288, %p289
      %p291 = scmp.ne.s32.totalorder %s279, %s280
      %p292 = scmp.eq.s32.totalorder %s34, 5
      %p293 = por %p291, %p292
      %p295 = scmp.ne.s32.totalorder %s280, %s294
      %p296 = scmp.eq.s32.totalorder %s34, 0
      %p297 = por %p295, %p296
      %s299 = sadd.s32 %s298, 1
      %p302 = scmp.eq.s32.totalorder %s28, 5
      %p303 = scmp.ne.s32.totalorder %s298, %s300
      %p304 = scmp.eq.s32.totalorder %s28, 0
      %p305 = por %p303, %p304
      %p306 = scmp.ne.s32.totalorder %s298, %s300
      %p307 = scmp.eq.s32.totalorder %s33, 5
      %p308 = por %p306, %p307
      %p309 = scmp.ne.s32.totalorder %s300, %s301
      %p310 = scmp.eq.s32.totalorder %s33, 0
      %p311 = por %p309, %p310
      %p312 = scmp.ne.s32.totalorder %s300, %s301
      %p313 = scmp.eq.s32.totalorder %s34, 5
      %p314 = por %p312, %p313
      %p316 = scmp.ne.s32.totalorder %s301, %s315
      %p317 = scmp.eq.s32.totalorder %s34, 0
      %p318 = por %p316, %p317
      %s320 = sadd.s32 %s319, 1
      %p323 = scmp.eq.s32.totalorder %s28, 5
      %p324 = scmp.ne.s32.totalorder %s319, %s321
      %p325 = scmp.eq.s32.totalorder %s28, 0
      %p326 = por %p324, %p325
      %p327 = scmp.ne.s32.totalorder %s319, %s321
      %p328 = scmp.eq.s32.totalorder %s33, 5
      %p329 = por %p327, %p328
      %p330 = scmp.ne.s32.totalorder %s321, %s322
      %p331 = scmp.eq.s32.totalorder %s33, 0
      %p332 = por %p330, %p331
      %p333 = scmp.ne.s32.totalorder %s321, %s322
      %p334 = scmp.eq.s32.totalorder %s34, 5
      %p335 = por %p333, %p334
      %p337 = scmp.ne.s32.totalorder %s322, %s336
      %p338 = scmp.eq.s32.totalorder %s34, 0
      %p339 = por %p337, %p338
      %p340 = scmp.le.s32.totalorder 1, %s28
      %p341 = scmp.lt.s32.totalorder %s28, 7
      %p342 = pnand %p340, %p341
      %p343 = pneg %p342
      // Predicated region
      $region9: #{autoencoder_forward.2} parent=5 // pred_check
        _
      $region10: #{autoencoder_forward.2} parent=5 // pred_check_branch
        %345 = sbr.rel (%p342) target = $region12
      $region11: #{autoencoder_forward.2} parent=5 // pred_region
        %s346 = ssub.s32 %s28, 1
        // Predicated region
        $region13: #{autoencoder_forward.2} parent=11 // pred_check
          %p347 = pneg %p101
        $region14: #{autoencoder_forward.2} parent=11 // pred_check_branch
          %349 = sbr.rel (%p347) target = $region16
        $region15: #{autoencoder_forward.2} parent=11 // pred_region
          %351 = vsyncadd [#allocation6], 0
          %s353 = sshll.u32 %s2, 4
          %s354 = int_to_ptr.hbm [resolvable:$true] %s353
          %s355 = sshll.u32 [#allocation5], 4
          %s356 = int_to_ptr.vmem [resolvable:$true] %s355
          %358 = dma.hbm_to_vmem [thread:$0]  %s354, 16, %s356, [#allocation6]
        $region16: #{autoencoder_forward.2} parent=11 // pred_fallthru
          _
        // Predicated region
        $region17: #{autoencoder_forward.2} parent=11 // pred_check
          %p359 = pneg %p122
        $region18: #{autoencoder_forward.2} parent=11 // pred_check_branch
          %361 = sbr.rel (%p359) target = $region20
        $region19: #{autoencoder_forward.2} parent=11 // pred_region
          %363 = vsyncadd [#allocation6], 0
          %s364 = sshll.u32 %s3, 4
          %s365 = int_to_ptr.hbm [resolvable:$true] %s364
          %s366 = sshll.u32 [#allocation7], 4
          %s367 = int_to_ptr.vmem [resolvable:$true] %s366
          %372 = dma.hbm_to_vmem [thread:$0]  %s365, 2048, %s367, [#allocation6], 128, 128, 8
        $region20: #{autoencoder_forward.2} parent=11 // pred_fallthru
          _
        // Predicated region
        $region21: #{autoencoder_forward.2} parent=11 // pred_check
          %p373 = pneg %p143
        $region22: #{autoencoder_forward.2} parent=11 // pred_check_branch
          %375 = sbr.rel (%p373) target = $region24
        $region23: #{autoencoder_forward.2} parent=11 // pred_region
          %377 = vsyncadd [#allocation9], 0
          %s379 = sshll.u32 %s4, 4
          %s380 = int_to_ptr.hbm [resolvable:$true] %s379
          %s381 = sshll.u32 [#allocation8], 4
          %s382 = int_to_ptr.vmem [resolvable:$true] %s381
          %384 = dma.hbm_to_vmem [thread:$0]  %s380, 16, %s382, [#allocation9]
        $region24: #{autoencoder_forward.2} parent=11 // pred_fallthru
          _
        // Predicated region
        $region25: #{autoencoder_forward.2} parent=11 // pred_check
          %p385 = pneg %p164
        $region26: #{autoencoder_forward.2} parent=11 // pred_check_branch
          %387 = sbr.rel (%p385) target = $region28
        $region27: #{autoencoder_forward.2} parent=11 // pred_region
          %389 = vsyncadd [#allocation9], 0
          %s390 = sshll.u32 %s5, 4
          %s391 = int_to_ptr.hbm [resolvable:$true] %s390
          %s392 = sshll.u32 [#allocation10], 4
          %s393 = int_to_ptr.vmem [resolvable:$true] %s392
          %398 = dma.hbm_to_vmem [thread:$0]  %s391, 2048, %s393, [#allocation9], 128, 128, 8
        $region28: #{autoencoder_forward.2} parent=11 // pred_fallthru
          _
        // Predicated region
        $region29: #{autoencoder_forward.2} parent=11 // pred_check
          %p399 = pneg %p185
        $region30: #{autoencoder_forward.2} parent=11 // pred_check_branch
          %401 = sbr.rel (%p399) target = $region32
        $region31: #{autoencoder_forward.2} parent=11 // pred_region
          %403 = vsyncadd [#allocation12], 0
          %s405 = sshll.u32 %s6, 4
          %s406 = int_to_ptr.hbm [resolvable:$true] %s405
          %s407 = sshll.u32 [#allocation11], 4
          %s408 = int_to_ptr.vmem [resolvable:$true] %s407
          %410 = dma.hbm_to_vmem [thread:$0]  %s406, 16, %s408, [#allocation12]
        $region32: #{autoencoder_forward.2} parent=11 // pred_fallthru
          _
        // Predicated region
        $region33: #{autoencoder_forward.2} parent=11 // pred_check
          %p411 = pneg %p206
        $region34: #{autoencoder_forward.2} parent=11 // pred_check_branch
          %413 = sbr.rel (%p411) target = $region36
        $region35: #{autoencoder_forward.2} parent=11 // pred_region
          %415 = vsyncadd [#allocation12], 0
          %s416 = sshll.u32 %s7, 4
          %s417 = int_to_ptr.hbm [resolvable:$true] %s416
          %s418 = sshll.u32 [#allocation13], 4
          %s419 = int_to_ptr.vmem [resolvable:$true] %s418
          %424 = dma.hbm_to_vmem [thread:$0]  %s417, 2048, %s419, [#allocation12], 128, 128, 8
        $region36: #{autoencoder_forward.2} parent=11 // pred_fallthru
          _
        // Predicated region
        $region37: #{autoencoder_forward.2} parent=11 // pred_check
          %p425 = pneg %p227
        $region38: #{autoencoder_forward.2} parent=11 // pred_check_branch
          %427 = sbr.rel (%p425) target = $region40
        $region39: #{autoencoder_forward.2} parent=11 // pred_region
          %429 = vsyncadd [#allocation15], 0
          %s431 = sshll.u32 %s8, 4
          %s432 = int_to_ptr.hbm [resolvable:$true] %s431
          %s433 = sshll.u32 [#allocation14], 4
          %s434 = int_to_ptr.vmem [resolvable:$true] %s433
          %436 = dma.hbm_to_vmem [thread:$0]  %s432, 16, %s434, [#allocation15]
        $region40: #{autoencoder_forward.2} parent=11 // pred_fallthru
          _
        // Predicated region
        $region41: #{autoencoder_forward.2} parent=11 // pred_check
          %p437 = pneg %p248
        $region42: #{autoencoder_forward.2} parent=11 // pred_check_branch
          %439 = sbr.rel (%p437) target = $region44
        $region43: #{autoencoder_forward.2} parent=11 // pred_region
          %441 = vsyncadd [#allocation15], 0
          %s442 = sshll.u32 %s9, 4
          %s443 = int_to_ptr.hbm [resolvable:$true] %s442
          %s444 = sshll.u32 [#allocation16], 4
          %s445 = int_to_ptr.vmem [resolvable:$true] %s444
          %450 = dma.hbm_to_vmem [thread:$0]  %s443, 2048, %s445, [#allocation15], 128, 128, 8
        $region44: #{autoencoder_forward.2} parent=11 // pred_fallthru
          _
        // Predicated region
        $region45: #{autoencoder_forward.2} parent=11 // pred_check
          %p451 = pneg %p269
        $region46: #{autoencoder_forward.2} parent=11 // pred_check_branch
          %453 = sbr.rel (%p451) target = $region48
        $region47: #{autoencoder_forward.2} parent=11 // pred_region
          %455 = vsyncadd [#allocation18], 0
          %s457 = sshll.u32 %s10, 4
          %s458 = int_to_ptr.hbm [resolvable:$true] %s457
          %s459 = sshll.u32 [#allocation17], 4
          %s460 = int_to_ptr.vmem [resolvable:$true] %s459
          %462 = dma.hbm_to_vmem [thread:$0]  %s458, 16, %s460, [#allocation18]
        $region48: #{autoencoder_forward.2} parent=11 // pred_fallthru
          _
        // Predicated region
        $region49: #{autoencoder_forward.2} parent=11 // pred_check
          %p463 = pneg %p290
        $region50: #{autoencoder_forward.2} parent=11 // pred_check_branch
          %465 = sbr.rel (%p463) target = $region52
        $region51: #{autoencoder_forward.2} parent=11 // pred_region
          %467 = vsyncadd [#allocation18], 0
          %s468 = sshll.u32 %s11, 4
          %s469 = int_to_ptr.hbm [resolvable:$true] %s468
          %s470 = sshll.u32 [#allocation19], 4
          %s471 = int_to_ptr.vmem [resolvable:$true] %s470
          %476 = dma.hbm_to_vmem [thread:$0]  %s469, 2048, %s471, [#allocation18], 128, 128, 8
        $region52: #{autoencoder_forward.2} parent=11 // pred_fallthru
          _
        // Predicated region
        $region53: #{autoencoder_forward.2} parent=11 // pred_check
          %p477 = pneg %p311
        $region54: #{autoencoder_forward.2} parent=11 // pred_check_branch
          %479 = sbr.rel (%p477) target = $region56
        $region55: #{autoencoder_forward.2} parent=11 // pred_region
          %481 = vsyncadd [#allocation21], 0
          %s483 = sshll.u32 %s12, 4
          %s484 = int_to_ptr.hbm [resolvable:$true] %s483
          %s485 = sshll.u32 [#allocation20], 4
          %s486 = int_to_ptr.vmem [resolvable:$true] %s485
          %488 = dma.hbm_to_vmem [thread:$0]  %s484, 16, %s486, [#allocation21]
        $region56: #{autoencoder_forward.2} parent=11 // pred_fallthru
          _
      $region12: #{autoencoder_forward.2} parent=5 // pred_fallthru
        _
      %p489 = scmp.lt.s32.totalorder %s28, 6
      // Predicated region
      $region57: #{autoencoder_forward.2} parent=5 // pred_check
        %p490 = pneg %p489
      $region58: #{autoencoder_forward.2} parent=5 // pred_check_branch
        %492 = sbr.rel (%p490) target = $region60
      $region59: #{autoencoder_forward.2} parent=5 // pred_region
        // Predicated region
        $region61: #{autoencoder_forward.2} parent=59 // pred_check
          %p493 = pneg %p48
        $region62: #{autoencoder_forward.2} parent=59 // pred_check_branch
          %495 = sbr.rel (%p493) target = $region64
        $region63: #{autoencoder_forward.2} parent=59 // pred_region
          %s496 = smul.u32 22, %s28
          %p497 = scmp.lt.s32.totalorder %s496, 131
          %s498 = scalar_select %p497, %s496, 131
          %s499 = smul.addr %s498, 8
          %s500 = scalar_lea.vmem %s0, %s499
          %s501 = smul.u32 22, %s28
        $region64: #{autoencoder_forward.2} parent=59 // pred_fallthru
          _
        // Predicated region
        $region65: #{autoencoder_forward.2} parent=59 // pred_check
          %p502 = pneg %p74
        $region66: #{autoencoder_forward.2} parent=59 // pred_check_branch
          %504 = sbr.rel (%p502) target = $region68
        $region67: #{autoencoder_forward.2} parent=59 // pred_region
          %s505 = sand.u32 %s64, 1
          %s506 = scalar_lea.sflag [#allocation4], %s505
          %s507 = sand.u32 %s64, 1
          %s508 = smul.addr %s507, 1408
          %s509 = scalar_lea.vmem [#allocation3], %s508
          %s510 = smul.u32 352, %s28
          %512 = vsyncadd %s506, 0
          %s513 = smul.addr %s510, 4
          %s514 = scalar_lea.hbm %s1, %s513
          %s515 = sshll.u32 %s514, 4
          %s516 = int_to_ptr.hbm [resolvable:$true] %s515
          %s517 = sshll.u32 %s509, 4
          %s518 = int_to_ptr.vmem [resolvable:$true] %s517
          %523 = dma.hbm_to_vmem [thread:$0]  %s516, 22528, %s518, %s506, 64, 64, 4
        $region68: #{autoencoder_forward.2} parent=59 // pred_fallthru
          _
      $region60: #{autoencoder_forward.2} parent=5 // pred_fallthru
        _
      %p524 = scmp.le.s32.totalorder 1, %s28
      %p525 = scmp.lt.s32.totalorder %s28, 7
      %p526 = pnand %p524, %p525
      %p527 = pneg %p526
      // Predicated region
      $region69: #{autoencoder_forward.2} parent=5 // pred_check
        _
      $region70: #{autoencoder_forward.2} parent=5 // pred_check_branch
        %529 = sbr.rel (%p526) target = $region72
      $region71: #{autoencoder_forward.2} parent=5 // pred_region
        %s530 = ssub.s32 %s28, 1
        %s531 = sand.u32 %s67, 1
        %s532 = scalar_lea.sflag [#allocation4], %s531
        %s533 = sand.u32 %s67, 1
        %s534 = smul.addr %s533, 1408
        %s535 = scalar_lea.vmem [#allocation3], %s534
        // Predicated region
        $region73: #{autoencoder_forward.2} parent=71 // pred_check
          %p536 = pneg %p80
        $region74: #{autoencoder_forward.2} parent=71 // pred_check_branch
          %538 = sbr.rel (%p536) target = $region76
        $region75: #{autoencoder_forward.2} parent=71 // pred_region
          %540 = dma.done %s532, 22528
        $region76: #{autoencoder_forward.2} parent=71 // pred_fallthru
          _
        // Predicated region
        $region77: #{autoencoder_forward.2} parent=71 // pred_check
          %p541 = pneg %p101
        $region78: #{autoencoder_forward.2} parent=71 // pred_check_branch
          %543 = sbr.rel (%p541) target = $region80
        $region79: #{autoencoder_forward.2} parent=71 // pred_region
          %545 = dma.done [#allocation6], 16
        $region80: #{autoencoder_forward.2} parent=71 // pred_fallthru
          _
        // Predicated region
        $region81: #{autoencoder_forward.2} parent=71 // pred_check
          %p546 = pneg %p122
        $region82: #{autoencoder_forward.2} parent=71 // pred_check_branch
          %548 = sbr.rel (%p546) target = $region84
        $region83: #{autoencoder_forward.2} parent=71 // pred_region
          %550 = dma.done [#allocation6], 2048
        $region84: #{autoencoder_forward.2} parent=71 // pred_fallthru
          _
        // Predicated region
        $region85: #{autoencoder_forward.2} parent=71 // pred_check
          %p551 = pneg %p143
        $region86: #{autoencoder_forward.2} parent=71 // pred_check_branch
          %553 = sbr.rel (%p551) target = $region88
        $region87: #{autoencoder_forward.2} parent=71 // pred_region
          %555 = dma.done [#allocation9], 16
        $region88: #{autoencoder_forward.2} parent=71 // pred_fallthru
          _
        // Predicated region
        $region89: #{autoencoder_forward.2} parent=71 // pred_check
          %p556 = pneg %p164
        $region90: #{autoencoder_forward.2} parent=71 // pred_check_branch
          %558 = sbr.rel (%p556) target = $region92
        $region91: #{autoencoder_forward.2} parent=71 // pred_region
          %560 = dma.done [#allocation9], 2048
        $region92: #{autoencoder_forward.2} parent=71 // pred_fallthru
          _
        // Predicated region
        $region93: #{autoencoder_forward.2} parent=71 // pred_check
          %p561 = pneg %p185
        $region94: #{autoencoder_forward.2} parent=71 // pred_check_branch
          %563 = sbr.rel (%p561) target = $region96
        $region95: #{autoencoder_forward.2} parent=71 // pred_region
          %565 = dma.done [#allocation12], 16
        $region96: #{autoencoder_forward.2} parent=71 // pred_fallthru
          _
        // Predicated region
        $region97: #{autoencoder_forward.2} parent=71 // pred_check
          %p566 = pneg %p206
        $region98: #{autoencoder_forward.2} parent=71 // pred_check_branch
          %568 = sbr.rel (%p566) target = $region100
        $region99: #{autoencoder_forward.2} parent=71 // pred_region
          %570 = dma.done [#allocation12], 2048
        $region100: #{autoencoder_forward.2} parent=71 // pred_fallthru
          _
        // Predicated region
        $region101: #{autoencoder_forward.2} parent=71 // pred_check
          %p571 = pneg %p227
        $region102: #{autoencoder_forward.2} parent=71 // pred_check_branch
          %573 = sbr.rel (%p571) target = $region104
        $region103: #{autoencoder_forward.2} parent=71 // pred_region
          %575 = dma.done [#allocation15], 16
        $region104: #{autoencoder_forward.2} parent=71 // pred_fallthru
          _
        // Predicated region
        $region105: #{autoencoder_forward.2} parent=71 // pred_check
          %p576 = pneg %p248
        $region106: #{autoencoder_forward.2} parent=71 // pred_check_branch
          %578 = sbr.rel (%p576) target = $region108
        $region107: #{autoencoder_forward.2} parent=71 // pred_region
          %580 = dma.done [#allocation15], 2048
        $region108: #{autoencoder_forward.2} parent=71 // pred_fallthru
          _
        // Predicated region
        $region109: #{autoencoder_forward.2} parent=71 // pred_check
          %p581 = pneg %p269
        $region110: #{autoencoder_forward.2} parent=71 // pred_check_branch
          %583 = sbr.rel (%p581) target = $region112
        $region111: #{autoencoder_forward.2} parent=71 // pred_region
          %585 = dma.done [#allocation18], 16
        $region112: #{autoencoder_forward.2} parent=71 // pred_fallthru
          _
        // Predicated region
        $region113: #{autoencoder_forward.2} parent=71 // pred_check
          %p586 = pneg %p290
        $region114: #{autoencoder_forward.2} parent=71 // pred_check_branch
          %588 = sbr.rel (%p586) target = $region116
        $region115: #{autoencoder_forward.2} parent=71 // pred_region
          %590 = dma.done [#allocation18], 2048
        $region116: #{autoencoder_forward.2} parent=71 // pred_fallthru
          _
        // Predicated region
        $region117: #{autoencoder_forward.2} parent=71 // pred_check
          %p591 = pneg %p311
        $region118: #{autoencoder_forward.2} parent=71 // pred_check_branch
          %593 = sbr.rel (%p591) target = $region120
        $region119: #{autoencoder_forward.2} parent=71 // pred_region
          %595 = dma.done [#allocation21], 16
        $region120: #{autoencoder_forward.2} parent=71 // pred_fallthru
          _
        %s596 = smul.u32 22, %s33
        %p597 = scmp.lt.s32.totalorder %s596, 131
        %s598 = scalar_select %p597, %s596, 131
        %s599 = smul.addr %s598, 8
        %s600 = scalar_lea.vmem %s0, %s599
        %p601 = pneg %p54
        %p602 = pneg %p51
        %s603 = sand.u32 %s67, 1
        %s604 = scalar_lea.sflag [#allocation4], %s603
        %s605 = sand.u32 %s67, 1
        %s606 = smul.addr %s605, 1408
        %s607 = scalar_lea.vmem [#allocation3], %s606
        %p608 = pneg %p80
        %p609 = pneg %p77
        %p610 = pneg %p101
        %p611 = pneg %p98
        %p612 = pneg %p122
        %p613 = pneg %p119
        %p614 = pneg %p143
        %p615 = pneg %p140
        %p616 = pneg %p164
        %p617 = pneg %p161
        %p618 = pneg %p185
        %p619 = pneg %p182
        %p620 = pneg %p206
        %p621 = pneg %p203
        %p622 = pneg %p227
        %p623 = pneg %p224
        %p624 = pneg %p248
        %p625 = pneg %p245
        %p626 = pneg %p269
        %p627 = pneg %p266
        %p628 = pneg %p290
        %p629 = pneg %p287
        %p630 = pneg %p311
        %p631 = pneg %p308
        %p632 = pneg %p332
        %p633 = pneg %p329
        %s634 = smul.u32 22, %s33
        %p635 = scmp.lt.s32.totalorder %s634, 131
        %s636 = scalar_select %p635, %s634, 131
        %s637 = smul.addr %s636, 8
        %s638 = scalar_lea.vmem %s0, %s637
        %s639 = smul.u32 22, %s33
        %s640 = smul.u32 352, %s33
        %p641 = scmp.eq.s32.totalorder %s33, 0
        // Predicated region
        $region121: #{autoencoder_forward.2} parent=71 // pred_check
          %p642 = pneg %p641
        $region122: #{autoencoder_forward.2} parent=71 // pred_check_branch
          %644 = sbr.rel (%p642) target = $region124
        $region123: #{autoencoder_forward.2} parent=71 // pred_region
          %645 = vst [vmem:[#allocation2] sm:$0xff] 0.0
        $region124: #{autoencoder_forward.2} parent=71 // pred_fallthru
          _
        %v646 = vld [vmem:[#allocation2] sm:$0xff]
        %v647 = vld [vmem:[%s638] sm:$0xff]
        %v648 = vld [vmem:[%s638 + $0x8] sm:$0xff]
        %v649 = vld [vmem:[%s638 + $0x10] sm:$0xff]
        %v650 = vld [vmem:[%s638 + $0x18] sm:$0xff]
        %v651 = vld [vmem:[%s638 + $0x20] sm:$0xff]
        %v652 = vld [vmem:[%s638 + $0x28] sm:$0xff]
        %v653 = vld [vmem:[%s638 + $0x30] sm:$0xff]
        %v654 = vld [vmem:[%s638 + $0x38] sm:$0xff]
        %v655 = vld [vmem:[%s638 + $0x40] sm:$0xff]
        %v656 = vld [vmem:[%s638 + $0x48] sm:$0xff]
        %v657 = vld [vmem:[%s638 + $0x50] sm:$0xff]
        %v658 = vld [vmem:[%s638 + $0x58] sm:$0xff]
        %v659 = vld [vmem:[%s638 + $0x60] sm:$0xff]
        %v660 = vld [vmem:[%s638 + $0x68] sm:$0xff]
        %v661 = vld [vmem:[%s638 + $0x70] sm:$0xff]
        %v662 = vld [vmem:[%s638 + $0x78] sm:$0xff]
        %v663 = vld [vmem:[%s638 + $0x80] sm:$0xff]
        %v664 = vld [vmem:[%s638 + $0x88] sm:$0xff]
        %v665 = vld [vmem:[%s638 + $0x90] sm:$0xff]
        %v666 = vld [vmem:[%s638 + $0x98] sm:$0xff]
        %v667 = vld [vmem:[%s638 + $0xa0] sm:$0xff]
        %v668 = vld [vmem:[%s638 + $0xa8] sm:$0xff]
        %v669 = vpack.c.bf16 %v647, %v647
        %v670 = vpack.c.bf16 %v648, %v648
        %v671 = vpack.c.bf16 %v649, %v649
        %v672 = vpack.c.bf16 %v650, %v650
        %v673 = vpack.c.bf16 %v651, %v651
        %v674 = vpack.c.bf16 %v652, %v652
        %v675 = vpack.c.bf16 %v653, %v653
        %v676 = vpack.c.bf16 %v654, %v654
        %v677 = vpack.c.bf16 %v655, %v655
        %v678 = vpack.c.bf16 %v656, %v656
        %v679 = vpack.c.bf16 %v657, %v657
        %v680 = vpack.c.bf16 %v658, %v658
        %v681 = vpack.c.bf16 %v659, %v659
        %v682 = vpack.c.bf16 %v660, %v660
        %v683 = vpack.c.bf16 %v661, %v661
        %v684 = vpack.c.bf16 %v662, %v662
        %v685 = vpack.c.bf16 %v663, %v663
        %v686 = vpack.c.bf16 %v664, %v664
        %v687 = vpack.c.bf16 %v665, %v665
        %v688 = vpack.c.bf16 %v666, %v666
        %v689 = vpack.c.bf16 %v667, %v667
        %v690 = vpack.c.bf16 %v668, %v668
        %v691 = vld [vmem:[%s535] sm:$0xf]
        %v692 = vld [vmem:[%s535 + $0x4] sm:$0xf]
        %v693 = vld [vmem:[%s535 + $0x8] sm:$0xf]
        %v694 = vld [vmem:[%s535 + $0xc] sm:$0xf]
        %v695 = vld [vmem:[%s535 + $0x10] sm:$0xf]
        %v696 = vld [vmem:[%s535 + $0x14] sm:$0xf]
        %v697 = vld [vmem:[%s535 + $0x18] sm:$0xf]
        %v698 = vld [vmem:[%s535 + $0x1c] sm:$0xf]
        %v699 = vld [vmem:[%s535 + $0x20] sm:$0xf]
        %v700 = vld [vmem:[%s535 + $0x24] sm:$0xf]
        %v701 = vld [vmem:[%s535 + $0x28] sm:$0xf]
        %v702 = vld [vmem:[%s535 + $0x2c] sm:$0xf]
        %v703 = vld [vmem:[%s535 + $0x30] sm:$0xf]
        %v704 = vld [vmem:[%s535 + $0x34] sm:$0xf]
        %v705 = vld [vmem:[%s535 + $0x38] sm:$0xf]
        %v706 = vld [vmem:[%s535 + $0x3c] sm:$0xf]
        %v707 = vld [vmem:[%s535 + $0x40] sm:$0xf]
        %v708 = vld [vmem:[%s535 + $0x44] sm:$0xf]
        %v709 = vld [vmem:[%s535 + $0x48] sm:$0xf]
        %v710 = vld [vmem:[%s535 + $0x4c] sm:$0xf]
        %v711 = vld [vmem:[%s535 + $0x50] sm:$0xf]
        %v712 = vld [vmem:[%s535 + $0x54] sm:$0xf]
        %v713 = vld [vmem:[%s535 + $0x58] sm:$0xf]
        %v714 = vld [vmem:[%s535 + $0x5c] sm:$0xf]
        %v715 = vld [vmem:[%s535 + $0x60] sm:$0xf]
        %v716 = vld [vmem:[%s535 + $0x64] sm:$0xf]
        %v717 = vld [vmem:[%s535 + $0x68] sm:$0xf]
        %v718 = vld [vmem:[%s535 + $0x6c] sm:$0xf]
        %v719 = vld [vmem:[%s535 + $0x70] sm:$0xf]
        %v720 = vld [vmem:[%s535 + $0x74] sm:$0xf]
        %v721 = vld [vmem:[%s535 + $0x78] sm:$0xf]
        %v722 = vld [vmem:[%s535 + $0x7c] sm:$0xf]
        %v723 = vld [vmem:[%s535 + $0x80] sm:$0xf]
        %v724 = vld [vmem:[%s535 + $0x84] sm:$0xf]
        %v725 = vld [vmem:[%s535 + $0x88] sm:$0xf]
        %v726 = vld [vmem:[%s535 + $0x8c] sm:$0xf]
        %v727 = vld [vmem:[%s535 + $0x90] sm:$0xf]
        %v728 = vld [vmem:[%s535 + $0x94] sm:$0xf]
        %v729 = vld [vmem:[%s535 + $0x98] sm:$0xf]
        %v730 = vld [vmem:[%s535 + $0x9c] sm:$0xf]
        %v731 = vld [vmem:[%s535 + $0xa0] sm:$0xf]
        %v732 = vld [vmem:[%s535 + $0xa4] sm:$0xf]
        %v733 = vld [vmem:[%s535 + $0xa8] sm:$0xf]
        %v734 = vld [vmem:[%s535 + $0xac] sm:$0xf]
        %v735 = vld [vmem:[%s535 + $0xb0] sm:$0xf]
        %v736 = vld [vmem:[%s535 + $0xb4] sm:$0xf]
        %v737 = vld [vmem:[%s535 + $0xb8] sm:$0xf]
        %v738 = vld [vmem:[%s535 + $0xbc] sm:$0xf]
        %v739 = vld [vmem:[%s535 + $0xc0] sm:$0xf]
        %v740 = vld [vmem:[%s535 + $0xc4] sm:$0xf]
        %v741 = vld [vmem:[%s535 + $0xc8] sm:$0xf]
        %v742 = vld [vmem:[%s535 + $0xcc] sm:$0xf]
        %v743 = vld [vmem:[%s535 + $0xd0] sm:$0xf]
        %v744 = vld [vmem:[%s535 + $0xd4] sm:$0xf]
        %v745 = vld [vmem:[%s535 + $0xd8] sm:$0xf]
        %v746 = vld [vmem:[%s535 + $0xdc] sm:$0xf]
        %v747 = vld [vmem:[%s535 + $0xe0] sm:$0xf]
        %v748 = vld [vmem:[%s535 + $0xe4] sm:$0xf]
        %v749 = vld [vmem:[%s535 + $0xe8] sm:$0xf]
        %v750 = vld [vmem:[%s535 + $0xec] sm:$0xf]
        %v751 = vld [vmem:[%s535 + $0xf0] sm:$0xf]
        %v752 = vld [vmem:[%s535 + $0xf4] sm:$0xf]
        %v753 = vld [vmem:[%s535 + $0xf8] sm:$0xf]
        %v754 = vld [vmem:[%s535 + $0xfc] sm:$0xf]
        %v755 = vld [vmem:[%s535 + $0x100] sm:$0xf]
        %v756 = vld [vmem:[%s535 + $0x104] sm:$0xf]
        %v757 = vld [vmem:[%s535 + $0x108] sm:$0xf]
        %v758 = vld [vmem:[%s535 + $0x10c] sm:$0xf]
        %v759 = vld [vmem:[%s535 + $0x110] sm:$0xf]
        %v760 = vld [vmem:[%s535 + $0x114] sm:$0xf]
        %v761 = vld [vmem:[%s535 + $0x118] sm:$0xf]
        %v762 = vld [vmem:[%s535 + $0x11c] sm:$0xf]
        %v763 = vld [vmem:[%s535 + $0x120] sm:$0xf]
        %v764 = vld [vmem:[%s535 + $0x124] sm:$0xf]
        %v765 = vld [vmem:[%s535 + $0x128] sm:$0xf]
        %v766 = vld [vmem:[%s535 + $0x12c] sm:$0xf]
        %v767 = vld [vmem:[%s535 + $0x130] sm:$0xf]
        %v768 = vld [vmem:[%s535 + $0x134] sm:$0xf]
        %v769 = vld [vmem:[%s535 + $0x138] sm:$0xf]
        %v770 = vld [vmem:[%s535 + $0x13c] sm:$0xf]
        %v771 = vld [vmem:[%s535 + $0x140] sm:$0xf]
        %v772 = vld [vmem:[%s535 + $0x144] sm:$0xf]
        %v773 = vld [vmem:[%s535 + $0x148] sm:$0xf]
        %v774 = vld [vmem:[%s535 + $0x14c] sm:$0xf]
        %v775 = vld [vmem:[%s535 + $0x150] sm:$0xf]
        %v776 = vld [vmem:[%s535 + $0x154] sm:$0xf]
        %v777 = vld [vmem:[%s535 + $0x158] sm:$0xf]
        %v778 = vld [vmem:[%s535 + $0x15c] sm:$0xf]
        %v779 = vld [vmem:[%s535 + $0x160] sm:$0xf]
        %v780 = vld [vmem:[%s535 + $0x164] sm:$0xf]
        %v781 = vld [vmem:[%s535 + $0x168] sm:$0xf]
        %v782 = vld [vmem:[%s535 + $0x16c] sm:$0xf]
        %v783 = vld [vmem:[%s535 + $0x170] sm:$0xf]
        %v784 = vld [vmem:[%s535 + $0x174] sm:$0xf]
        %v785 = vld [vmem:[%s535 + $0x178] sm:$0xf]
        %v786 = vld [vmem:[%s535 + $0x17c] sm:$0xf]
        %v787 = vld [vmem:[%s535 + $0x180] sm:$0xf]
        %v788 = vld [vmem:[%s535 + $0x184] sm:$0xf]
        %v789 = vld [vmem:[%s535 + $0x188] sm:$0xf]
        %v790 = vld [vmem:[%s535 + $0x18c] sm:$0xf]
        %v791 = vld [vmem:[%s535 + $0x190] sm:$0xf]
        %v792 = vld [vmem:[%s535 + $0x194] sm:$0xf]
        %v793 = vld [vmem:[%s535 + $0x198] sm:$0xf]
        %v794 = vld [vmem:[%s535 + $0x19c] sm:$0xf]
        %v795 = vld [vmem:[%s535 + $0x1a0] sm:$0xf]
        %v796 = vld [vmem:[%s535 + $0x1a4] sm:$0xf]
        %v797 = vld [vmem:[%s535 + $0x1a8] sm:$0xf]
        %v798 = vld [vmem:[%s535 + $0x1ac] sm:$0xf]
        %v799 = vld [vmem:[%s535 + $0x1b0] sm:$0xf]
        %v800 = vld [vmem:[%s535 + $0x1b4] sm:$0xf]
        %v801 = vld [vmem:[%s535 + $0x1b8] sm:$0xf]
        %v802 = vld [vmem:[%s535 + $0x1bc] sm:$0xf]
        %v803 = vld [vmem:[%s535 + $0x1c0] sm:$0xf]
        %v804 = vld [vmem:[%s535 + $0x1c4] sm:$0xf]
        %v805 = vld [vmem:[%s535 + $0x1c8] sm:$0xf]
        %v806 = vld [vmem:[%s535 + $0x1cc] sm:$0xf]
        %v807 = vld [vmem:[%s535 + $0x1d0] sm:$0xf]
        %v808 = vld [vmem:[%s535 + $0x1d4] sm:$0xf]
        %v809 = vld [vmem:[%s535 + $0x1d8] sm:$0xf]
        %v810 = vld [vmem:[%s535 + $0x1dc] sm:$0xf]
        %v811 = vld [vmem:[%s535 + $0x1e0] sm:$0xf]
        %v812 = vld [vmem:[%s535 + $0x1e4] sm:$0xf]
        %v813 = vld [vmem:[%s535 + $0x1e8] sm:$0xf]
        %v814 = vld [vmem:[%s535 + $0x1ec] sm:$0xf]
        %v815 = vld [vmem:[%s535 + $0x1f0] sm:$0xf]
        %v816 = vld [vmem:[%s535 + $0x1f4] sm:$0xf]
        %v817 = vld [vmem:[%s535 + $0x1f8] sm:$0xf]
        %v818 = vld [vmem:[%s535 + $0x1fc] sm:$0xf]
        %v819 = vld [vmem:[%s535 + $0x200] sm:$0xf]
        %v820 = vld [vmem:[%s535 + $0x204] sm:$0xf]
        %v821 = vld [vmem:[%s535 + $0x208] sm:$0xf]
        %v822 = vld [vmem:[%s535 + $0x20c] sm:$0xf]
        %v823 = vld [vmem:[%s535 + $0x210] sm:$0xf]
        %v824 = vld [vmem:[%s535 + $0x214] sm:$0xf]
        %v825 = vld [vmem:[%s535 + $0x218] sm:$0xf]
        %v826 = vld [vmem:[%s535 + $0x21c] sm:$0xf]
        %v827 = vld [vmem:[%s535 + $0x220] sm:$0xf]
        %v828 = vld [vmem:[%s535 + $0x224] sm:$0xf]
        %v829 = vld [vmem:[%s535 + $0x228] sm:$0xf]
        %v830 = vld [vmem:[%s535 + $0x22c] sm:$0xf]
        %v831 = vld [vmem:[%s535 + $0x230] sm:$0xf]
        %v832 = vld [vmem:[%s535 + $0x234] sm:$0xf]
        %v833 = vld [vmem:[%s535 + $0x238] sm:$0xf]
        %v834 = vld [vmem:[%s535 + $0x23c] sm:$0xf]
        %v835 = vld [vmem:[%s535 + $0x240] sm:$0xf]
        %v836 = vld [vmem:[%s535 + $0x244] sm:$0xf]
        %v837 = vld [vmem:[%s535 + $0x248] sm:$0xf]
        %v838 = vld [vmem:[%s535 + $0x24c] sm:$0xf]
        %v839 = vld [vmem:[%s535 + $0x250] sm:$0xf]
        %v840 = vld [vmem:[%s535 + $0x254] sm:$0xf]
        %v841 = vld [vmem:[%s535 + $0x258] sm:$0xf]
        %v842 = vld [vmem:[%s535 + $0x25c] sm:$0xf]
        %v843 = vld [vmem:[%s535 + $0x260] sm:$0xf]
        %v844 = vld [vmem:[%s535 + $0x264] sm:$0xf]
        %v845 = vld [vmem:[%s535 + $0x268] sm:$0xf]
        %v846 = vld [vmem:[%s535 + $0x26c] sm:$0xf]
        %v847 = vld [vmem:[%s535 + $0x270] sm:$0xf]
        %v848 = vld [vmem:[%s535 + $0x274] sm:$0xf]
        %v849 = vld [vmem:[%s535 + $0x278] sm:$0xf]
        %v850 = vld [vmem:[%s535 + $0x27c] sm:$0xf]
        %v851 = vld [vmem:[%s535 + $0x280] sm:$0xf]
        %v852 = vld [vmem:[%s535 + $0x284] sm:$0xf]
        %v853 = vld [vmem:[%s535 + $0x288] sm:$0xf]
        %v854 = vld [vmem:[%s535 + $0x28c] sm:$0xf]
        %v855 = vld [vmem:[%s535 + $0x290] sm:$0xf]
        %v856 = vld [vmem:[%s535 + $0x294] sm:$0xf]
        %v857 = vld [vmem:[%s535 + $0x298] sm:$0xf]
        %v858 = vld [vmem:[%s535 + $0x29c] sm:$0xf]
        %v859 = vld [vmem:[%s535 + $0x2a0] sm:$0xf]
        %v860 = vld [vmem:[%s535 + $0x2a4] sm:$0xf]
        %v861 = vld [vmem:[%s535 + $0x2a8] sm:$0xf]
        %v862 = vld [vmem:[%s535 + $0x2ac] sm:$0xf]
        %v863 = vld [vmem:[%s535 + $0x2b0] sm:$0xf]
        %v864 = vld [vmem:[%s535 + $0x2b4] sm:$0xf]
        %v865 = vld [vmem:[%s535 + $0x2b8] sm:$0xf]
        %v866 = vld [vmem:[%s535 + $0x2bc] sm:$0xf]
        %v867 = vld [vmem:[%s535 + $0x2c0] sm:$0xf]
        %v868 = vld [vmem:[%s535 + $0x2c4] sm:$0xf]
        %v869 = vld [vmem:[%s535 + $0x2c8] sm:$0xf]
        %v870 = vld [vmem:[%s535 + $0x2cc] sm:$0xf]
        %v871 = vld [vmem:[%s535 + $0x2d0] sm:$0xf]
        %v872 = vld [vmem:[%s535 + $0x2d4] sm:$0xf]
        %v873 = vld [vmem:[%s535 + $0x2d8] sm:$0xf]
        %v874 = vld [vmem:[%s535 + $0x2dc] sm:$0xf]
        %v875 = vld [vmem:[%s535 + $0x2e0] sm:$0xf]
        %v876 = vld [vmem:[%s535 + $0x2e4] sm:$0xf]
        %v877 = vld [vmem:[%s535 + $0x2e8] sm:$0xf]
        %v878 = vld [vmem:[%s535 + $0x2ec] sm:$0xf]
        %v879 = vld [vmem:[%s535 + $0x2f0] sm:$0xf]
        %v880 = vld [vmem:[%s535 + $0x2f4] sm:$0xf]
        %v881 = vld [vmem:[%s535 + $0x2f8] sm:$0xf]
        %v882 = vld [vmem:[%s535 + $0x2fc] sm:$0xf]
        %v883 = vld [vmem:[%s535 + $0x300] sm:$0xf]
        %v884 = vld [vmem:[%s535 + $0x304] sm:$0xf]
        %v885 = vld [vmem:[%s535 + $0x308] sm:$0xf]
        %v886 = vld [vmem:[%s535 + $0x30c] sm:$0xf]
        %v887 = vld [vmem:[%s535 + $0x310] sm:$0xf]
        %v888 = vld [vmem:[%s535 + $0x314] sm:$0xf]
        %v889 = vld [vmem:[%s535 + $0x318] sm:$0xf]
        %v890 = vld [vmem:[%s535 + $0x31c] sm:$0xf]
        %v891 = vld [vmem:[%s535 + $0x320] sm:$0xf]
        %v892 = vld [vmem:[%s535 + $0x324] sm:$0xf]
        %v893 = vld [vmem:[%s535 + $0x328] sm:$0xf]
        %v894 = vld [vmem:[%s535 + $0x32c] sm:$0xf]
        %v895 = vld [vmem:[%s535 + $0x330] sm:$0xf]
        %v896 = vld [vmem:[%s535 + $0x334] sm:$0xf]
        %v897 = vld [vmem:[%s535 + $0x338] sm:$0xf]
        %v898 = vld [vmem:[%s535 + $0x33c] sm:$0xf]
        %v899 = vld [vmem:[%s535 + $0x340] sm:$0xf]
        %v900 = vld [vmem:[%s535 + $0x344] sm:$0xf]
        %v901 = vld [vmem:[%s535 + $0x348] sm:$0xf]
        %v902 = vld [vmem:[%s535 + $0x34c] sm:$0xf]
        %v903 = vld [vmem:[%s535 + $0x350] sm:$0xf]
        %v904 = vld [vmem:[%s535 + $0x354] sm:$0xf]
        %v905 = vld [vmem:[%s535 + $0x358] sm:$0xf]
        %v906 = vld [vmem:[%s535 + $0x35c] sm:$0xf]
        %v907 = vld [vmem:[%s535 + $0x360] sm:$0xf]
        %v908 = vld [vmem:[%s535 + $0x364] sm:$0xf]
        %v909 = vld [vmem:[%s535 + $0x368] sm:$0xf]
        %v910 = vld [vmem:[%s535 + $0x36c] sm:$0xf]
        %v911 = vld [vmem:[%s535 + $0x370] sm:$0xf]
        %v912 = vld [vmem:[%s535 + $0x374] sm:$0xf]
        %v913 = vld [vmem:[%s535 + $0x378] sm:$0xf]
        %v914 = vld [vmem:[%s535 + $0x37c] sm:$0xf]
        %v915 = vld [vmem:[%s535 + $0x380] sm:$0xf]
        %v916 = vld [vmem:[%s535 + $0x384] sm:$0xf]
        %v917 = vld [vmem:[%s535 + $0x388] sm:$0xf]
        %v918 = vld [vmem:[%s535 + $0x38c] sm:$0xf]
        %v919 = vld [vmem:[%s535 + $0x390] sm:$0xf]
        %v920 = vld [vmem:[%s535 + $0x394] sm:$0xf]
        %v921 = vld [vmem:[%s535 + $0x398] sm:$0xf]
        %v922 = vld [vmem:[%s535 + $0x39c] sm:$0xf]
        %v923 = vld [vmem:[%s535 + $0x3a0] sm:$0xf]
        %v924 = vld [vmem:[%s535 + $0x3a4] sm:$0xf]
        %v925 = vld [vmem:[%s535 + $0x3a8] sm:$0xf]
        %v926 = vld [vmem:[%s535 + $0x3ac] sm:$0xf]
        %v927 = vld [vmem:[%s535 + $0x3b0] sm:$0xf]
        %v928 = vld [vmem:[%s535 + $0x3b4] sm:$0xf]
        %v929 = vld [vmem:[%s535 + $0x3b8] sm:$0xf]
        %v930 = vld [vmem:[%s535 + $0x3bc] sm:$0xf]
        %v931 = vld [vmem:[%s535 + $0x3c0] sm:$0xf]
        %v932 = vld [vmem:[%s535 + $0x3c4] sm:$0xf]
        %v933 = vld [vmem:[%s535 + $0x3c8] sm:$0xf]
        %v934 = vld [vmem:[%s535 + $0x3cc] sm:$0xf]
        %v935 = vld [vmem:[%s535 + $0x3d0] sm:$0xf]
        %v936 = vld [vmem:[%s535 + $0x3d4] sm:$0xf]
        %v937 = vld [vmem:[%s535 + $0x3d8] sm:$0xf]
        %v938 = vld [vmem:[%s535 + $0x3dc] sm:$0xf]
        %v939 = vld [vmem:[%s535 + $0x3e0] sm:$0xf]
        %v940 = vld [vmem:[%s535 + $0x3e4] sm:$0xf]
        %v941 = vld [vmem:[%s535 + $0x3e8] sm:$0xf]
        %v942 = vld [vmem:[%s535 + $0x3ec] sm:$0xf]
        %v943 = vld [vmem:[%s535 + $0x3f0] sm:$0xf]
        %v944 = vld [vmem:[%s535 + $0x3f4] sm:$0xf]
        %v945 = vld [vmem:[%s535 + $0x3f8] sm:$0xf]
        %v946 = vld [vmem:[%s535 + $0x3fc] sm:$0xf]
        %v947 = vld [vmem:[%s535 + $0x400] sm:$0xf]
        %v948 = vld [vmem:[%s535 + $0x404] sm:$0xf]
        %v949 = vld [vmem:[%s535 + $0x408] sm:$0xf]
        %v950 = vld [vmem:[%s535 + $0x40c] sm:$0xf]
        %v951 = vld [vmem:[%s535 + $0x410] sm:$0xf]
        %v952 = vld [vmem:[%s535 + $0x414] sm:$0xf]
        %v953 = vld [vmem:[%s535 + $0x418] sm:$0xf]
        %v954 = vld [vmem:[%s535 + $0x41c] sm:$0xf]
        %v955 = vld [vmem:[%s535 + $0x420] sm:$0xf]
        %v956 = vld [vmem:[%s535 + $0x424] sm:$0xf]
        %v957 = vld [vmem:[%s535 + $0x428] sm:$0xf]
        %v958 = vld [vmem:[%s535 + $0x42c] sm:$0xf]
        %v959 = vld [vmem:[%s535 + $0x430] sm:$0xf]
        %v960 = vld [vmem:[%s535 + $0x434] sm:$0xf]
        %v961 = vld [vmem:[%s535 + $0x438] sm:$0xf]
        %v962 = vld [vmem:[%s535 + $0x43c] sm:$0xf]
        %v963 = vld [vmem:[%s535 + $0x440] sm:$0xf]
        %v964 = vld [vmem:[%s535 + $0x444] sm:$0xf]
        %v965 = vld [vmem:[%s535 + $0x448] sm:$0xf]
        %v966 = vld [vmem:[%s535 + $0x44c] sm:$0xf]
        %v967 = vld [vmem:[%s535 + $0x450] sm:$0xf]
        %v968 = vld [vmem:[%s535 + $0x454] sm:$0xf]
        %v969 = vld [vmem:[%s535 + $0x458] sm:$0xf]
        %v970 = vld [vmem:[%s535 + $0x45c] sm:$0xf]
        %v971 = vld [vmem:[%s535 + $0x460] sm:$0xf]
        %v972 = vld [vmem:[%s535 + $0x464] sm:$0xf]
        %v973 = vld [vmem:[%s535 + $0x468] sm:$0xf]
        %v974 = vld [vmem:[%s535 + $0x46c] sm:$0xf]
        %v975 = vld [vmem:[%s535 + $0x470] sm:$0xf]
        %v976 = vld [vmem:[%s535 + $0x474] sm:$0xf]
        %v977 = vld [vmem:[%s535 + $0x478] sm:$0xf]
        %v978 = vld [vmem:[%s535 + $0x47c] sm:$0xf]
        %v979 = vld [vmem:[%s535 + $0x480] sm:$0xf]
        %v980 = vld [vmem:[%s535 + $0x484] sm:$0xf]
        %v981 = vld [vmem:[%s535 + $0x488] sm:$0xf]
        %v982 = vld [vmem:[%s535 + $0x48c] sm:$0xf]
        %v983 = vld [vmem:[%s535 + $0x490] sm:$0xf]
        %v984 = vld [vmem:[%s535 + $0x494] sm:$0xf]
        %v985 = vld [vmem:[%s535 + $0x498] sm:$0xf]
        %v986 = vld [vmem:[%s535 + $0x49c] sm:$0xf]
        %v987 = vld [vmem:[%s535 + $0x4a0] sm:$0xf]
        %v988 = vld [vmem:[%s535 + $0x4a4] sm:$0xf]
        %v989 = vld [vmem:[%s535 + $0x4a8] sm:$0xf]
        %v990 = vld [vmem:[%s535 + $0x4ac] sm:$0xf]
        %v991 = vld [vmem:[%s535 + $0x4b0] sm:$0xf]
        %v992 = vld [vmem:[%s535 + $0x4b4] sm:$0xf]
        %v993 = vld [vmem:[%s535 + $0x4b8] sm:$0xf]
        %v994 = vld [vmem:[%s535 + $0x4bc] sm:$0xf]
        %v995 = vld [vmem:[%s535 + $0x4c0] sm:$0xf]
        %v996 = vld [vmem:[%s535 + $0x4c4] sm:$0xf]
        %v997 = vld [vmem:[%s535 + $0x4c8] sm:$0xf]
        %v998 = vld [vmem:[%s535 + $0x4cc] sm:$0xf]
        %v999 = vld [vmem:[%s535 + $0x4d0] sm:$0xf]
        %v1000 = vld [vmem:[%s535 + $0x4d4] sm:$0xf]
        %v1001 = vld [vmem:[%s535 + $0x4d8] sm:$0xf]
        %v1002 = vld [vmem:[%s535 + $0x4dc] sm:$0xf]
        %v1003 = vld [vmem:[%s535 + $0x4e0] sm:$0xf]
        %v1004 = vld [vmem:[%s535 + $0x4e4] sm:$0xf]
        %v1005 = vld [vmem:[%s535 + $0x4e8] sm:$0xf]
        %v1006 = vld [vmem:[%s535 + $0x4ec] sm:$0xf]
        %v1007 = vld [vmem:[%s535 + $0x4f0] sm:$0xf]
        %v1008 = vld [vmem:[%s535 + $0x4f4] sm:$0xf]
        %v1009 = vld [vmem:[%s535 + $0x4f8] sm:$0xf]
        %v1010 = vld [vmem:[%s535 + $0x4fc] sm:$0xf]
        %v1011 = vld [vmem:[%s535 + $0x500] sm:$0xf]
        %v1012 = vld [vmem:[%s535 + $0x504] sm:$0xf]
        %v1013 = vld [vmem:[%s535 + $0x508] sm:$0xf]
        %v1014 = vld [vmem:[%s535 + $0x50c] sm:$0xf]
        %v1015 = vld [vmem:[%s535 + $0x510] sm:$0xf]
        %v1016 = vld [vmem:[%s535 + $0x514] sm:$0xf]
        %v1017 = vld [vmem:[%s535 + $0x518] sm:$0xf]
        %v1018 = vld [vmem:[%s535 + $0x51c] sm:$0xf]
        %v1019 = vld [vmem:[%s535 + $0x520] sm:$0xf]
        %v1020 = vld [vmem:[%s535 + $0x524] sm:$0xf]
        %v1021 = vld [vmem:[%s535 + $0x528] sm:$0xf]
        %v1022 = vld [vmem:[%s535 + $0x52c] sm:$0xf]
        %v1023 = vld [vmem:[%s535 + $0x530] sm:$0xf]
        %v1024 = vld [vmem:[%s535 + $0x534] sm:$0xf]
        %v1025 = vld [vmem:[%s535 + $0x538] sm:$0xf]
        %v1026 = vld [vmem:[%s535 + $0x53c] sm:$0xf]
        %v1027 = vld [vmem:[%s535 + $0x540] sm:$0xf]
        %v1028 = vld [vmem:[%s535 + $0x544] sm:$0xf]
        %v1029 = vld [vmem:[%s535 + $0x548] sm:$0xf]
        %v1030 = vld [vmem:[%s535 + $0x54c] sm:$0xf]
        %v1031 = vld [vmem:[%s535 + $0x550] sm:$0xf]
        %v1032 = vld [vmem:[%s535 + $0x554] sm:$0xf]
        %v1033 = vld [vmem:[%s535 + $0x558] sm:$0xf]
        %v1034 = vld [vmem:[%s535 + $0x55c] sm:$0xf]
        %v1035 = vld [vmem:[%s535 + $0x560] sm:$0xf]
        %v1036 = vld [vmem:[%s535 + $0x564] sm:$0xf]
        %v1037 = vld [vmem:[%s535 + $0x568] sm:$0xf]
        %v1038 = vld [vmem:[%s535 + $0x56c] sm:$0xf]
        %v1039 = vld [vmem:[%s535 + $0x570] sm:$0xf]
        %v1040 = vld [vmem:[%s535 + $0x574] sm:$0xf]
        %v1041 = vld [vmem:[%s535 + $0x578] sm:$0xf]
        %v1042 = vld [vmem:[%s535 + $0x57c] sm:$0xf]
        %v1395 = vunpack.c.l.b16 %v691
        %v1396 = vunpack.c.l.b16 %v692
        %v1397 = vunpack.c.l.b16 %v693
        %v1398 = vunpack.c.l.b16 %v694
        %v1399 = vunpack.c.l.b16 %v695
        %v1400 = vunpack.c.l.b16 %v696
        %v1401 = vunpack.c.l.b16 %v697
        %v1402 = vunpack.c.l.b16 %v698
        %v1403 = vunpack.c.l.b16 %v699
        %v1404 = vunpack.c.l.b16 %v700
        %v1405 = vunpack.c.l.b16 %v701
        %v1406 = vunpack.c.l.b16 %v702
        %v1407 = vunpack.c.l.b16 %v703
        %v1408 = vunpack.c.l.b16 %v704
        %v1409 = vunpack.c.l.b16 %v705
        %v1410 = vunpack.c.l.b16 %v706
        %v1411 = vunpack.c.l.b16 %v707
        %v1412 = vunpack.c.l.b16 %v708
        %v1413 = vunpack.c.l.b16 %v709
        %v1414 = vunpack.c.l.b16 %v710
        %v1415 = vunpack.c.l.b16 %v711
        %v1416 = vunpack.c.l.b16 %v712
        %v1417 = vunpack.c.l.b16 %v713
        %v1418 = vunpack.c.l.b16 %v714
        %v1419 = vunpack.c.l.b16 %v715
        %v1420 = vunpack.c.l.b16 %v716
        %v1421 = vunpack.c.l.b16 %v717
        %v1422 = vunpack.c.l.b16 %v718
        %v1423 = vunpack.c.l.b16 %v719
        %v1424 = vunpack.c.l.b16 %v720
        %v1425 = vunpack.c.l.b16 %v721
        %v1426 = vunpack.c.l.b16 %v722
        %v1427 = vunpack.c.l.b16 %v723
        %v1428 = vunpack.c.l.b16 %v724
        %v1429 = vunpack.c.l.b16 %v725
        %v1430 = vunpack.c.l.b16 %v726
        %v1431 = vunpack.c.l.b16 %v727
        %v1432 = vunpack.c.l.b16 %v728
        %v1433 = vunpack.c.l.b16 %v729
        %v1434 = vunpack.c.l.b16 %v730
        %v1435 = vunpack.c.l.b16 %v731
        %v1436 = vunpack.c.l.b16 %v732
        %v1437 = vunpack.c.l.b16 %v733
        %v1438 = vunpack.c.l.b16 %v734
        %v1439 = vunpack.c.l.b16 %v735
        %v1440 = vunpack.c.l.b16 %v736
        %v1441 = vunpack.c.l.b16 %v737
        %v1442 = vunpack.c.l.b16 %v738
        %v1443 = vunpack.c.l.b16 %v739
        %v1444 = vunpack.c.l.b16 %v740
        %v1445 = vunpack.c.l.b16 %v741
        %v1446 = vunpack.c.l.b16 %v742
        %v1447 = vunpack.c.l.b16 %v743
        %v1448 = vunpack.c.l.b16 %v744
        %v1449 = vunpack.c.l.b16 %v745
        %v1450 = vunpack.c.l.b16 %v746
        %v1451 = vunpack.c.l.b16 %v747
        %v1452 = vunpack.c.l.b16 %v748
        %v1453 = vunpack.c.l.b16 %v749
        %v1454 = vunpack.c.l.b16 %v750
        %v1455 = vunpack.c.l.b16 %v751
        %v1456 = vunpack.c.l.b16 %v752
        %v1457 = vunpack.c.l.b16 %v753
        %v1458 = vunpack.c.l.b16 %v754
        %v1459 = vunpack.c.l.b16 %v755
        %v1460 = vunpack.c.l.b16 %v756
        %v1461 = vunpack.c.l.b16 %v757
        %v1462 = vunpack.c.l.b16 %v758
        %v1463 = vunpack.c.l.b16 %v759
        %v1464 = vunpack.c.l.b16 %v760
        %v1465 = vunpack.c.l.b16 %v761
        %v1466 = vunpack.c.l.b16 %v762
        %v1467 = vunpack.c.l.b16 %v763
        %v1468 = vunpack.c.l.b16 %v764
        %v1469 = vunpack.c.l.b16 %v765
        %v1470 = vunpack.c.l.b16 %v766
        %v1471 = vunpack.c.l.b16 %v767
        %v1472 = vunpack.c.l.b16 %v768
        %v1473 = vunpack.c.l.b16 %v769
        %v1474 = vunpack.c.l.b16 %v770
        %v1475 = vunpack.c.l.b16 %v771
        %v1476 = vunpack.c.l.b16 %v772
        %v1477 = vunpack.c.l.b16 %v773
        %v1478 = vunpack.c.l.b16 %v774
        %v1479 = vunpack.c.l.b16 %v775
        %v1480 = vunpack.c.l.b16 %v776
        %v1481 = vunpack.c.l.b16 %v777
        %v1482 = vunpack.c.l.b16 %v778
        %v1483 = vunpack.c.l.b16 %v779
        %v1484 = vunpack.c.l.b16 %v780
        %v1485 = vunpack.c.l.b16 %v781
        %v1486 = vunpack.c.l.b16 %v782
        %v1487 = vunpack.c.l.b16 %v783
        %v1488 = vunpack.c.l.b16 %v784
        %v1489 = vunpack.c.l.b16 %v785
        %v1490 = vunpack.c.l.b16 %v786
        %v1491 = vunpack.c.l.b16 %v787
        %v1492 = vunpack.c.l.b16 %v788
        %v1493 = vunpack.c.l.b16 %v789
        %v1494 = vunpack.c.l.b16 %v790
        %v1495 = vunpack.c.l.b16 %v791
        %v1496 = vunpack.c.l.b16 %v792
        %v1497 = vunpack.c.l.b16 %v793
        %v1498 = vunpack.c.l.b16 %v794
        %v1499 = vunpack.c.l.b16 %v795
        %v1500 = vunpack.c.l.b16 %v796
        %v1501 = vunpack.c.l.b16 %v797
        %v1502 = vunpack.c.l.b16 %v798
        %v1503 = vunpack.c.l.b16 %v799
        %v1504 = vunpack.c.l.b16 %v800
        %v1505 = vunpack.c.l.b16 %v801
        %v1506 = vunpack.c.l.b16 %v802
        %v1507 = vunpack.c.l.b16 %v803
        %v1508 = vunpack.c.l.b16 %v804
        %v1509 = vunpack.c.l.b16 %v805
        %v1510 = vunpack.c.l.b16 %v806
        %v1511 = vunpack.c.l.b16 %v807
        %v1512 = vunpack.c.l.b16 %v808
        %v1513 = vunpack.c.l.b16 %v809
        %v1514 = vunpack.c.l.b16 %v810
        %v1515 = vunpack.c.l.b16 %v811
        %v1516 = vunpack.c.l.b16 %v812
        %v1517 = vunpack.c.l.b16 %v813
        %v1518 = vunpack.c.l.b16 %v814
        %v1519 = vunpack.c.l.b16 %v815
        %v1520 = vunpack.c.l.b16 %v816
        %v1521 = vunpack.c.l.b16 %v817
        %v1522 = vunpack.c.l.b16 %v818
        %v1523 = vunpack.c.l.b16 %v819
        %v1524 = vunpack.c.l.b16 %v820
        %v1525 = vunpack.c.l.b16 %v821
        %v1526 = vunpack.c.l.b16 %v822
        %v1527 = vunpack.c.l.b16 %v823
        %v1528 = vunpack.c.l.b16 %v824
        %v1529 = vunpack.c.l.b16 %v825
        %v1530 = vunpack.c.l.b16 %v826
        %v1531 = vunpack.c.l.b16 %v827
        %v1532 = vunpack.c.l.b16 %v828
        %v1533 = vunpack.c.l.b16 %v829
        %v1534 = vunpack.c.l.b16 %v830
        %v1535 = vunpack.c.l.b16 %v831
        %v1536 = vunpack.c.l.b16 %v832
        %v1537 = vunpack.c.l.b16 %v833
        %v1538 = vunpack.c.l.b16 %v834
        %v1539 = vunpack.c.l.b16 %v835
        %v1540 = vunpack.c.l.b16 %v836
        %v1541 = vunpack.c.l.b16 %v837
        %v1542 = vunpack.c.l.b16 %v838
        %v1543 = vunpack.c.l.b16 %v839
        %v1544 = vunpack.c.l.b16 %v840
        %v1545 = vunpack.c.l.b16 %v841
        %v1546 = vunpack.c.l.b16 %v842
        %v1547 = vunpack.c.l.b16 %v843
        %v1548 = vunpack.c.l.b16 %v844
        %v1549 = vunpack.c.l.b16 %v845
        %v1550 = vunpack.c.l.b16 %v846
        %v1551 = vunpack.c.l.b16 %v847
        %v1552 = vunpack.c.l.b16 %v848
        %v1553 = vunpack.c.l.b16 %v849
        %v1554 = vunpack.c.l.b16 %v850
        %v1555 = vunpack.c.l.b16 %v851
        %v1556 = vunpack.c.l.b16 %v852
        %v1557 = vunpack.c.l.b16 %v853
        %v1558 = vunpack.c.l.b16 %v854
        %v1559 = vunpack.c.l.b16 %v855
        %v1560 = vunpack.c.l.b16 %v856
        %v1561 = vunpack.c.l.b16 %v857
        %v1562 = vunpack.c.l.b16 %v858
        %v1563 = vunpack.c.l.b16 %v859
        %v1564 = vunpack.c.l.b16 %v860
        %v1565 = vunpack.c.l.b16 %v861
        %v1566 = vunpack.c.l.b16 %v862
        %v1567 = vunpack.c.l.b16 %v863
        %v1568 = vunpack.c.l.b16 %v864
        %v1569 = vunpack.c.l.b16 %v865
        %v1570 = vunpack.c.l.b16 %v866
        %v1571 = vunpack.c.l.b16 %v867
        %v1572 = vunpack.c.l.b16 %v868
        %v1573 = vunpack.c.l.b16 %v869
        %v1574 = vunpack.c.l.b16 %v870
        %v1575 = vunpack.c.l.b16 %v871
        %v1576 = vunpack.c.l.b16 %v872
        %v1577 = vunpack.c.l.b16 %v873
        %v1578 = vunpack.c.l.b16 %v874
        %v1579 = vunpack.c.l.b16 %v875
        %v1580 = vunpack.c.l.b16 %v876
        %v1581 = vunpack.c.l.b16 %v877
        %v1582 = vunpack.c.l.b16 %v878
        %v1583 = vunpack.c.l.b16 %v879
        %v1584 = vunpack.c.l.b16 %v880
        %v1585 = vunpack.c.l.b16 %v881
        %v1586 = vunpack.c.l.b16 %v882
        %v1587 = vunpack.c.l.b16 %v883
        %v1588 = vunpack.c.l.b16 %v884
        %v1589 = vunpack.c.l.b16 %v885
        %v1590 = vunpack.c.l.b16 %v886
        %v1591 = vunpack.c.l.b16 %v887
        %v1592 = vunpack.c.l.b16 %v888
        %v1593 = vunpack.c.l.b16 %v889
        %v1594 = vunpack.c.l.b16 %v890
        %v1595 = vunpack.c.l.b16 %v891
        %v1596 = vunpack.c.l.b16 %v892
        %v1597 = vunpack.c.l.b16 %v893
        %v1598 = vunpack.c.l.b16 %v894
        %v1599 = vunpack.c.l.b16 %v895
        %v1600 = vunpack.c.l.b16 %v896
        %v1601 = vunpack.c.l.b16 %v897
        %v1602 = vunpack.c.l.b16 %v898
        %v1603 = vunpack.c.l.b16 %v899
        %v1604 = vunpack.c.l.b16 %v900
        %v1605 = vunpack.c.l.b16 %v901
        %v1606 = vunpack.c.l.b16 %v902
        %v1607 = vunpack.c.l.b16 %v903
        %v1608 = vunpack.c.l.b16 %v904
        %v1609 = vunpack.c.l.b16 %v905
        %v1610 = vunpack.c.l.b16 %v906
        %v1611 = vunpack.c.l.b16 %v907
        %v1612 = vunpack.c.l.b16 %v908
        %v1613 = vunpack.c.l.b16 %v909
        %v1614 = vunpack.c.l.b16 %v910
        %v1615 = vunpack.c.l.b16 %v911
        %v1616 = vunpack.c.l.b16 %v912
        %v1617 = vunpack.c.l.b16 %v913
        %v1618 = vunpack.c.l.b16 %v914
        %v1619 = vunpack.c.l.b16 %v915
        %v1620 = vunpack.c.l.b16 %v916
        %v1621 = vunpack.c.l.b16 %v917
        %v1622 = vunpack.c.l.b16 %v918
        %v1623 = vunpack.c.l.b16 %v919
        %v1624 = vunpack.c.l.b16 %v920
        %v1625 = vunpack.c.l.b16 %v921
        %v1626 = vunpack.c.l.b16 %v922
        %v1627 = vunpack.c.l.b16 %v923
        %v1628 = vunpack.c.l.b16 %v924
        %v1629 = vunpack.c.l.b16 %v925
        %v1630 = vunpack.c.l.b16 %v926
        %v1631 = vunpack.c.l.b16 %v927
        %v1632 = vunpack.c.l.b16 %v928
        %v1633 = vunpack.c.l.b16 %v929
        %v1634 = vunpack.c.l.b16 %v930
        %v1635 = vunpack.c.l.b16 %v931
        %v1636 = vunpack.c.l.b16 %v932
        %v1637 = vunpack.c.l.b16 %v933
        %v1638 = vunpack.c.l.b16 %v934
        %v1639 = vunpack.c.l.b16 %v935
        %v1640 = vunpack.c.l.b16 %v936
        %v1641 = vunpack.c.l.b16 %v937
        %v1642 = vunpack.c.l.b16 %v938
        %v1643 = vunpack.c.l.b16 %v939
        %v1644 = vunpack.c.l.b16 %v940
        %v1645 = vunpack.c.l.b16 %v941
        %v1646 = vunpack.c.l.b16 %v942
        %v1647 = vunpack.c.l.b16 %v943
        %v1648 = vunpack.c.l.b16 %v944
        %v1649 = vunpack.c.l.b16 %v945
        %v1650 = vunpack.c.l.b16 %v946
        %v1651 = vunpack.c.l.b16 %v947
        %v1652 = vunpack.c.l.b16 %v948
        %v1653 = vunpack.c.l.b16 %v949
        %v1654 = vunpack.c.l.b16 %v950
        %v1655 = vunpack.c.l.b16 %v951
        %v1656 = vunpack.c.l.b16 %v952
        %v1657 = vunpack.c.l.b16 %v953
        %v1658 = vunpack.c.l.b16 %v954
        %v1659 = vunpack.c.l.b16 %v955
        %v1660 = vunpack.c.l.b16 %v956
        %v1661 = vunpack.c.l.b16 %v957
        %v1662 = vunpack.c.l.b16 %v958
        %v1663 = vunpack.c.l.b16 %v959
        %v1664 = vunpack.c.l.b16 %v960
        %v1665 = vunpack.c.l.b16 %v961
        %v1666 = vunpack.c.l.b16 %v962
        %v1667 = vunpack.c.l.b16 %v963
        %v1668 = vunpack.c.l.b16 %v964
        %v1669 = vunpack.c.l.b16 %v965
        %v1670 = vunpack.c.l.b16 %v966
        %v1671 = vunpack.c.l.b16 %v967
        %v1672 = vunpack.c.l.b16 %v968
        %v1673 = vunpack.c.l.b16 %v969
        %v1674 = vunpack.c.l.b16 %v970
        %v1675 = vunpack.c.l.b16 %v971
        %v1676 = vunpack.c.l.b16 %v972
        %v1677 = vunpack.c.l.b16 %v973
        %v1678 = vunpack.c.l.b16 %v974
        %v1679 = vunpack.c.l.b16 %v975
        %v1680 = vunpack.c.l.b16 %v976
        %v1681 = vunpack.c.l.b16 %v977
        %v1682 = vunpack.c.l.b16 %v978
        %v1683 = vunpack.c.l.b16 %v979
        %v1684 = vunpack.c.l.b16 %v980
        %v1685 = vunpack.c.l.b16 %v981
        %v1686 = vunpack.c.l.b16 %v982
        %v1687 = vunpack.c.l.b16 %v983
        %v1688 = vunpack.c.l.b16 %v984
        %v1689 = vunpack.c.l.b16 %v985
        %v1690 = vunpack.c.l.b16 %v986
        %v1691 = vunpack.c.l.b16 %v987
        %v1692 = vunpack.c.l.b16 %v988
        %v1693 = vunpack.c.l.b16 %v989
        %v1694 = vunpack.c.l.b16 %v990
        %v1695 = vunpack.c.l.b16 %v991
        %v1696 = vunpack.c.l.b16 %v992
        %v1697 = vunpack.c.l.b16 %v993
        %v1698 = vunpack.c.l.b16 %v994
        %v1699 = vunpack.c.l.b16 %v995
        %v1700 = vunpack.c.l.b16 %v996
        %v1701 = vunpack.c.l.b16 %v997
        %v1702 = vunpack.c.l.b16 %v998
        %v1703 = vunpack.c.l.b16 %v999
        %v1704 = vunpack.c.l.b16 %v1000
        %v1705 = vunpack.c.l.b16 %v1001
        %v1706 = vunpack.c.l.b16 %v1002
        %v1707 = vunpack.c.l.b16 %v1003
        %v1708 = vunpack.c.l.b16 %v1004
        %v1709 = vunpack.c.l.b16 %v1005
        %v1710 = vunpack.c.l.b16 %v1006
        %v1711 = vunpack.c.l.b16 %v1007
        %v1712 = vunpack.c.l.b16 %v1008
        %v1713 = vunpack.c.l.b16 %v1009
        %v1714 = vunpack.c.l.b16 %v1010
        %v1715 = vunpack.c.l.b16 %v1011
        %v1716 = vunpack.c.l.b16 %v1012
        %v1717 = vunpack.c.l.b16 %v1013
        %v1718 = vunpack.c.l.b16 %v1014
        %v1719 = vunpack.c.l.b16 %v1015
        %v1720 = vunpack.c.l.b16 %v1016
        %v1721 = vunpack.c.l.b16 %v1017
        %v1722 = vunpack.c.l.b16 %v1018
        %v1723 = vunpack.c.l.b16 %v1019
        %v1724 = vunpack.c.l.b16 %v1020
        %v1725 = vunpack.c.l.b16 %v1021
        %v1726 = vunpack.c.l.b16 %v1022
        %v1727 = vunpack.c.l.b16 %v1023
        %v1728 = vunpack.c.l.b16 %v1024
        %v1729 = vunpack.c.l.b16 %v1025
        %v1730 = vunpack.c.l.b16 %v1026
        %v1731 = vunpack.c.l.b16 %v1027
        %v1732 = vunpack.c.l.b16 %v1028
        %v1733 = vunpack.c.l.b16 %v1029
        %v1734 = vunpack.c.l.b16 %v1030
        %v1735 = vunpack.c.l.b16 %v1031
        %v1736 = vunpack.c.l.b16 %v1032
        %v1737 = vunpack.c.l.b16 %v1033
        %v1738 = vunpack.c.l.b16 %v1034
        %v1739 = vunpack.c.l.b16 %v1035
        %v1740 = vunpack.c.l.b16 %v1036
        %v1741 = vunpack.c.l.b16 %v1037
        %v1742 = vunpack.c.l.b16 %v1038
        %v1743 = vunpack.c.l.b16 %v1039
        %v1744 = vunpack.c.l.b16 %v1040
        %v1745 = vunpack.c.l.b16 %v1041
        %v1746 = vunpack.c.l.b16 %v1042
        %v1747 = vpack.c.b16 %v1396, %v1395
        %v1748 = vpack.c.b16 %v1398, %v1397
        %v1749 = vpack.c.b16 %v1400, %v1399
        %v1750 = vpack.c.b16 %v1402, %v1401
        %v1751 = vpack.c.b16 %v1404, %v1403
        %v1752 = vpack.c.b16 %v1406, %v1405
        %v1753 = vpack.c.b16 %v1408, %v1407
        %v1754 = vpack.c.b16 %v1410, %v1409
        %v1755 = vpack.c.b16 %v1412, %v1411
        %v1756 = vpack.c.b16 %v1414, %v1413
        %v1757 = vpack.c.b16 %v1416, %v1415
        %v1758 = vpack.c.b16 %v1418, %v1417
        %v1759 = vpack.c.b16 %v1420, %v1419
        %v1760 = vpack.c.b16 %v1422, %v1421
        %v1761 = vpack.c.b16 %v1424, %v1423
        %v1762 = vpack.c.b16 %v1426, %v1425
        %v1763 = vpack.c.b16 %v1428, %v1427
        %v1764 = vpack.c.b16 %v1430, %v1429
        %v1765 = vpack.c.b16 %v1432, %v1431
        %v1766 = vpack.c.b16 %v1434, %v1433
        %v1767 = vpack.c.b16 %v1436, %v1435
        %v1768 = vpack.c.b16 %v1438, %v1437
        %v1769 = vpack.c.b16 %v1440, %v1439
        %v1770 = vpack.c.b16 %v1442, %v1441
        %v1771 = vpack.c.b16 %v1444, %v1443
        %v1772 = vpack.c.b16 %v1446, %v1445
        %v1773 = vpack.c.b16 %v1448, %v1447
        %v1774 = vpack.c.b16 %v1450, %v1449
        %v1775 = vpack.c.b16 %v1452, %v1451
        %v1776 = vpack.c.b16 %v1454, %v1453
        %v1777 = vpack.c.b16 %v1456, %v1455
        %v1778 = vpack.c.b16 %v1458, %v1457
        %v1779 = vpack.c.b16 %v1460, %v1459
        %v1780 = vpack.c.b16 %v1462, %v1461
        %v1781 = vpack.c.b16 %v1464, %v1463
        %v1782 = vpack.c.b16 %v1466, %v1465
        %v1783 = vpack.c.b16 %v1468, %v1467
        %v1784 = vpack.c.b16 %v1470, %v1469
        %v1785 = vpack.c.b16 %v1472, %v1471
        %v1786 = vpack.c.b16 %v1474, %v1473
        %v1787 = vpack.c.b16 %v1476, %v1475
        %v1788 = vpack.c.b16 %v1478, %v1477
        %v1789 = vpack.c.b16 %v1480, %v1479
        %v1790 = vpack.c.b16 %v1482, %v1481
        %v1791 = vpack.c.b16 %v1484, %v1483
        %v1792 = vpack.c.b16 %v1486, %v1485
        %v1793 = vpack.c.b16 %v1488, %v1487
        %v1794 = vpack.c.b16 %v1490, %v1489
        %v1795 = vpack.c.b16 %v1492, %v1491
        %v1796 = vpack.c.b16 %v1494, %v1493
        %v1797 = vpack.c.b16 %v1496, %v1495
        %v1798 = vpack.c.b16 %v1498, %v1497
        %v1799 = vpack.c.b16 %v1500, %v1499
        %v1800 = vpack.c.b16 %v1502, %v1501
        %v1801 = vpack.c.b16 %v1504, %v1503
        %v1802 = vpack.c.b16 %v1506, %v1505
        %v1803 = vpack.c.b16 %v1508, %v1507
        %v1804 = vpack.c.b16 %v1510, %v1509
        %v1805 = vpack.c.b16 %v1512, %v1511
        %v1806 = vpack.c.b16 %v1514, %v1513
        %v1807 = vpack.c.b16 %v1516, %v1515
        %v1808 = vpack.c.b16 %v1518, %v1517
        %v1809 = vpack.c.b16 %v1520, %v1519
        %v1810 = vpack.c.b16 %v1522, %v1521
        %v1811 = vpack.c.b16 %v1524, %v1523
        %v1812 = vpack.c.b16 %v1526, %v1525
        %v1813 = vpack.c.b16 %v1528, %v1527
        %v1814 = vpack.c.b16 %v1530, %v1529
        %v1815 = vpack.c.b16 %v1532, %v1531
        %v1816 = vpack.c.b16 %v1534, %v1533
        %v1817 = vpack.c.b16 %v1536, %v1535
        %v1818 = vpack.c.b16 %v1538, %v1537
        %v1819 = vpack.c.b16 %v1540, %v1539
        %v1820 = vpack.c.b16 %v1542, %v1541
        %v1821 = vpack.c.b16 %v1544, %v1543
        %v1822 = vpack.c.b16 %v1546, %v1545
        %v1823 = vpack.c.b16 %v1548, %v1547
        %v1824 = vpack.c.b16 %v1550, %v1549
        %v1825 = vpack.c.b16 %v1552, %v1551
        %v1826 = vpack.c.b16 %v1554, %v1553
        %v1827 = vpack.c.b16 %v1556, %v1555
        %v1828 = vpack.c.b16 %v1558, %v1557
        %v1829 = vpack.c.b16 %v1560, %v1559
        %v1830 = vpack.c.b16 %v1562, %v1561
        %v1831 = vpack.c.b16 %v1564, %v1563
        %v1832 = vpack.c.b16 %v1566, %v1565
        %v1833 = vpack.c.b16 %v1568, %v1567
        %v1834 = vpack.c.b16 %v1570, %v1569
        %v1835 = vpack.c.b16 %v1572, %v1571
        %v1836 = vpack.c.b16 %v1574, %v1573
        %v1837 = vpack.c.b16 %v1576, %v1575
        %v1838 = vpack.c.b16 %v1578, %v1577
        %v1839 = vpack.c.b16 %v1580, %v1579
        %v1840 = vpack.c.b16 %v1582, %v1581
        %v1841 = vpack.c.b16 %v1584, %v1583
        %v1842 = vpack.c.b16 %v1586, %v1585
        %v1843 = vpack.c.b16 %v1588, %v1587
        %v1844 = vpack.c.b16 %v1590, %v1589
        %v1845 = vpack.c.b16 %v1592, %v1591
        %v1846 = vpack.c.b16 %v1594, %v1593
        %v1847 = vpack.c.b16 %v1596, %v1595
        %v1848 = vpack.c.b16 %v1598, %v1597
        %v1849 = vpack.c.b16 %v1600, %v1599
        %v1850 = vpack.c.b16 %v1602, %v1601
        %v1851 = vpack.c.b16 %v1604, %v1603
        %v1852 = vpack.c.b16 %v1606, %v1605
        %v1853 = vpack.c.b16 %v1608, %v1607
        %v1854 = vpack.c.b16 %v1610, %v1609
        %v1855 = vpack.c.b16 %v1612, %v1611
        %v1856 = vpack.c.b16 %v1614, %v1613
        %v1857 = vpack.c.b16 %v1616, %v1615
        %v1858 = vpack.c.b16 %v1618, %v1617
        %v1859 = vpack.c.b16 %v1620, %v1619
        %v1860 = vpack.c.b16 %v1622, %v1621
        %v1861 = vpack.c.b16 %v1624, %v1623
        %v1862 = vpack.c.b16 %v1626, %v1625
        %v1863 = vpack.c.b16 %v1628, %v1627
        %v1864 = vpack.c.b16 %v1630, %v1629
        %v1865 = vpack.c.b16 %v1632, %v1631
        %v1866 = vpack.c.b16 %v1634, %v1633
        %v1867 = vpack.c.b16 %v1636, %v1635
        %v1868 = vpack.c.b16 %v1638, %v1637
        %v1869 = vpack.c.b16 %v1640, %v1639
        %v1870 = vpack.c.b16 %v1642, %v1641
        %v1871 = vpack.c.b16 %v1644, %v1643
        %v1872 = vpack.c.b16 %v1646, %v1645
        %v1873 = vpack.c.b16 %v1648, %v1647
        %v1874 = vpack.c.b16 %v1650, %v1649
        %v1875 = vpack.c.b16 %v1652, %v1651
        %v1876 = vpack.c.b16 %v1654, %v1653
        %v1877 = vpack.c.b16 %v1656, %v1655
        %v1878 = vpack.c.b16 %v1658, %v1657
        %v1879 = vpack.c.b16 %v1660, %v1659
        %v1880 = vpack.c.b16 %v1662, %v1661
        %v1881 = vpack.c.b16 %v1664, %v1663
        %v1882 = vpack.c.b16 %v1666, %v1665
        %v1883 = vpack.c.b16 %v1668, %v1667
        %v1884 = vpack.c.b16 %v1670, %v1669
        %v1885 = vpack.c.b16 %v1672, %v1671
        %v1886 = vpack.c.b16 %v1674, %v1673
        %v1887 = vpack.c.b16 %v1676, %v1675
        %v1888 = vpack.c.b16 %v1678, %v1677
        %v1889 = vpack.c.b16 %v1680, %v1679
        %v1890 = vpack.c.b16 %v1682, %v1681
        %v1891 = vpack.c.b16 %v1684, %v1683
        %v1892 = vpack.c.b16 %v1686, %v1685
        %v1893 = vpack.c.b16 %v1688, %v1687
        %v1894 = vpack.c.b16 %v1690, %v1689
        %v1895 = vpack.c.b16 %v1692, %v1691
        %v1896 = vpack.c.b16 %v1694, %v1693
        %v1897 = vpack.c.b16 %v1696, %v1695
        %v1898 = vpack.c.b16 %v1698, %v1697
        %v1899 = vpack.c.b16 %v1700, %v1699
        %v1900 = vpack.c.b16 %v1702, %v1701
        %v1901 = vpack.c.b16 %v1704, %v1703
        %v1902 = vpack.c.b16 %v1706, %v1705
        %v1903 = vpack.c.b16 %v1708, %v1707
        %v1904 = vpack.c.b16 %v1710, %v1709
        %v1905 = vpack.c.b16 %v1712, %v1711
        %v1906 = vpack.c.b16 %v1714, %v1713
        %v1907 = vpack.c.b16 %v1716, %v1715
        %v1908 = vpack.c.b16 %v1718, %v1717
        %v1909 = vpack.c.b16 %v1720, %v1719
        %v1910 = vpack.c.b16 %v1722, %v1721
        %v1911 = vpack.c.b16 %v1724, %v1723
        %v1912 = vpack.c.b16 %v1726, %v1725
        %v1913 = vpack.c.b16 %v1728, %v1727
        %v1914 = vpack.c.b16 %v1730, %v1729
        %v1915 = vpack.c.b16 %v1732, %v1731
        %v1916 = vpack.c.b16 %v1734, %v1733
        %v1917 = vpack.c.b16 %v1736, %v1735
        %v1918 = vpack.c.b16 %v1738, %v1737
        %v1919 = vpack.c.b16 %v1740, %v1739
        %v1920 = vpack.c.b16 %v1742, %v1741
        %v1921 = vpack.c.b16 %v1744, %v1743
        %v1922 = vpack.c.b16 %v1746, %v1745
        %2099 = vmatpush.bf16.msra.mxu0 %v1754
        %2100 = vmatpush.bf16.msra.mxu0 %v1753
        %2101 = vmatpush.bf16.msra.mxu0 %v1752
        %2102 = vmatpush.bf16.msra.mxu0 %v1751
        %2103 = vmatpush.bf16.msra.mxu0 %v1750
        %2104 = vmatpush.bf16.msra.mxu0 %v1749
        %2105 = vmatpush.bf16.msra.mxu0 %v1748
        %2106 = vmatpush.bf16.msra.mxu0 %v1747
        %2107 = vmatmul.bf16.gmra.mxu0 %v669
        %v2108 = vpop.f32.mrf.mxu0
        %v2109 = vadd.f32 0.0, %v2108
        %v2110 = vpop.f32.mrf.mxu0
        %2111 = vdwg.mxu0
        %2112 = vmatpush.bf16.msra.mxu0 %v1762
        %2113 = vmatpush.bf16.msra.mxu0 %v1761
        %2114 = vmatpush.bf16.msra.mxu0 %v1760
        %2115 = vmatpush.bf16.msra.mxu0 %v1759
        %2116 = vmatpush.bf16.msra.mxu0 %v1758
        %2117 = vmatpush.bf16.msra.mxu0 %v1757
        %2118 = vmatpush.bf16.msra.mxu0 %v1756
        %2119 = vmatpush.bf16.msra.mxu0 %v1755
        %2120 = vmatmul.bf16.gmra.mxu0 %v670
        %v2121 = vpop.f32.mrf.mxu0
        %v2122 = vadd.f32 %v2109, %v2121
        %v2123 = vpop.f32.mrf.mxu0
        %2124 = vdwg.mxu0
        %2125 = vmatpush.bf16.msra.mxu0 %v1770
        %2126 = vmatpush.bf16.msra.mxu0 %v1769
        %2127 = vmatpush.bf16.msra.mxu0 %v1768
        %2128 = vmatpush.bf16.msra.mxu0 %v1767
        %2129 = vmatpush.bf16.msra.mxu0 %v1766
        %2130 = vmatpush.bf16.msra.mxu0 %v1765
        %2131 = vmatpush.bf16.msra.mxu0 %v1764
        %2132 = vmatpush.bf16.msra.mxu0 %v1763
        %2133 = vmatmul.bf16.gmra.mxu0 %v671
        %v2134 = vpop.f32.mrf.mxu0
        %v2135 = vadd.f32 %v2122, %v2134
        %v2136 = vpop.f32.mrf.mxu0
        %2137 = vdwg.mxu0
        %2138 = vmatpush.bf16.msra.mxu0 %v1778
        %2139 = vmatpush.bf16.msra.mxu0 %v1777
        %2140 = vmatpush.bf16.msra.mxu0 %v1776
        %2141 = vmatpush.bf16.msra.mxu0 %v1775
        %2142 = vmatpush.bf16.msra.mxu0 %v1774
        %2143 = vmatpush.bf16.msra.mxu0 %v1773
        %2144 = vmatpush.bf16.msra.mxu0 %v1772
        %2145 = vmatpush.bf16.msra.mxu0 %v1771
        %2146 = vmatmul.bf16.gmra.mxu0 %v672
        %v2147 = vpop.f32.mrf.mxu0
        %v2148 = vadd.f32 %v2135, %v2147
        %v2149 = vpop.f32.mrf.mxu0
        %2150 = vdwg.mxu0
        %2151 = vmatpush.bf16.msra.mxu0 %v1786
        %2152 = vmatpush.bf16.msra.mxu0 %v1785
        %2153 = vmatpush.bf16.msra.mxu0 %v1784
        %2154 = vmatpush.bf16.msra.mxu0 %v1783
        %2155 = vmatpush.bf16.msra.mxu0 %v1782
        %2156 = vmatpush.bf16.msra.mxu0 %v1781
        %2157 = vmatpush.bf16.msra.mxu0 %v1780
        %2158 = vmatpush.bf16.msra.mxu0 %v1779
        %2159 = vmatmul.bf16.gmra.mxu0 %v673
        %v2160 = vpop.f32.mrf.mxu0
        %v2161 = vadd.f32 %v2148, %v2160
        %v2162 = vpop.f32.mrf.mxu0
        %2163 = vdwg.mxu0
        %2164 = vmatpush.bf16.msra.mxu0 %v1794
        %2165 = vmatpush.bf16.msra.mxu0 %v1793
        %2166 = vmatpush.bf16.msra.mxu0 %v1792
        %2167 = vmatpush.bf16.msra.mxu0 %v1791
        %2168 = vmatpush.bf16.msra.mxu0 %v1790
        %2169 = vmatpush.bf16.msra.mxu0 %v1789
        %2170 = vmatpush.bf16.msra.mxu0 %v1788
        %2171 = vmatpush.bf16.msra.mxu0 %v1787
        %2172 = vmatmul.bf16.gmra.mxu0 %v674
        %v2173 = vpop.f32.mrf.mxu0
        %v2174 = vadd.f32 %v2161, %v2173
        %v2175 = vpop.f32.mrf.mxu0
        %2176 = vdwg.mxu0
        %2177 = vmatpush.bf16.msra.mxu0 %v1802
        %2178 = vmatpush.bf16.msra.mxu0 %v1801
        %2179 = vmatpush.bf16.msra.mxu0 %v1800
        %2180 = vmatpush.bf16.msra.mxu0 %v1799
        %2181 = vmatpush.bf16.msra.mxu0 %v1798
        %2182 = vmatpush.bf16.msra.mxu0 %v1797
        %2183 = vmatpush.bf16.msra.mxu0 %v1796
        %2184 = vmatpush.bf16.msra.mxu0 %v1795
        %2185 = vmatmul.bf16.gmra.mxu0 %v675
        %v2186 = vpop.f32.mrf.mxu0
        %v2187 = vadd.f32 %v2174, %v2186
        %v2188 = vpop.f32.mrf.mxu0
        %2189 = vdwg.mxu0
        %2190 = vmatpush.bf16.msra.mxu0 %v1810
        %2191 = vmatpush.bf16.msra.mxu0 %v1809
        %2192 = vmatpush.bf16.msra.mxu0 %v1808
        %2193 = vmatpush.bf16.msra.mxu0 %v1807
        %2194 = vmatpush.bf16.msra.mxu0 %v1806
        %2195 = vmatpush.bf16.msra.mxu0 %v1805
        %2196 = vmatpush.bf16.msra.mxu0 %v1804
        %2197 = vmatpush.bf16.msra.mxu0 %v1803
        %2198 = vmatmul.bf16.gmra.mxu0 %v676
        %v2199 = vpop.f32.mrf.mxu0
        %v2200 = vadd.f32 %v2187, %v2199
        %v2201 = vpop.f32.mrf.mxu0
        %2202 = vdwg.mxu0
        %2203 = vmatpush.bf16.msra.mxu0 %v1818
        %2204 = vmatpush.bf16.msra.mxu0 %v1817
        %2205 = vmatpush.bf16.msra.mxu0 %v1816
        %2206 = vmatpush.bf16.msra.mxu0 %v1815
        %2207 = vmatpush.bf16.msra.mxu0 %v1814
        %2208 = vmatpush.bf16.msra.mxu0 %v1813
        %2209 = vmatpush.bf16.msra.mxu0 %v1812
        %2210 = vmatpush.bf16.msra.mxu0 %v1811
        %2211 = vmatmul.bf16.gmra.mxu0 %v677
        %v2212 = vpop.f32.mrf.mxu0
        %v2213 = vadd.f32 %v2200, %v2212
        %v2214 = vpop.f32.mrf.mxu0
        %2215 = vdwg.mxu0
        %2216 = vmatpush.bf16.msra.mxu0 %v1826
        %2217 = vmatpush.bf16.msra.mxu0 %v1825
        %2218 = vmatpush.bf16.msra.mxu0 %v1824
        %2219 = vmatpush.bf16.msra.mxu0 %v1823
        %2220 = vmatpush.bf16.msra.mxu0 %v1822
        %2221 = vmatpush.bf16.msra.mxu0 %v1821
        %2222 = vmatpush.bf16.msra.mxu0 %v1820
        %2223 = vmatpush.bf16.msra.mxu0 %v1819
        %2224 = vmatmul.bf16.gmra.mxu0 %v678
        %v2225 = vpop.f32.mrf.mxu0
        %v2226 = vadd.f32 %v2213, %v2225
        %v2227 = vpop.f32.mrf.mxu0
        %2228 = vdwg.mxu0
        %2229 = vmatpush.bf16.msra.mxu0 %v1834
        %2230 = vmatpush.bf16.msra.mxu0 %v1833
        %2231 = vmatpush.bf16.msra.mxu0 %v1832
        %2232 = vmatpush.bf16.msra.mxu0 %v1831
        %2233 = vmatpush.bf16.msra.mxu0 %v1830
        %2234 = vmatpush.bf16.msra.mxu0 %v1829
        %2235 = vmatpush.bf16.msra.mxu0 %v1828
        %2236 = vmatpush.bf16.msra.mxu0 %v1827
        %2237 = vmatmul.bf16.gmra.mxu0 %v679
        %v2238 = vpop.f32.mrf.mxu0
        %v2239 = vadd.f32 %v2226, %v2238
        %v2240 = vpop.f32.mrf.mxu0
        %2241 = vdwg.mxu0
        %2242 = vmatpush.bf16.msra.mxu0 %v1842
        %2243 = vmatpush.bf16.msra.mxu0 %v1841
        %2244 = vmatpush.bf16.msra.mxu0 %v1840
        %2245 = vmatpush.bf16.msra.mxu0 %v1839
        %2246 = vmatpush.bf16.msra.mxu0 %v1838
        %2247 = vmatpush.bf16.msra.mxu0 %v1837
        %2248 = vmatpush.bf16.msra.mxu0 %v1836
        %2249 = vmatpush.bf16.msra.mxu0 %v1835
        %2250 = vmatmul.bf16.gmra.mxu0 %v680
        %v2251 = vpop.f32.mrf.mxu0
        %v2252 = vadd.f32 %v2239, %v2251
        %v2253 = vpop.f32.mrf.mxu0
        %2254 = vdwg.mxu0
        %2255 = vmatpush.bf16.msra.mxu0 %v1850
        %2256 = vmatpush.bf16.msra.mxu0 %v1849
        %2257 = vmatpush.bf16.msra.mxu0 %v1848
        %2258 = vmatpush.bf16.msra.mxu0 %v1847
        %2259 = vmatpush.bf16.msra.mxu0 %v1846
        %2260 = vmatpush.bf16.msra.mxu0 %v1845
        %2261 = vmatpush.bf16.msra.mxu0 %v1844
        %2262 = vmatpush.bf16.msra.mxu0 %v1843
        %2263 = vmatmul.bf16.gmra.mxu0 %v681
        %v2264 = vpop.f32.mrf.mxu0
        %v2265 = vadd.f32 %v2252, %v2264
        %v2266 = vpop.f32.mrf.mxu0
        %2267 = vdwg.mxu0
        %2268 = vmatpush.bf16.msra.mxu0 %v1858
        %2269 = vmatpush.bf16.msra.mxu0 %v1857
        %2270 = vmatpush.bf16.msra.mxu0 %v1856
        %2271 = vmatpush.bf16.msra.mxu0 %v1855
        %2272 = vmatpush.bf16.msra.mxu0 %v1854
        %2273 = vmatpush.bf16.msra.mxu0 %v1853
        %2274 = vmatpush.bf16.msra.mxu0 %v1852
        %2275 = vmatpush.bf16.msra.mxu0 %v1851
        %2276 = vmatmul.bf16.gmra.mxu0 %v682
        %v2277 = vpop.f32.mrf.mxu0
        %v2278 = vadd.f32 %v2265, %v2277
        %v2279 = vpop.f32.mrf.mxu0
        %2280 = vdwg.mxu0
        %2281 = vmatpush.bf16.msra.mxu0 %v1866
        %2282 = vmatpush.bf16.msra.mxu0 %v1865
        %2283 = vmatpush.bf16.msra.mxu0 %v1864
        %2284 = vmatpush.bf16.msra.mxu0 %v1863
        %2285 = vmatpush.bf16.msra.mxu0 %v1862
        %2286 = vmatpush.bf16.msra.mxu0 %v1861
        %2287 = vmatpush.bf16.msra.mxu0 %v1860
        %2288 = vmatpush.bf16.msra.mxu0 %v1859
        %2289 = vmatmul.bf16.gmra.mxu0 %v683
        %v2290 = vpop.f32.mrf.mxu0
        %v2291 = vadd.f32 %v2278, %v2290
        %v2292 = vpop.f32.mrf.mxu0
        %2293 = vdwg.mxu0
        %2294 = vmatpush.bf16.msra.mxu0 %v1874
        %2295 = vmatpush.bf16.msra.mxu0 %v1873
        %2296 = vmatpush.bf16.msra.mxu0 %v1872
        %2297 = vmatpush.bf16.msra.mxu0 %v1871
        %2298 = vmatpush.bf16.msra.mxu0 %v1870
        %2299 = vmatpush.bf16.msra.mxu0 %v1869
        %2300 = vmatpush.bf16.msra.mxu0 %v1868
        %2301 = vmatpush.bf16.msra.mxu0 %v1867
        %2302 = vmatmul.bf16.gmra.mxu0 %v684
        %v2303 = vpop.f32.mrf.mxu0
        %v2304 = vadd.f32 %v2291, %v2303
        %v2305 = vpop.f32.mrf.mxu0
        %2306 = vdwg.mxu0
        %2307 = vmatpush.bf16.msra.mxu0 %v1882
        %2308 = vmatpush.bf16.msra.mxu0 %v1881
        %2309 = vmatpush.bf16.msra.mxu0 %v1880
        %2310 = vmatpush.bf16.msra.mxu0 %v1879
        %2311 = vmatpush.bf16.msra.mxu0 %v1878
        %2312 = vmatpush.bf16.msra.mxu0 %v1877
        %2313 = vmatpush.bf16.msra.mxu0 %v1876
        %2314 = vmatpush.bf16.msra.mxu0 %v1875
        %2315 = vmatmul.bf16.gmra.mxu0 %v685
        %v2316 = vpop.f32.mrf.mxu0
        %v2317 = vadd.f32 %v2304, %v2316
        %v2318 = vpop.f32.mrf.mxu0
        %2319 = vdwg.mxu0
        %2320 = vmatpush.bf16.msra.mxu0 %v1890
        %2321 = vmatpush.bf16.msra.mxu0 %v1889
        %2322 = vmatpush.bf16.msra.mxu0 %v1888
        %2323 = vmatpush.bf16.msra.mxu0 %v1887
        %2324 = vmatpush.bf16.msra.mxu0 %v1886
        %2325 = vmatpush.bf16.msra.mxu0 %v1885
        %2326 = vmatpush.bf16.msra.mxu0 %v1884
        %2327 = vmatpush.bf16.msra.mxu0 %v1883
        %2328 = vmatmul.bf16.gmra.mxu0 %v686
        %v2329 = vpop.f32.mrf.mxu0
        %v2330 = vadd.f32 %v2317, %v2329
        %v2331 = vpop.f32.mrf.mxu0
        %2332 = vdwg.mxu0
        %2333 = vmatpush.bf16.msra.mxu0 %v1898
        %2334 = vmatpush.bf16.msra.mxu0 %v1897
        %2335 = vmatpush.bf16.msra.mxu0 %v1896
        %2336 = vmatpush.bf16.msra.mxu0 %v1895
        %2337 = vmatpush.bf16.msra.mxu0 %v1894
        %2338 = vmatpush.bf16.msra.mxu0 %v1893
        %2339 = vmatpush.bf16.msra.mxu0 %v1892
        %2340 = vmatpush.bf16.msra.mxu0 %v1891
        %2341 = vmatmul.bf16.gmra.mxu0 %v687
        %v2342 = vpop.f32.mrf.mxu0
        %v2343 = vadd.f32 %v2330, %v2342
        %v2344 = vpop.f32.mrf.mxu0
        %2345 = vdwg.mxu0
        %2346 = vmatpush.bf16.msra.mxu0 %v1906
        %2347 = vmatpush.bf16.msra.mxu0 %v1905
        %2348 = vmatpush.bf16.msra.mxu0 %v1904
        %2349 = vmatpush.bf16.msra.mxu0 %v1903
        %2350 = vmatpush.bf16.msra.mxu0 %v1902
        %2351 = vmatpush.bf16.msra.mxu0 %v1901
        %2352 = vmatpush.bf16.msra.mxu0 %v1900
        %2353 = vmatpush.bf16.msra.mxu0 %v1899
        %2354 = vmatmul.bf16.gmra.mxu0 %v688
        %v2355 = vpop.f32.mrf.mxu0
        %v2356 = vadd.f32 %v2343, %v2355
        %v2357 = vpop.f32.mrf.mxu0
        %2358 = vdwg.mxu0
        %2359 = vmatpush.bf16.msra.mxu0 %v1914
        %2360 = vmatpush.bf16.msra.mxu0 %v1913
        %2361 = vmatpush.bf16.msra.mxu0 %v1912
        %2362 = vmatpush.bf16.msra.mxu0 %v1911
        %2363 = vmatpush.bf16.msra.mxu0 %v1910
        %2364 = vmatpush.bf16.msra.mxu0 %v1909
        %2365 = vmatpush.bf16.msra.mxu0 %v1908
        %2366 = vmatpush.bf16.msra.mxu0 %v1907
        %2367 = vmatmul.bf16.gmra.mxu0 %v689
        %v2368 = vpop.f32.mrf.mxu0
        %v2369 = vadd.f32 %v2356, %v2368
        %v2370 = vpop.f32.mrf.mxu0
        %2371 = vdwg.mxu0
        %2372 = vmatpush.bf16.msra.mxu0 %v1922
        %2373 = vmatpush.bf16.msra.mxu0 %v1921
        %2374 = vmatpush.bf16.msra.mxu0 %v1920
        %2375 = vmatpush.bf16.msra.mxu0 %v1919
        %2376 = vmatpush.bf16.msra.mxu0 %v1918
        %2377 = vmatpush.bf16.msra.mxu0 %v1917
        %2378 = vmatpush.bf16.msra.mxu0 %v1916
        %2379 = vmatpush.bf16.msra.mxu0 %v1915
        %2380 = vmatmul.bf16.gmra.mxu0 %v690
        %v2381 = vpop.f32.mrf.mxu0
        %v2382 = vadd.f32 %v2369, %v2381
        %v2383 = vpop.f32.mrf.mxu0
        %2384 = vdwg.mxu0
        %v2385 = vadd.f32 %v646, %v2382
        %2386 = vst [vmem:[#allocation2] sm:$0xff] %v2385
        %p2387 = scmp.eq.s32.totalorder %s33, 5
        // Predicated region
        $region125: #{autoencoder_forward.2} parent=71 // pred_check
          %p2388 = pneg %p2387
        $region126: #{autoencoder_forward.2} parent=71 // pred_check_branch
          %2390 = sbr.rel (%p2388) target = $region128
        $region127: #{autoencoder_forward.2} parent=71 // pred_region
          %v2391 = vld [vmem:[#allocation2] sm:$0xff]
          %v2392 = vld [vmem:[#allocation5] sm:$0x1]
          %v2394 = vperm.slane %v2392, 0
          %v2396 = vadd.f32 %v2391, %v2394
          %v2397 = vmax.f32 %v2396, 0.0
          %v2398 = vld [vmem:[#allocation7] sm:$0xff]
          %v2399 = vld [vmem:[#allocation7 + $0x8] sm:$0xff]
          %v2400 = vld [vmem:[#allocation7 + $0x10] sm:$0xff]
          %v2401 = vld [vmem:[#allocation7 + $0x18] sm:$0xff]
          %v2402 = vld [vmem:[#allocation7 + $0x20] sm:$0xff]
          %v2403 = vld [vmem:[#allocation7 + $0x28] sm:$0xff]
          %v2404 = vld [vmem:[#allocation7 + $0x30] sm:$0xff]
          %v2405 = vld [vmem:[#allocation7 + $0x38] sm:$0xff]
          %v2406 = vld [vmem:[#allocation7 + $0x40] sm:$0xff]
          %v2407 = vld [vmem:[#allocation7 + $0x48] sm:$0xff]
          %v2408 = vld [vmem:[#allocation7 + $0x50] sm:$0xff]
          %v2409 = vld [vmem:[#allocation7 + $0x58] sm:$0xff]
          %v2410 = vld [vmem:[#allocation7 + $0x60] sm:$0xff]
          %v2411 = vld [vmem:[#allocation7 + $0x68] sm:$0xff]
          %v2412 = vld [vmem:[#allocation7 + $0x70] sm:$0xff]
          %v2413 = vld [vmem:[#allocation7 + $0x78] sm:$0xff]
          %v2414 = vld [vmem:[#allocation8] sm:$0x1]
          %v2416 = vperm.slane %v2414, 0
          %2418 = vmatpush.msra.mxu0 %v2413
          %2419 = vmatpush.msra.mxu0 %v2412
          %2420 = vmatpush.msra.mxu0 %v2411
          %2421 = vmatpush.msra.mxu0 %v2410
          %2422 = vmatpush.msra.mxu0 %v2409
          %2423 = vmatpush.msra.mxu0 %v2408
          %2424 = vmatpush.msra.mxu0 %v2407
          %2425 = vmatpush.msra.mxu0 %v2406
          %2426 = vmatpush.msra.mxu0 %v2405
          %2427 = vmatpush.msra.mxu0 %v2404
          %2428 = vmatpush.msra.mxu0 %v2403
          %2429 = vmatpush.msra.mxu0 %v2402
          %2430 = vmatpush.msra.mxu0 %v2401
          %2431 = vmatpush.msra.mxu0 %v2400
          %2432 = vmatpush.msra.mxu0 %v2399
          %2433 = vmatpush.msra.mxu0 %v2398
          %2434 = vmatmul.f32.gmra.mxu0 %v2397
          %v2435 = vpop.f32.mrf.mxu0
          %v2436 = vadd.f32 %v2416, %v2435
          %2437 = vdwg.mxu0
          %v2438 = vmax.f32 %v2436, 0.0
          %v2439 = vld [vmem:[#allocation10] sm:$0xff]
          %v2440 = vld [vmem:[#allocation10 + $0x8] sm:$0xff]
          %v2441 = vld [vmem:[#allocation10 + $0x10] sm:$0xff]
          %v2442 = vld [vmem:[#allocation10 + $0x18] sm:$0xff]
          %v2443 = vld [vmem:[#allocation10 + $0x20] sm:$0xff]
          %v2444 = vld [vmem:[#allocation10 + $0x28] sm:$0xff]
          %v2445 = vld [vmem:[#allocation10 + $0x30] sm:$0xff]
          %v2446 = vld [vmem:[#allocation10 + $0x38] sm:$0xff]
          %v2447 = vld [vmem:[#allocation10 + $0x40] sm:$0xff]
          %v2448 = vld [vmem:[#allocation10 + $0x48] sm:$0xff]
          %v2449 = vld [vmem:[#allocation10 + $0x50] sm:$0xff]
          %v2450 = vld [vmem:[#allocation10 + $0x58] sm:$0xff]
          %v2451 = vld [vmem:[#allocation10 + $0x60] sm:$0xff]
          %v2452 = vld [vmem:[#allocation10 + $0x68] sm:$0xff]
          %v2453 = vld [vmem:[#allocation10 + $0x70] sm:$0xff]
          %v2454 = vld [vmem:[#allocation10 + $0x78] sm:$0xff]
          %v2455 = vld [vmem:[#allocation11] sm:$0x1]
          %v2457 = vperm.slane %v2455, 0
          %2459 = vmatpush.msra.mxu0 %v2454
          %2460 = vmatpush.msra.mxu0 %v2453
          %2461 = vmatpush.msra.mxu0 %v2452
          %2462 = vmatpush.msra.mxu0 %v2451
          %2463 = vmatpush.msra.mxu0 %v2450
          %2464 = vmatpush.msra.mxu0 %v2449
          %2465 = vmatpush.msra.mxu0 %v2448
          %2466 = vmatpush.msra.mxu0 %v2447
          %2467 = vmatpush.msra.mxu0 %v2446
          %2468 = vmatpush.msra.mxu0 %v2445
          %2469 = vmatpush.msra.mxu0 %v2444
          %2470 = vmatpush.msra.mxu0 %v2443
          %2471 = vmatpush.msra.mxu0 %v2442
          %2472 = vmatpush.msra.mxu0 %v2441
          %2473 = vmatpush.msra.mxu0 %v2440
          %2474 = vmatpush.msra.mxu0 %v2439
          %2475 = vmatmul.f32.gmra.mxu0 %v2438
          %v2476 = vpop.f32.mrf.mxu0
          %v2477 = vadd.f32 %v2457, %v2476
          %2478 = vdwg.mxu0
          %v2479 = vmax.f32 %v2477, 0.0
          %v2480 = vld [vmem:[#allocation13] sm:$0xff]
          %v2481 = vld [vmem:[#allocation13 + $0x8] sm:$0xff]
          %v2482 = vld [vmem:[#allocation13 + $0x10] sm:$0xff]
          %v2483 = vld [vmem:[#allocation13 + $0x18] sm:$0xff]
          %v2484 = vld [vmem:[#allocation13 + $0x20] sm:$0xff]
          %v2485 = vld [vmem:[#allocation13 + $0x28] sm:$0xff]
          %v2486 = vld [vmem:[#allocation13 + $0x30] sm:$0xff]
          %v2487 = vld [vmem:[#allocation13 + $0x38] sm:$0xff]
          %v2488 = vld [vmem:[#allocation13 + $0x40] sm:$0xff]
          %v2489 = vld [vmem:[#allocation13 + $0x48] sm:$0xff]
          %v2490 = vld [vmem:[#allocation13 + $0x50] sm:$0xff]
          %v2491 = vld [vmem:[#allocation13 + $0x58] sm:$0xff]
          %v2492 = vld [vmem:[#allocation13 + $0x60] sm:$0xff]
          %v2493 = vld [vmem:[#allocation13 + $0x68] sm:$0xff]
          %v2494 = vld [vmem:[#allocation13 + $0x70] sm:$0xff]
          %v2495 = vld [vmem:[#allocation13 + $0x78] sm:$0xff]
          %v2496 = vld [vmem:[#allocation14] sm:$0x1]
          %v2498 = vperm.slane %v2496, 0
          %2500 = vmatpush.msra.mxu0 %v2495
          %2501 = vmatpush.msra.mxu0 %v2494
          %2502 = vmatpush.msra.mxu0 %v2493
          %2503 = vmatpush.msra.mxu0 %v2492
          %2504 = vmatpush.msra.mxu0 %v2491
          %2505 = vmatpush.msra.mxu0 %v2490
          %2506 = vmatpush.msra.mxu0 %v2489
          %2507 = vmatpush.msra.mxu0 %v2488
          %2508 = vmatpush.msra.mxu0 %v2487
          %2509 = vmatpush.msra.mxu0 %v2486
          %2510 = vmatpush.msra.mxu0 %v2485
          %2511 = vmatpush.msra.mxu0 %v2484
          %2512 = vmatpush.msra.mxu0 %v2483
          %2513 = vmatpush.msra.mxu0 %v2482
          %2514 = vmatpush.msra.mxu0 %v2481
          %2515 = vmatpush.msra.mxu0 %v2480
          %2516 = vmatmul.f32.gmra.mxu0 %v2479
          %v2517 = vpop.f32.mrf.mxu0
          %v2518 = vadd.f32 %v2498, %v2517
          %2519 = vdwg.mxu0
          %v2520 = vmax.f32 %v2518, 0.0
          %v2521 = vld [vmem:[#allocation16] sm:$0xff]
          %v2522 = vld [vmem:[#allocation16 + $0x8] sm:$0xff]
          %v2523 = vld [vmem:[#allocation16 + $0x10] sm:$0xff]
          %v2524 = vld [vmem:[#allocation16 + $0x18] sm:$0xff]
          %v2525 = vld [vmem:[#allocation16 + $0x20] sm:$0xff]
          %v2526 = vld [vmem:[#allocation16 + $0x28] sm:$0xff]
          %v2527 = vld [vmem:[#allocation16 + $0x30] sm:$0xff]
          %v2528 = vld [vmem:[#allocation16 + $0x38] sm:$0xff]
          %v2529 = vld [vmem:[#allocation16 + $0x40] sm:$0xff]
          %v2530 = vld [vmem:[#allocation16 + $0x48] sm:$0xff]
          %v2531 = vld [vmem:[#allocation16 + $0x50] sm:$0xff]
          %v2532 = vld [vmem:[#allocation16 + $0x58] sm:$0xff]
          %v2533 = vld [vmem:[#allocation16 + $0x60] sm:$0xff]
          %v2534 = vld [vmem:[#allocation16 + $0x68] sm:$0xff]
          %v2535 = vld [vmem:[#allocation16 + $0x70] sm:$0xff]
          %v2536 = vld [vmem:[#allocation16 + $0x78] sm:$0xff]
          %v2537 = vld [vmem:[#allocation17] sm:$0x1]
          %v2539 = vperm.slane %v2537, 0
          %2541 = vmatpush.msra.mxu0 %v2536
          %2542 = vmatpush.msra.mxu0 %v2535
          %2543 = vmatpush.msra.mxu0 %v2534
          %2544 = vmatpush.msra.mxu0 %v2533
          %2545 = vmatpush.msra.mxu0 %v2532
          %2546 = vmatpush.msra.mxu0 %v2531
          %2547 = vmatpush.msra.mxu0 %v2530
          %2548 = vmatpush.msra.mxu0 %v2529
          %2549 = vmatpush.msra.mxu0 %v2528
          %2550 = vmatpush.msra.mxu0 %v2527
          %2551 = vmatpush.msra.mxu0 %v2526
          %2552 = vmatpush.msra.mxu0 %v2525
          %2553 = vmatpush.msra.mxu0 %v2524
          %2554 = vmatpush.msra.mxu0 %v2523
          %2555 = vmatpush.msra.mxu0 %v2522
          %2556 = vmatpush.msra.mxu0 %v2521
          %2557 = vmatmul.f32.gmra.mxu0 %v2520
          %v2558 = vpop.f32.mrf.mxu0
          %v2559 = vadd.f32 %v2539, %v2558
          %2560 = vdwg.mxu0
          %v2561 = vmax.f32 %v2559, 0.0
          %v2562 = vld [vmem:[#allocation19] sm:$0xff]
          %v2563 = vld [vmem:[#allocation19 + $0x8] sm:$0xff]
          %v2564 = vld [vmem:[#allocation19 + $0x10] sm:$0xff]
          %v2565 = vld [vmem:[#allocation19 + $0x18] sm:$0xff]
          %v2566 = vld [vmem:[#allocation19 + $0x20] sm:$0xff]
          %v2567 = vld [vmem:[#allocation19 + $0x28] sm:$0xff]
          %v2568 = vld [vmem:[#allocation19 + $0x30] sm:$0xff]
          %v2569 = vld [vmem:[#allocation19 + $0x38] sm:$0xff]
          %v2570 = vld [vmem:[#allocation19 + $0x40] sm:$0xff]
          %v2571 = vld [vmem:[#allocation19 + $0x48] sm:$0xff]
          %v2572 = vld [vmem:[#allocation19 + $0x50] sm:$0xff]
          %v2573 = vld [vmem:[#allocation19 + $0x58] sm:$0xff]
          %v2574 = vld [vmem:[#allocation19 + $0x60] sm:$0xff]
          %v2575 = vld [vmem:[#allocation19 + $0x68] sm:$0xff]
          %v2576 = vld [vmem:[#allocation19 + $0x70] sm:$0xff]
          %v2577 = vld [vmem:[#allocation19 + $0x78] sm:$0xff]
          %v2578 = vld [vmem:[#allocation20] sm:$0x1]
          %v2580 = vperm.slane %v2578, 0
          %2582 = vmatpush.msra.mxu0 %v2577
          %2583 = vmatpush.msra.mxu0 %v2576
          %2584 = vmatpush.msra.mxu0 %v2575
          %2585 = vmatpush.msra.mxu0 %v2574
          %2586 = vmatpush.msra.mxu0 %v2573
          %2587 = vmatpush.msra.mxu0 %v2572
          %2588 = vmatpush.msra.mxu0 %v2571
          %2589 = vmatpush.msra.mxu0 %v2570
          %2590 = vmatpush.msra.mxu0 %v2569
          %2591 = vmatpush.msra.mxu0 %v2568
          %2592 = vmatpush.msra.mxu0 %v2567
          %2593 = vmatpush.msra.mxu0 %v2566
          %2594 = vmatpush.msra.mxu0 %v2565
          %2595 = vmatpush.msra.mxu0 %v2564
          %2596 = vmatpush.msra.mxu0 %v2563
          %2597 = vmatpush.msra.mxu0 %v2562
          %2598 = vmatmul.f32.gmra.mxu0 %v2561
          %v2599 = vpop.f32.mrf.mxu0
          %v2600 = vadd.f32 %v2580, %v2599
          %2601 = vdwg.mxu0
          %v2602 = vmax.f32 %v2600, 0.0
          %2603 = vst [vmem:[%s13] sm:$0xff] %v2602
        $region128: #{autoencoder_forward.2} parent=71 // pred_fallthru
          _
        // Predicated region
        $region129: #{autoencoder_forward.2} parent=71 // pred_check
          %p2604 = pneg %p329
        $region130: #{autoencoder_forward.2} parent=71 // pred_check_branch
          %2606 = sbr.rel (%p2604) target = $region132
        $region131: #{autoencoder_forward.2} parent=71 // pred_region
          _
        $region132: #{autoencoder_forward.2} parent=71 // pred_fallthru
          _
        // Predicated region
        $region133: #{autoencoder_forward.2} parent=71 // pred_check
          %p2607 = pneg %p329
        $region134: #{autoencoder_forward.2} parent=71 // pred_check_branch
          %2609 = sbr.rel (%p2607) target = $region136
        $region135: #{autoencoder_forward.2} parent=71 // pred_region
          _
        $region136: #{autoencoder_forward.2} parent=71 // pred_fallthru
          _
      $region72: #{autoencoder_forward.2} parent=5 // pred_fallthru
        _
      %p2610 = scmp.le.s32.totalorder 2, %s28
      // Predicated region
      $region137: #{autoencoder_forward.2} parent=5 // pred_check
        %p2611 = pneg %p2610
      $region138: #{autoencoder_forward.2} parent=5 // pred_check_branch
        %2613 = sbr.rel (%p2611) target = $region140
      $region139: #{autoencoder_forward.2} parent=5 // pred_region
        %s2614 = ssub.s32 %s28, 2
      $region140: #{autoencoder_forward.2} parent=5 // pred_fallthru
        _
    $region6: #{autoencoder_forward.2} parent=1 // loop_footer
      %s32 = sadd.s32 1, %s28
    $region7: #{autoencoder_forward.2} parent=1 // loop_footer_branch
      %27 = sbr.rel target = $region3
    $region8: #{autoencoder_forward.2} parent=1 // loop_exit
      _
    %2615 = vsyncpa [#allocation4], 1
    %s2616 = scalar_lea.sflag [#allocation4], 1
    %2617 = vsyncpa %s2616, 1
    %2618 = vsyncpa [#allocation6], 1
    %2619 = vsyncpa [#allocation9], 1
    %2620 = vsyncpa [#allocation12], 1
    %2621 = vsyncpa [#allocation15], 1
    %2622 = vsyncpa [#allocation18], 1
    %2623 = vsyncpa [#allocation21], 1

// kernel: autoencoder_forward.3
$region0: #{autoencoder_forward.3}
  #allocation0 [shape = 'u32[]', space=smem, size = 0x4, offset = 0x4, fixed_abs, tag = 'smem constant byte address 0x4 - core index']
  #allocation1 [shape = 'u32[72,128]{1,0:T(1,128)}', space=vmem, size = 0x9000, scoped, tag = 'internal scratch']
  %s0 = inlined_call_operand.vmem [shape: f32[8,128], index: 0, kind: input, shape index: {}]
  %s1 = inlined_call_operand.hbm [shape: bf16[128,16896], index: 1, kind: input, shape index: {}]
  %s2 = inlined_call_operand.hbm [shape: f32[1,16896], index: 2, kind: input, shape index: {}]
  %s3 = inlined_call_operand.vmem [shape: f32[8,16896], index: 3, kind: output, shape index: {}]
  %s4 = sld [smem:[#allocation0]]
  $region53: #{autoencoder_forward.3} parent=0
    _
  %s6 = ssub.s32 1, %s4
  %s7 = scalar_select 0, %s6, %s4
  $region1: #{autoencoder_forward.3} parent=0
    #allocation2 [shape = 'u8[1441792]{0}', space=vmem, size = 0x160000, scoped, tag = 'input window, operand 1']
    #allocation3 [shape = 's32[2]{0}', space=sflag, size = 0x8, scoped, tag = 'scoped memory for autoencoder_forward.3']
    #allocation4 [shape = 'u8[22528]{0}', space=vmem, size = 0x5800, scoped, tag = 'input window, operand 2']
    #allocation5 [shape = 's32[2]{0}', space=sflag, size = 0x8, scoped, tag = 'scoped memory for autoencoder_forward.3']
    %8 = vsyncpa [#allocation3], 0
    %s9 = scalar_lea.sflag [#allocation3], 1
    %10 = vsyncpa %s9, 0
    %11 = vsyncpa [#allocation5], 0
    %s12 = scalar_lea.sflag [#allocation5], 1
    %13 = vsyncpa %s12, 0
    loop: start=0, step=1, limit=8
    $region2: #{autoencoder_forward.3} parent=1 // loop_pre_header
      _
    $region3: #{autoencoder_forward.3} parent=1 // loop_header
      %s15 = sphi 0, %s19
      %p16 = scmp.ge.s32.totalorder %s15, 8
      %s23 = sphi 0, %s23
      %s25 = sphi 0, %s23
      %s26 = sphi 0, %s25
      %s40 = sphi 0, %s26
      %s46 = sphi 0, %s48
      %s49 = sphi 0, %s46
      %s50 = sphi 0, %s49
      %s66 = sphi 0, %s50
      %s72 = sphi 0, %s74
      %s75 = sphi 0, %s72
      %s76 = sphi 0, %s75
      %s92 = sphi 0, %s76
      %s98 = sphi 0, %s100
      %s101 = sphi 0, %s98
      %s102 = sphi 0, %s101
      %s118 = sphi 0, %s102
    $region4: #{autoencoder_forward.3} parent=1 // loop_header_branch
      %18 = sbr.rel (%p16) target = $region8
    $region5: #{autoencoder_forward.3} parent=1 // loop_body
      %s20 = ssub.s32 %s15, 1
      %s21 = ssub.s32 %s15, 2
      %s22 = sadd.s32 %s15, 1
      %s24 = sadd.s32 %s23, 1
      %p27 = scmp.eq.s32.totalorder %s15, 5
      %p28 = scmp.ne.s32.totalorder %s23, %s25
      %p29 = scmp.eq.s32.totalorder %s15, 0
      %p30 = por %p28, %p29
      %p31 = scmp.ne.s32.totalorder %s23, %s25
      %p32 = scmp.eq.s32.totalorder %s20, 5
      %p33 = por %p31, %p32
      %p34 = scmp.ne.s32.totalorder %s25, %s26
      %p35 = scmp.eq.s32.totalorder %s20, 0
      %p36 = por %p34, %p35
      %p37 = scmp.ne.s32.totalorder %s25, %s26
      %p38 = scmp.eq.s32.totalorder %s21, 5
      %p39 = por %p37, %p38
      %p41 = scmp.ne.s32.totalorder %s26, %s40
      %p42 = scmp.eq.s32.totalorder %s21, 0
      %p43 = por %p41, %p42
      %s44 = ssub.s32 %s15, %s22
      %p45 = scmp.eq.s32.totalorder %s44, 0
      %s47 = sadd.s32 %s46, 1
      %s48 = scalar_select %p45, %s46, %s47
      %p51 = pneg %p45
      %p52 = scmp.eq.s32.totalorder %s15, 5
      %p53 = por %p51, %p52
      %p54 = scmp.ne.s32.totalorder %s46, %s49
      %p55 = scmp.eq.s32.totalorder %s15, 0
      %p56 = por %p54, %p55
      %p57 = scmp.ne.s32.totalorder %s46, %s49
      %p58 = scmp.eq.s32.totalorder %s20, 5
      %p59 = por %p57, %p58
      %p60 = scmp.ne.s32.totalorder %s49, %s50
      %p61 = scmp.eq.s32.totalorder %s20, 0
      %p62 = por %p60, %p61
      %p63 = scmp.ne.s32.totalorder %s49, %s50
      %p64 = scmp.eq.s32.totalorder %s21, 5
      %p65 = por %p63, %p64
      %p67 = scmp.ne.s32.totalorder %s50, %s66
      %p68 = scmp.eq.s32.totalorder %s21, 0
      %p69 = por %p67, %p68
      %s70 = ssub.s32 %s15, %s22
      %p71 = scmp.eq.s32.totalorder %s70, 0
      %s73 = sadd.s32 %s72, 1
      %s74 = scalar_select %p71, %s72, %s73
      %p77 = pneg %p71
      %p78 = scmp.eq.s32.totalorder %s15, 5
      %p79 = por %p77, %p78
      %p80 = scmp.ne.s32.totalorder %s72, %s75
      %p81 = scmp.eq.s32.totalorder %s15, 0
      %p82 = por %p80, %p81
      %p83 = scmp.ne.s32.totalorder %s72, %s75
      %p84 = scmp.eq.s32.totalorder %s20, 5
      %p85 = por %p83, %p84
      %p86 = scmp.ne.s32.totalorder %s75, %s76
      %p87 = scmp.eq.s32.totalorder %s20, 0
      %p88 = por %p86, %p87
      %p89 = scmp.ne.s32.totalorder %s75, %s76
      %p90 = scmp.eq.s32.totalorder %s21, 5
      %p91 = por %p89, %p90
      %p93 = scmp.ne.s32.totalorder %s76, %s92
      %p94 = scmp.eq.s32.totalorder %s21, 0
      %p95 = por %p93, %p94
      %s96 = ssub.s32 %s15, %s22
      %p97 = scmp.eq.s32.totalorder %s96, 0
      %s99 = sadd.s32 %s98, 1
      %s100 = scalar_select %p97, %s98, %s99
      %p103 = pneg %p97
      %p104 = scmp.eq.s32.totalorder %s15, 5
      %p105 = por %p103, %p104
      %p106 = scmp.ne.s32.totalorder %s98, %s101
      %p107 = scmp.eq.s32.totalorder %s15, 0
      %p108 = por %p106, %p107
      %p109 = scmp.ne.s32.totalorder %s98, %s101
      %p110 = scmp.eq.s32.totalorder %s20, 5
      %p111 = por %p109, %p110
      %p112 = scmp.ne.s32.totalorder %s101, %s102
      %p113 = scmp.eq.s32.totalorder %s20, 0
      %p114 = por %p112, %p113
      %p115 = scmp.ne.s32.totalorder %s101, %s102
      %p116 = scmp.eq.s32.totalorder %s21, 5
      %p117 = por %p115, %p116
      %p119 = scmp.ne.s32.totalorder %s102, %s118
      %p120 = scmp.eq.s32.totalorder %s21, 0
      %p121 = por %p119, %p120
      %p122 = scmp.le.s32.totalorder 1, %s15
      %p123 = scmp.lt.s32.totalorder %s15, 7
      %p124 = pnand %p122, %p123
      %p125 = pneg %p124
      // Predicated region
      $region9: #{autoencoder_forward.3} parent=5 // pred_check
        _
      $region10: #{autoencoder_forward.3} parent=5 // pred_check_branch
        %127 = sbr.rel (%p124) target = $region12
      $region11: #{autoencoder_forward.3} parent=5 // pred_region
        %s128 = ssub.s32 %s15, 1
        // Predicated region
        $region13: #{autoencoder_forward.3} parent=11 // pred_check
          %p129 = pneg %p36
        $region14: #{autoencoder_forward.3} parent=11 // pred_check_branch
          %131 = sbr.rel (%p129) target = $region16
        $region15: #{autoencoder_forward.3} parent=11 // pred_region
          _
        $region16: #{autoencoder_forward.3} parent=11 // pred_fallthru
          _
      $region12: #{autoencoder_forward.3} parent=5 // pred_fallthru
        _
      %p132 = scmp.lt.s32.totalorder %s15, 6
      // Predicated region
      $region17: #{autoencoder_forward.3} parent=5 // pred_check
        %p133 = pneg %p132
      $region18: #{autoencoder_forward.3} parent=5 // pred_check_branch
        %135 = sbr.rel (%p133) target = $region20
      $region19: #{autoencoder_forward.3} parent=5 // pred_region
        // Predicated region
        $region21: #{autoencoder_forward.3} parent=19 // pred_check
          %p136 = pneg %p56
        $region22: #{autoencoder_forward.3} parent=19 // pred_check_branch
          %138 = sbr.rel (%p136) target = $region24
        $region23: #{autoencoder_forward.3} parent=19 // pred_region
          %s139 = sand.u32 %s46, 1
          %s140 = scalar_lea.sflag [#allocation3], %s139
          %s141 = sand.u32 %s46, 1
          %s142 = smul.addr %s141, 1408
          %s143 = scalar_lea.vmem [#allocation2], %s142
          %s144 = smul.u32 22, %s15
          %146 = vsyncadd %s140, 0
          %s147 = smul.addr %s144, 4
          %s148 = scalar_lea.hbm %s1, %s147
          %s149 = sshll.u32 %s148, 4
          %s150 = int_to_ptr.hbm [resolvable:$true] %s149
          %s151 = sshll.u32 %s143, 4
          %s152 = int_to_ptr.vmem [resolvable:$true] %s151
          %157 = dma.hbm_to_vmem [thread:$0]  %s150, 22528, %s152, %s140, 8448, 1408, 88
        $region24: #{autoencoder_forward.3} parent=19 // pred_fallthru
          _
        // Predicated region
        $region25: #{autoencoder_forward.3} parent=19 // pred_check
          %p158 = pneg %p82
        $region26: #{autoencoder_forward.3} parent=19 // pred_check_branch
          %160 = sbr.rel (%p158) target = $region28
        $region27: #{autoencoder_forward.3} parent=19 // pred_region
          %s161 = sand.u32 %s72, 1
          %s162 = scalar_lea.sflag [#allocation5], %s161
          %s163 = sand.u32 %s72, 1
          %s164 = smul.addr %s163, 22
          %s165 = scalar_lea.vmem [#allocation4], %s164
          %s166 = smul.u32 22, %s15
          %168 = vsyncadd %s162, 0
          %s169 = scalar_lea.hbm %s2, %s166
          %s171 = sshll.u32 %s169, 4
          %s172 = int_to_ptr.hbm [resolvable:$true] %s171
          %s173 = sshll.u32 %s165, 4
          %s174 = int_to_ptr.vmem [resolvable:$true] %s173
          %176 = dma.hbm_to_vmem [thread:$0]  %s172, 352, %s174, %s162
        $region28: #{autoencoder_forward.3} parent=19 // pred_fallthru
          _
      $region20: #{autoencoder_forward.3} parent=5 // pred_fallthru
        _
      %p177 = scmp.le.s32.totalorder 1, %s15
      %p178 = scmp.lt.s32.totalorder %s15, 7
      %p179 = pnand %p177, %p178
      %p180 = pneg %p179
      // Predicated region
      $region29: #{autoencoder_forward.3} parent=5 // pred_check
        _
      $region30: #{autoencoder_forward.3} parent=5 // pred_check_branch
        %182 = sbr.rel (%p179) target = $region32
      $region31: #{autoencoder_forward.3} parent=5 // pred_region
        %s183 = ssub.s32 %s15, 1
        %s184 = sand.u32 %s49, 1
        %s185 = scalar_lea.sflag [#allocation3], %s184
        %s186 = sand.u32 %s49, 1
        %s187 = smul.addr %s186, 1408
        %s188 = scalar_lea.vmem [#allocation2], %s187
        // Predicated region
        $region33: #{autoencoder_forward.3} parent=31 // pred_check
          %p189 = pneg %p62
        $region34: #{autoencoder_forward.3} parent=31 // pred_check_branch
          %191 = sbr.rel (%p189) target = $region36
        $region35: #{autoencoder_forward.3} parent=31 // pred_region
          %193 = dma.done %s185, 22528
        $region36: #{autoencoder_forward.3} parent=31 // pred_fallthru
          _
        %s194 = sand.u32 %s75, 1
        %s195 = scalar_lea.sflag [#allocation5], %s194
        %s196 = sand.u32 %s75, 1
        %s197 = smul.addr %s196, 22
        %s198 = scalar_lea.vmem [#allocation4], %s197
        // Predicated region
        $region37: #{autoencoder_forward.3} parent=31 // pred_check
          %p199 = pneg %p88
        $region38: #{autoencoder_forward.3} parent=31 // pred_check_branch
          %201 = sbr.rel (%p199) target = $region40
        $region39: #{autoencoder_forward.3} parent=31 // pred_region
          %203 = dma.done %s195, 352
        $region40: #{autoencoder_forward.3} parent=31 // pred_fallthru
          _
        %p204 = pneg %p36
        %p205 = pneg %p33
        %s206 = sand.u32 %s49, 1
        %s207 = scalar_lea.sflag [#allocation3], %s206
        %s208 = sand.u32 %s49, 1
        %s209 = smul.addr %s208, 1408
        %s210 = scalar_lea.vmem [#allocation2], %s209
        %p211 = pneg %p62
        %p212 = pneg %p59
        %s213 = sand.u32 %s75, 1
        %s214 = scalar_lea.sflag [#allocation5], %s213
        %s215 = sand.u32 %s75, 1
        %s216 = smul.addr %s215, 22
        %s217 = scalar_lea.vmem [#allocation4], %s216
        %p218 = pneg %p88
        %p219 = pneg %p85
        %p220 = pneg %p114
        %p221 = pneg %p111
        %s222 = smul.u32 22, %s20
        %p223 = scmp.lt.s32.totalorder %s222, 131
        %s224 = scalar_select %p223, %s222, 131
        %s225 = smul.addr %s224, 8
        %s226 = scalar_lea.vmem %s3, %s225
        %s227 = smul.u32 22, %s20
        %s228 = smul.u32 22, %s20
        %s229 = smul.u32 22, %s20
        %p230 = scmp.lt.s32.totalorder %s229, 131
        %s231 = scalar_select %p230, %s229, 131
        %s232 = smul.addr %s231, 8
        %s233 = scalar_lea.vmem %s3, %s232
        %s234 = smul.u32 22, %s20
        %v235 = vld [vmem:[%s0] sm:$0xff]
        %v236 = vpack.c.bf16 %v235, %v235
        %v237 = vld [vmem:[%s188] sm:$0xff]
        %v238 = vld [vmem:[%s188 + $0x8] sm:$0xff]
        %v239 = vld [vmem:[%s188 + $0x10] sm:$0xff]
        %v240 = vld [vmem:[%s188 + $0x18] sm:$0xff]
        %v241 = vld [vmem:[%s188 + $0x20] sm:$0xff]
        %v242 = vld [vmem:[%s188 + $0x28] sm:$0xff]
        %v243 = vld [vmem:[%s188 + $0x30] sm:$0xff]
        %v244 = vld [vmem:[%s188 + $0x38] sm:$0xff]
        %v245 = vld [vmem:[%s188 + $0x40] sm:$0xff]
        %v246 = vld [vmem:[%s188 + $0x48] sm:$0xff]
        %v247 = vld [vmem:[%s188 + $0x50] sm:$0xff]
        %v248 = vld [vmem:[%s188 + $0x58] sm:$0xff]
        %v249 = vld [vmem:[%s188 + $0x60] sm:$0xff]
        %v250 = vld [vmem:[%s188 + $0x68] sm:$0xff]
        %v251 = vld [vmem:[%s188 + $0x70] sm:$0xff]
        %v252 = vld [vmem:[%s188 + $0x78] sm:$0xff]
        %v253 = vld [vmem:[%s188 + $0x80] sm:$0xff]
        %v254 = vld [vmem:[%s188 + $0x88] sm:$0xff]
        %v255 = vld [vmem:[%s188 + $0x90] sm:$0xff]
        %v256 = vld [vmem:[%s188 + $0x98] sm:$0xff]
        %v257 = vld [vmem:[%s188 + $0xa0] sm:$0xff]
        %v258 = vld [vmem:[%s188 + $0xa8] sm:$0xff]
        %v259 = vld [vmem:[%s188 + $0xb0] sm:$0xff]
        %v260 = vld [vmem:[%s188 + $0xb8] sm:$0xff]
        %v261 = vld [vmem:[%s188 + $0xc0] sm:$0xff]
        %v262 = vld [vmem:[%s188 + $0xc8] sm:$0xff]
        %v263 = vld [vmem:[%s188 + $0xd0] sm:$0xff]
        %v264 = vld [vmem:[%s188 + $0xd8] sm:$0xff]
        %v265 = vld [vmem:[%s188 + $0xe0] sm:$0xff]
        %v266 = vld [vmem:[%s188 + $0xe8] sm:$0xff]
        %v267 = vld [vmem:[%s188 + $0xf0] sm:$0xff]
        %v268 = vld [vmem:[%s188 + $0xf8] sm:$0xff]
        %v269 = vld [vmem:[%s188 + $0x100] sm:$0xff]
        %v270 = vld [vmem:[%s188 + $0x108] sm:$0xff]
        %v271 = vld [vmem:[%s188 + $0x110] sm:$0xff]
        %v272 = vld [vmem:[%s188 + $0x118] sm:$0xff]
        %v273 = vld [vmem:[%s188 + $0x120] sm:$0xff]
        %v274 = vld [vmem:[%s188 + $0x128] sm:$0xff]
        %v275 = vld [vmem:[%s188 + $0x130] sm:$0xff]
        %v276 = vld [vmem:[%s188 + $0x138] sm:$0xff]
        %v277 = vld [vmem:[%s188 + $0x140] sm:$0xff]
        %v278 = vld [vmem:[%s188 + $0x148] sm:$0xff]
        %v279 = vld [vmem:[%s188 + $0x150] sm:$0xff]
        %v280 = vld [vmem:[%s188 + $0x158] sm:$0xff]
        %v281 = vld [vmem:[%s188 + $0x160] sm:$0xff]
        %v282 = vld [vmem:[%s188 + $0x168] sm:$0xff]
        %v283 = vld [vmem:[%s188 + $0x170] sm:$0xff]
        %v284 = vld [vmem:[%s188 + $0x178] sm:$0xff]
        %v285 = vld [vmem:[%s188 + $0x180] sm:$0xff]
        %v286 = vld [vmem:[%s188 + $0x188] sm:$0xff]
        %v287 = vld [vmem:[%s188 + $0x190] sm:$0xff]
        %v288 = vld [vmem:[%s188 + $0x198] sm:$0xff]
        %v289 = vld [vmem:[%s188 + $0x1a0] sm:$0xff]
        %v290 = vld [vmem:[%s188 + $0x1a8] sm:$0xff]
        %v291 = vld [vmem:[%s188 + $0x1b0] sm:$0xff]
        %v292 = vld [vmem:[%s188 + $0x1b8] sm:$0xff]
        %v293 = vld [vmem:[%s188 + $0x1c0] sm:$0xff]
        %v294 = vld [vmem:[%s188 + $0x1c8] sm:$0xff]
        %v295 = vld [vmem:[%s188 + $0x1d0] sm:$0xff]
        %v296 = vld [vmem:[%s188 + $0x1d8] sm:$0xff]
        %v297 = vld [vmem:[%s188 + $0x1e0] sm:$0xff]
        %v298 = vld [vmem:[%s188 + $0x1e8] sm:$0xff]
        %v299 = vld [vmem:[%s188 + $0x1f0] sm:$0xff]
        %v300 = vld [vmem:[%s188 + $0x1f8] sm:$0xff]
        %v301 = vld [vmem:[%s188 + $0x200] sm:$0xff]
        %v302 = vld [vmem:[%s188 + $0x208] sm:$0xff]
        %v303 = vld [vmem:[%s188 + $0x210] sm:$0xff]
        %v304 = vld [vmem:[%s188 + $0x218] sm:$0xff]
        %v305 = vld [vmem:[%s188 + $0x220] sm:$0xff]
        %v306 = vld [vmem:[%s188 + $0x228] sm:$0xff]
        %v307 = vld [vmem:[%s188 + $0x230] sm:$0xff]
        %v308 = vld [vmem:[%s188 + $0x238] sm:$0xff]
        %v309 = vld [vmem:[%s188 + $0x240] sm:$0xff]
        %v310 = vld [vmem:[%s188 + $0x248] sm:$0xff]
        %v311 = vld [vmem:[%s188 + $0x250] sm:$0xff]
        %v312 = vld [vmem:[%s188 + $0x258] sm:$0xff]
        %v313 = vld [vmem:[%s188 + $0x260] sm:$0xff]
        %v314 = vld [vmem:[%s188 + $0x268] sm:$0xff]
        %v315 = vld [vmem:[%s188 + $0x270] sm:$0xff]
        %v316 = vld [vmem:[%s188 + $0x278] sm:$0xff]
        %v317 = vld [vmem:[%s188 + $0x280] sm:$0xff]
        %v318 = vld [vmem:[%s188 + $0x288] sm:$0xff]
        %v319 = vld [vmem:[%s188 + $0x290] sm:$0xff]
        %v320 = vld [vmem:[%s188 + $0x298] sm:$0xff]
        %v321 = vld [vmem:[%s188 + $0x2a0] sm:$0xff]
        %v322 = vld [vmem:[%s188 + $0x2a8] sm:$0xff]
        %v323 = vld [vmem:[%s188 + $0x2b0] sm:$0xff]
        %v324 = vld [vmem:[%s188 + $0x2b8] sm:$0xff]
        %v325 = vld [vmem:[%s188 + $0x2c0] sm:$0xff]
        %v326 = vld [vmem:[%s188 + $0x2c8] sm:$0xff]
        %v327 = vld [vmem:[%s188 + $0x2d0] sm:$0xff]
        %v328 = vld [vmem:[%s188 + $0x2d8] sm:$0xff]
        %v329 = vld [vmem:[%s188 + $0x2e0] sm:$0xff]
        %v330 = vld [vmem:[%s188 + $0x2e8] sm:$0xff]
        %v331 = vld [vmem:[%s188 + $0x2f0] sm:$0xff]
        %v332 = vld [vmem:[%s188 + $0x2f8] sm:$0xff]
        %v333 = vld [vmem:[%s188 + $0x300] sm:$0xff]
        %v334 = vld [vmem:[%s188 + $0x308] sm:$0xff]
        %v335 = vld [vmem:[%s188 + $0x310] sm:$0xff]
        %v336 = vld [vmem:[%s188 + $0x318] sm:$0xff]
        %v337 = vld [vmem:[%s188 + $0x320] sm:$0xff]
        %v338 = vld [vmem:[%s188 + $0x328] sm:$0xff]
        %v339 = vld [vmem:[%s188 + $0x330] sm:$0xff]
        %v340 = vld [vmem:[%s188 + $0x338] sm:$0xff]
        %v341 = vld [vmem:[%s188 + $0x340] sm:$0xff]
        %v342 = vld [vmem:[%s188 + $0x348] sm:$0xff]
        %v343 = vld [vmem:[%s188 + $0x350] sm:$0xff]
        %v344 = vld [vmem:[%s188 + $0x358] sm:$0xff]
        %v345 = vld [vmem:[%s188 + $0x360] sm:$0xff]
        %v346 = vld [vmem:[%s188 + $0x368] sm:$0xff]
        %v347 = vld [vmem:[%s188 + $0x370] sm:$0xff]
        %v348 = vld [vmem:[%s188 + $0x378] sm:$0xff]
        %v349 = vld [vmem:[%s188 + $0x380] sm:$0xff]
        %v350 = vld [vmem:[%s188 + $0x388] sm:$0xff]
        %v351 = vld [vmem:[%s188 + $0x390] sm:$0xff]
        %v352 = vld [vmem:[%s188 + $0x398] sm:$0xff]
        %v353 = vld [vmem:[%s188 + $0x3a0] sm:$0xff]
        %v354 = vld [vmem:[%s188 + $0x3a8] sm:$0xff]
        %v355 = vld [vmem:[%s188 + $0x3b0] sm:$0xff]
        %v356 = vld [vmem:[%s188 + $0x3b8] sm:$0xff]
        %v357 = vld [vmem:[%s188 + $0x3c0] sm:$0xff]
        %v358 = vld [vmem:[%s188 + $0x3c8] sm:$0xff]
        %v359 = vld [vmem:[%s188 + $0x3d0] sm:$0xff]
        %v360 = vld [vmem:[%s188 + $0x3d8] sm:$0xff]
        %v361 = vld [vmem:[%s188 + $0x3e0] sm:$0xff]
        %v362 = vld [vmem:[%s188 + $0x3e8] sm:$0xff]
        %v363 = vld [vmem:[%s188 + $0x3f0] sm:$0xff]
        %v364 = vld [vmem:[%s188 + $0x3f8] sm:$0xff]
        %v365 = vld [vmem:[%s188 + $0x400] sm:$0xff]
        %v366 = vld [vmem:[%s188 + $0x408] sm:$0xff]
        %v367 = vld [vmem:[%s188 + $0x410] sm:$0xff]
        %v368 = vld [vmem:[%s188 + $0x418] sm:$0xff]
        %v369 = vld [vmem:[%s188 + $0x420] sm:$0xff]
        %v370 = vld [vmem:[%s188 + $0x428] sm:$0xff]
        %v371 = vld [vmem:[%s188 + $0x430] sm:$0xff]
        %v372 = vld [vmem:[%s188 + $0x438] sm:$0xff]
        %v373 = vld [vmem:[%s188 + $0x440] sm:$0xff]
        %v374 = vld [vmem:[%s188 + $0x448] sm:$0xff]
        %v375 = vld [vmem:[%s188 + $0x450] sm:$0xff]
        %v376 = vld [vmem:[%s188 + $0x458] sm:$0xff]
        %v377 = vld [vmem:[%s188 + $0x460] sm:$0xff]
        %v378 = vld [vmem:[%s188 + $0x468] sm:$0xff]
        %v379 = vld [vmem:[%s188 + $0x470] sm:$0xff]
        %v380 = vld [vmem:[%s188 + $0x478] sm:$0xff]
        %v381 = vld [vmem:[%s188 + $0x480] sm:$0xff]
        %v382 = vld [vmem:[%s188 + $0x488] sm:$0xff]
        %v383 = vld [vmem:[%s188 + $0x490] sm:$0xff]
        %v384 = vld [vmem:[%s188 + $0x498] sm:$0xff]
        %v385 = vld [vmem:[%s188 + $0x4a0] sm:$0xff]
        %v386 = vld [vmem:[%s188 + $0x4a8] sm:$0xff]
        %v387 = vld [vmem:[%s188 + $0x4b0] sm:$0xff]
        %v388 = vld [vmem:[%s188 + $0x4b8] sm:$0xff]
        %v389 = vld [vmem:[%s188 + $0x4c0] sm:$0xff]
        %v390 = vld [vmem:[%s188 + $0x4c8] sm:$0xff]
        %v391 = vld [vmem:[%s188 + $0x4d0] sm:$0xff]
        %v392 = vld [vmem:[%s188 + $0x4d8] sm:$0xff]
        %v393 = vld [vmem:[%s188 + $0x4e0] sm:$0xff]
        %v394 = vld [vmem:[%s188 + $0x4e8] sm:$0xff]
        %v395 = vld [vmem:[%s188 + $0x4f0] sm:$0xff]
        %v396 = vld [vmem:[%s188 + $0x4f8] sm:$0xff]
        %v397 = vld [vmem:[%s188 + $0x500] sm:$0xff]
        %v398 = vld [vmem:[%s188 + $0x508] sm:$0xff]
        %v399 = vld [vmem:[%s188 + $0x510] sm:$0xff]
        %v400 = vld [vmem:[%s188 + $0x518] sm:$0xff]
        %v401 = vld [vmem:[%s188 + $0x520] sm:$0xff]
        %v402 = vld [vmem:[%s188 + $0x528] sm:$0xff]
        %v403 = vld [vmem:[%s188 + $0x530] sm:$0xff]
        %v404 = vld [vmem:[%s188 + $0x538] sm:$0xff]
        %v405 = vld [vmem:[%s188 + $0x540] sm:$0xff]
        %v406 = vld [vmem:[%s188 + $0x548] sm:$0xff]
        %v407 = vld [vmem:[%s188 + $0x550] sm:$0xff]
        %v408 = vld [vmem:[%s188 + $0x558] sm:$0xff]
        %v409 = vld [vmem:[%s188 + $0x560] sm:$0xff]
        %v410 = vld [vmem:[%s188 + $0x568] sm:$0xff]
        %v411 = vld [vmem:[%s188 + $0x570] sm:$0xff]
        %v412 = vld [vmem:[%s188 + $0x578] sm:$0xff]
        %v413 = vld [vmem:[%s198] sm:$0xff]
        %v414 = vld [vmem:[%s198 + $0x8] sm:$0xff]
        %v415 = vld [vmem:[%s198 + $0x10] sm:$0x3f]
        %v419 = vperm.slane %v413, 0
        %v420 = vperm.slane %v413, 1
        %v421 = vperm.slane %v413, 2
        %v422 = vperm.slane %v413, 3
        %v423 = vperm.slane %v413, 4
        %v424 = vperm.slane %v413, 5
        %v425 = vperm.slane %v413, 6
        %v426 = vperm.slane %v413, 7
        %v427 = vperm.slane %v414, 0
        %v428 = vperm.slane %v414, 1
        %v429 = vperm.slane %v414, 2
        %v430 = vperm.slane %v414, 3
        %v431 = vperm.slane %v414, 4
        %v432 = vperm.slane %v414, 5
        %v433 = vperm.slane %v414, 6
        %v434 = vperm.slane %v414, 7
        %v435 = vperm.slane %v415, 0
        %v436 = vperm.slane %v415, 1
        %v437 = vperm.slane %v415, 2
        %v438 = vperm.slane %v415, 3
        %v439 = vperm.slane %v415, 4
        %v440 = vperm.slane %v415, 5
        %v639 = vunpack.c.l.b16 %v237
        %v640 = vunpack.c.h.b16 %v237
        %v641 = vunpack.c.l.b16 %v238
        %v642 = vunpack.c.h.b16 %v238
        %v643 = vunpack.c.l.b16 %v239
        %v644 = vunpack.c.h.b16 %v239
        %v645 = vunpack.c.l.b16 %v240
        %v646 = vunpack.c.h.b16 %v240
        %v647 = vunpack.c.l.b16 %v241
        %v648 = vunpack.c.h.b16 %v241
        %v649 = vunpack.c.l.b16 %v242
        %v650 = vunpack.c.h.b16 %v242
        %v651 = vunpack.c.l.b16 %v243
        %v652 = vunpack.c.h.b16 %v243
        %v653 = vunpack.c.l.b16 %v244
        %v654 = vunpack.c.h.b16 %v244
        %v655 = vunpack.c.l.b16 %v245
        %v656 = vunpack.c.h.b16 %v245
        %v657 = vunpack.c.l.b16 %v246
        %v658 = vunpack.c.h.b16 %v246
        %v659 = vunpack.c.l.b16 %v247
        %v660 = vunpack.c.h.b16 %v247
        %v661 = vunpack.c.l.b16 %v248
        %v662 = vunpack.c.h.b16 %v248
        %v663 = vunpack.c.l.b16 %v249
        %v664 = vunpack.c.h.b16 %v249
        %v665 = vunpack.c.l.b16 %v250
        %v666 = vunpack.c.h.b16 %v250
        %v667 = vunpack.c.l.b16 %v251
        %v668 = vunpack.c.h.b16 %v251
        %v669 = vunpack.c.l.b16 %v252
        %v670 = vunpack.c.h.b16 %v252
        %v671 = vunpack.c.l.b16 %v253
        %v672 = vunpack.c.h.b16 %v253
        %v673 = vunpack.c.l.b16 %v254
        %v674 = vunpack.c.h.b16 %v254
        %v675 = vunpack.c.l.b16 %v255
        %v676 = vunpack.c.h.b16 %v255
        %v677 = vunpack.c.l.b16 %v256
        %v678 = vunpack.c.h.b16 %v256
        %v679 = vunpack.c.l.b16 %v257
        %v680 = vunpack.c.h.b16 %v257
        %v681 = vunpack.c.l.b16 %v258
        %v682 = vunpack.c.h.b16 %v258
        %v683 = vunpack.c.l.b16 %v259
        %v684 = vunpack.c.h.b16 %v259
        %v685 = vunpack.c.l.b16 %v260
        %v686 = vunpack.c.h.b16 %v260
        %v687 = vunpack.c.l.b16 %v261
        %v688 = vunpack.c.h.b16 %v261
        %v689 = vunpack.c.l.b16 %v262
        %v690 = vunpack.c.h.b16 %v262
        %v691 = vunpack.c.l.b16 %v263
        %v692 = vunpack.c.h.b16 %v263
        %v693 = vunpack.c.l.b16 %v264
        %v694 = vunpack.c.h.b16 %v264
        %v695 = vunpack.c.l.b16 %v265
        %v696 = vunpack.c.h.b16 %v265
        %v697 = vunpack.c.l.b16 %v266
        %v698 = vunpack.c.h.b16 %v266
        %v699 = vunpack.c.l.b16 %v267
        %v700 = vunpack.c.h.b16 %v267
        %v701 = vunpack.c.l.b16 %v268
        %v702 = vunpack.c.h.b16 %v268
        %v703 = vunpack.c.l.b16 %v269
        %v704 = vunpack.c.h.b16 %v269
        %v705 = vunpack.c.l.b16 %v270
        %v706 = vunpack.c.h.b16 %v270
        %v707 = vunpack.c.l.b16 %v271
        %v708 = vunpack.c.h.b16 %v271
        %v709 = vunpack.c.l.b16 %v272
        %v710 = vunpack.c.h.b16 %v272
        %v711 = vunpack.c.l.b16 %v273
        %v712 = vunpack.c.h.b16 %v273
        %v713 = vunpack.c.l.b16 %v274
        %v714 = vunpack.c.h.b16 %v274
        %v715 = vunpack.c.l.b16 %v275
        %v716 = vunpack.c.h.b16 %v275
        %v717 = vunpack.c.l.b16 %v276
        %v718 = vunpack.c.h.b16 %v276
        %v719 = vunpack.c.l.b16 %v277
        %v720 = vunpack.c.h.b16 %v277
        %v721 = vunpack.c.l.b16 %v278
        %v722 = vunpack.c.h.b16 %v278
        %v723 = vunpack.c.l.b16 %v279
        %v724 = vunpack.c.h.b16 %v279
        %v725 = vunpack.c.l.b16 %v280
        %v726 = vunpack.c.h.b16 %v280
        %v727 = vunpack.c.l.b16 %v281
        %v728 = vunpack.c.h.b16 %v281
        %v729 = vunpack.c.l.b16 %v282
        %v730 = vunpack.c.h.b16 %v282
        %v731 = vunpack.c.l.b16 %v283
        %v732 = vunpack.c.h.b16 %v283
        %v733 = vunpack.c.l.b16 %v284
        %v734 = vunpack.c.h.b16 %v284
        %v735 = vunpack.c.l.b16 %v285
        %v736 = vunpack.c.h.b16 %v285
        %v737 = vunpack.c.l.b16 %v286
        %v738 = vunpack.c.h.b16 %v286
        %v739 = vunpack.c.l.b16 %v287
        %v740 = vunpack.c.h.b16 %v287
        %v741 = vunpack.c.l.b16 %v288
        %v742 = vunpack.c.h.b16 %v288
        %v743 = vunpack.c.l.b16 %v289
        %v744 = vunpack.c.h.b16 %v289
        %v745 = vunpack.c.l.b16 %v290
        %v746 = vunpack.c.h.b16 %v290
        %v747 = vunpack.c.l.b16 %v291
        %v748 = vunpack.c.h.b16 %v291
        %v749 = vunpack.c.l.b16 %v292
        %v750 = vunpack.c.h.b16 %v292
        %v751 = vunpack.c.l.b16 %v293
        %v752 = vunpack.c.h.b16 %v293
        %v753 = vunpack.c.l.b16 %v294
        %v754 = vunpack.c.h.b16 %v294
        %v755 = vunpack.c.l.b16 %v295
        %v756 = vunpack.c.h.b16 %v295
        %v757 = vunpack.c.l.b16 %v296
        %v758 = vunpack.c.h.b16 %v296
        %v759 = vunpack.c.l.b16 %v297
        %v760 = vunpack.c.h.b16 %v297
        %v761 = vunpack.c.l.b16 %v298
        %v762 = vunpack.c.h.b16 %v298
        %v763 = vunpack.c.l.b16 %v299
        %v764 = vunpack.c.h.b16 %v299
        %v765 = vunpack.c.l.b16 %v300
        %v766 = vunpack.c.h.b16 %v300
        %v767 = vunpack.c.l.b16 %v301
        %v768 = vunpack.c.h.b16 %v301
        %v769 = vunpack.c.l.b16 %v302
        %v770 = vunpack.c.h.b16 %v302
        %v771 = vunpack.c.l.b16 %v303
        %v772 = vunpack.c.h.b16 %v303
        %v773 = vunpack.c.l.b16 %v304
        %v774 = vunpack.c.h.b16 %v304
        %v775 = vunpack.c.l.b16 %v305
        %v776 = vunpack.c.h.b16 %v305
        %v777 = vunpack.c.l.b16 %v306
        %v778 = vunpack.c.h.b16 %v306
        %v779 = vunpack.c.l.b16 %v307
        %v780 = vunpack.c.h.b16 %v307
        %v781 = vunpack.c.l.b16 %v308
        %v782 = vunpack.c.h.b16 %v308
        %v783 = vunpack.c.l.b16 %v309
        %v784 = vunpack.c.h.b16 %v309
        %v785 = vunpack.c.l.b16 %v310
        %v786 = vunpack.c.h.b16 %v310
        %v787 = vunpack.c.l.b16 %v311
        %v788 = vunpack.c.h.b16 %v311
        %v789 = vunpack.c.l.b16 %v312
        %v790 = vunpack.c.h.b16 %v312
        %v791 = vunpack.c.l.b16 %v313
        %v792 = vunpack.c.h.b16 %v313
        %v793 = vunpack.c.l.b16 %v314
        %v794 = vunpack.c.h.b16 %v314
        %v795 = vunpack.c.l.b16 %v315
        %v796 = vunpack.c.h.b16 %v315
        %v797 = vunpack.c.l.b16 %v316
        %v798 = vunpack.c.h.b16 %v316
        %v799 = vunpack.c.l.b16 %v317
        %v800 = vunpack.c.h.b16 %v317
        %v801 = vunpack.c.l.b16 %v318
        %v802 = vunpack.c.h.b16 %v318
        %v803 = vunpack.c.l.b16 %v319
        %v804 = vunpack.c.h.b16 %v319
        %v805 = vunpack.c.l.b16 %v320
        %v806 = vunpack.c.h.b16 %v320
        %v807 = vunpack.c.l.b16 %v321
        %v808 = vunpack.c.h.b16 %v321
        %v809 = vunpack.c.l.b16 %v322
        %v810 = vunpack.c.h.b16 %v322
        %v811 = vunpack.c.l.b16 %v323
        %v812 = vunpack.c.h.b16 %v323
        %v813 = vunpack.c.l.b16 %v324
        %v814 = vunpack.c.h.b16 %v324
        %v815 = vunpack.c.l.b16 %v325
        %v816 = vunpack.c.h.b16 %v325
        %v817 = vunpack.c.l.b16 %v326
        %v818 = vunpack.c.h.b16 %v326
        %v819 = vunpack.c.l.b16 %v327
        %v820 = vunpack.c.h.b16 %v327
        %v821 = vunpack.c.l.b16 %v328
        %v822 = vunpack.c.h.b16 %v328
        %v823 = vunpack.c.l.b16 %v329
        %v824 = vunpack.c.h.b16 %v329
        %v825 = vunpack.c.l.b16 %v330
        %v826 = vunpack.c.h.b16 %v330
        %v827 = vunpack.c.l.b16 %v331
        %v828 = vunpack.c.h.b16 %v331
        %v829 = vunpack.c.l.b16 %v332
        %v830 = vunpack.c.h.b16 %v332
        %v831 = vunpack.c.l.b16 %v333
        %v832 = vunpack.c.h.b16 %v333
        %v833 = vunpack.c.l.b16 %v334
        %v834 = vunpack.c.h.b16 %v334
        %v835 = vunpack.c.l.b16 %v335
        %v836 = vunpack.c.h.b16 %v335
        %v837 = vunpack.c.l.b16 %v336
        %v838 = vunpack.c.h.b16 %v336
        %v839 = vunpack.c.l.b16 %v337
        %v840 = vunpack.c.h.b16 %v337
        %v841 = vunpack.c.l.b16 %v338
        %v842 = vunpack.c.h.b16 %v338
        %v843 = vunpack.c.l.b16 %v339
        %v844 = vunpack.c.h.b16 %v339
        %v845 = vunpack.c.l.b16 %v340
        %v846 = vunpack.c.h.b16 %v340
        %v847 = vunpack.c.l.b16 %v341
        %v848 = vunpack.c.h.b16 %v341
        %v849 = vunpack.c.l.b16 %v342
        %v850 = vunpack.c.h.b16 %v342
        %v851 = vunpack.c.l.b16 %v343
        %v852 = vunpack.c.h.b16 %v343
        %v853 = vunpack.c.l.b16 %v344
        %v854 = vunpack.c.h.b16 %v344
        %v855 = vunpack.c.l.b16 %v345
        %v856 = vunpack.c.h.b16 %v345
        %v857 = vunpack.c.l.b16 %v346
        %v858 = vunpack.c.h.b16 %v346
        %v859 = vunpack.c.l.b16 %v347
        %v860 = vunpack.c.h.b16 %v347
        %v861 = vunpack.c.l.b16 %v348
        %v862 = vunpack.c.h.b16 %v348
        %v863 = vunpack.c.l.b16 %v349
        %v864 = vunpack.c.h.b16 %v349
        %v865 = vunpack.c.l.b16 %v350
        %v866 = vunpack.c.h.b16 %v350
        %v867 = vunpack.c.l.b16 %v351
        %v868 = vunpack.c.h.b16 %v351
        %v869 = vunpack.c.l.b16 %v352
        %v870 = vunpack.c.h.b16 %v352
        %v871 = vunpack.c.l.b16 %v353
        %v872 = vunpack.c.h.b16 %v353
        %v873 = vunpack.c.l.b16 %v354
        %v874 = vunpack.c.h.b16 %v354
        %v875 = vunpack.c.l.b16 %v355
        %v876 = vunpack.c.h.b16 %v355
        %v877 = vunpack.c.l.b16 %v356
        %v878 = vunpack.c.h.b16 %v356
        %v879 = vunpack.c.l.b16 %v357
        %v880 = vunpack.c.h.b16 %v357
        %v881 = vunpack.c.l.b16 %v358
        %v882 = vunpack.c.h.b16 %v358
        %v883 = vunpack.c.l.b16 %v359
        %v884 = vunpack.c.h.b16 %v359
        %v885 = vunpack.c.l.b16 %v360
        %v886 = vunpack.c.h.b16 %v360
        %v887 = vunpack.c.l.b16 %v361
        %v888 = vunpack.c.h.b16 %v361
        %v889 = vunpack.c.l.b16 %v362
        %v890 = vunpack.c.h.b16 %v362
        %v891 = vunpack.c.l.b16 %v363
        %v892 = vunpack.c.h.b16 %v363
        %v893 = vunpack.c.l.b16 %v364
        %v894 = vunpack.c.h.b16 %v364
        %v895 = vunpack.c.l.b16 %v365
        %v896 = vunpack.c.h.b16 %v365
        %v897 = vunpack.c.l.b16 %v366
        %v898 = vunpack.c.h.b16 %v366
        %v899 = vunpack.c.l.b16 %v367
        %v900 = vunpack.c.h.b16 %v367
        %v901 = vunpack.c.l.b16 %v368
        %v902 = vunpack.c.h.b16 %v368
        %v903 = vunpack.c.l.b16 %v369
        %v904 = vunpack.c.h.b16 %v369
        %v905 = vunpack.c.l.b16 %v370
        %v906 = vunpack.c.h.b16 %v370
        %v907 = vunpack.c.l.b16 %v371
        %v908 = vunpack.c.h.b16 %v371
        %v909 = vunpack.c.l.b16 %v372
        %v910 = vunpack.c.h.b16 %v372
        %v911 = vunpack.c.l.b16 %v373
        %v912 = vunpack.c.h.b16 %v373
        %v913 = vunpack.c.l.b16 %v374
        %v914 = vunpack.c.h.b16 %v374
        %v915 = vunpack.c.l.b16 %v375
        %v916 = vunpack.c.h.b16 %v375
        %v917 = vunpack.c.l.b16 %v376
        %v918 = vunpack.c.h.b16 %v376
        %v919 = vunpack.c.l.b16 %v377
        %v920 = vunpack.c.h.b16 %v377
        %v921 = vunpack.c.l.b16 %v378
        %v922 = vunpack.c.h.b16 %v378
        %v923 = vunpack.c.l.b16 %v379
        %v924 = vunpack.c.h.b16 %v379
        %v925 = vunpack.c.l.b16 %v380
        %v926 = vunpack.c.h.b16 %v380
        %v927 = vunpack.c.l.b16 %v381
        %v928 = vunpack.c.h.b16 %v381
        %v929 = vunpack.c.l.b16 %v382
        %v930 = vunpack.c.h.b16 %v382
        %v931 = vunpack.c.l.b16 %v383
        %v932 = vunpack.c.h.b16 %v383
        %v933 = vunpack.c.l.b16 %v384
        %v934 = vunpack.c.h.b16 %v384
        %v935 = vunpack.c.l.b16 %v385
        %v936 = vunpack.c.h.b16 %v385
        %v937 = vunpack.c.l.b16 %v386
        %v938 = vunpack.c.h.b16 %v386
        %v939 = vunpack.c.l.b16 %v387
        %v940 = vunpack.c.h.b16 %v387
        %v941 = vunpack.c.l.b16 %v388
        %v942 = vunpack.c.h.b16 %v388
        %v943 = vunpack.c.l.b16 %v389
        %v944 = vunpack.c.h.b16 %v389
        %v945 = vunpack.c.l.b16 %v390
        %v946 = vunpack.c.h.b16 %v390
        %v947 = vunpack.c.l.b16 %v391
        %v948 = vunpack.c.h.b16 %v391
        %v949 = vunpack.c.l.b16 %v392
        %v950 = vunpack.c.h.b16 %v392
        %v951 = vunpack.c.l.b16 %v393
        %v952 = vunpack.c.h.b16 %v393
        %v953 = vunpack.c.l.b16 %v394
        %v954 = vunpack.c.h.b16 %v394
        %v955 = vunpack.c.l.b16 %v395
        %v956 = vunpack.c.h.b16 %v395
        %v957 = vunpack.c.l.b16 %v396
        %v958 = vunpack.c.h.b16 %v396
        %v959 = vunpack.c.l.b16 %v397
        %v960 = vunpack.c.h.b16 %v397
        %v961 = vunpack.c.l.b16 %v398
        %v962 = vunpack.c.h.b16 %v398
        %v963 = vunpack.c.l.b16 %v399
        %v964 = vunpack.c.h.b16 %v399
        %v965 = vunpack.c.l.b16 %v400
        %v966 = vunpack.c.h.b16 %v400
        %v967 = vunpack.c.l.b16 %v401
        %v968 = vunpack.c.h.b16 %v401
        %v969 = vunpack.c.l.b16 %v402
        %v970 = vunpack.c.h.b16 %v402
        %v971 = vunpack.c.l.b16 %v403
        %v972 = vunpack.c.h.b16 %v403
        %v973 = vunpack.c.l.b16 %v404
        %v974 = vunpack.c.h.b16 %v404
        %v975 = vunpack.c.l.b16 %v405
        %v976 = vunpack.c.h.b16 %v405
        %v977 = vunpack.c.l.b16 %v406
        %v978 = vunpack.c.h.b16 %v406
        %v979 = vunpack.c.l.b16 %v407
        %v980 = vunpack.c.h.b16 %v407
        %v981 = vunpack.c.l.b16 %v408
        %v982 = vunpack.c.h.b16 %v408
        %v983 = vunpack.c.l.b16 %v409
        %v984 = vunpack.c.h.b16 %v409
        %v985 = vunpack.c.l.b16 %v410
        %v986 = vunpack.c.h.b16 %v410
        %v987 = vunpack.c.l.b16 %v411
        %v988 = vunpack.c.h.b16 %v411
        %v989 = vunpack.c.l.b16 %v412
        %v990 = vunpack.c.h.b16 %v412
        %v991 = vpack.c.b16 %v661, %v639
        %v992 = vpack.c.b16 %v662, %v640
        %v993 = vpack.c.b16 %v663, %v641
        %v994 = vpack.c.b16 %v664, %v642
        %v995 = vpack.c.b16 %v665, %v643
        %v996 = vpack.c.b16 %v666, %v644
        %v997 = vpack.c.b16 %v667, %v645
        %v998 = vpack.c.b16 %v668, %v646
        %v999 = vpack.c.b16 %v669, %v647
        %v1000 = vpack.c.b16 %v670, %v648
        %v1001 = vpack.c.b16 %v671, %v649
        %v1002 = vpack.c.b16 %v672, %v650
        %v1003 = vpack.c.b16 %v673, %v651
        %v1004 = vpack.c.b16 %v674, %v652
        %v1005 = vpack.c.b16 %v675, %v653
        %v1006 = vpack.c.b16 %v676, %v654
        %v1007 = vpack.c.b16 %v677, %v655
        %v1008 = vpack.c.b16 %v678, %v656
        %v1009 = vpack.c.b16 %v679, %v657
        %v1010 = vpack.c.b16 %v680, %v658
        %v1011 = vpack.c.b16 %v681, %v659
        %v1012 = vpack.c.b16 %v682, %v660
        %v1013 = vpack.c.b16 %v705, %v683
        %v1014 = vpack.c.b16 %v706, %v684
        %v1015 = vpack.c.b16 %v707, %v685
        %v1016 = vpack.c.b16 %v708, %v686
        %v1017 = vpack.c.b16 %v709, %v687
        %v1018 = vpack.c.b16 %v710, %v688
        %v1019 = vpack.c.b16 %v711, %v689
        %v1020 = vpack.c.b16 %v712, %v690
        %v1021 = vpack.c.b16 %v713, %v691
        %v1022 = vpack.c.b16 %v714, %v692
        %v1023 = vpack.c.b16 %v715, %v693
        %v1024 = vpack.c.b16 %v716, %v694
        %v1025 = vpack.c.b16 %v717, %v695
        %v1026 = vpack.c.b16 %v718, %v696
        %v1027 = vpack.c.b16 %v719, %v697
        %v1028 = vpack.c.b16 %v720, %v698
        %v1029 = vpack.c.b16 %v721, %v699
        %v1030 = vpack.c.b16 %v722, %v700
        %v1031 = vpack.c.b16 %v723, %v701
        %v1032 = vpack.c.b16 %v724, %v702
        %v1033 = vpack.c.b16 %v725, %v703
        %v1034 = vpack.c.b16 %v726, %v704
        %v1035 = vpack.c.b16 %v749, %v727
        %v1036 = vpack.c.b16 %v750, %v728
        %v1037 = vpack.c.b16 %v751, %v729
        %v1038 = vpack.c.b16 %v752, %v730
        %v1039 = vpack.c.b16 %v753, %v731
        %v1040 = vpack.c.b16 %v754, %v732
        %v1041 = vpack.c.b16 %v755, %v733
        %v1042 = vpack.c.b16 %v756, %v734
        %v1043 = vpack.c.b16 %v757, %v735
        %v1044 = vpack.c.b16 %v758, %v736
        %v1045 = vpack.c.b16 %v759, %v737
        %v1046 = vpack.c.b16 %v760, %v738
        %v1047 = vpack.c.b16 %v761, %v739
        %v1048 = vpack.c.b16 %v762, %v740
        %v1049 = vpack.c.b16 %v763, %v741
        %v1050 = vpack.c.b16 %v764, %v742
        %v1051 = vpack.c.b16 %v765, %v743
        %v1052 = vpack.c.b16 %v766, %v744
        %v1053 = vpack.c.b16 %v767, %v745
        %v1054 = vpack.c.b16 %v768, %v746
        %v1055 = vpack.c.b16 %v769, %v747
        %v1056 = vpack.c.b16 %v770, %v748
        %v1057 = vpack.c.b16 %v793, %v771
        %v1058 = vpack.c.b16 %v794, %v772
        %v1059 = vpack.c.b16 %v795, %v773
        %v1060 = vpack.c.b16 %v796, %v774
        %v1061 = vpack.c.b16 %v797, %v775
        %v1062 = vpack.c.b16 %v798, %v776
        %v1063 = vpack.c.b16 %v799, %v777
        %v1064 = vpack.c.b16 %v800, %v778
        %v1065 = vpack.c.b16 %v801, %v779
        %v1066 = vpack.c.b16 %v802, %v780
        %v1067 = vpack.c.b16 %v803, %v781
        %v1068 = vpack.c.b16 %v804, %v782
        %v1069 = vpack.c.b16 %v805, %v783
        %v1070 = vpack.c.b16 %v806, %v784
        %v1071 = vpack.c.b16 %v807, %v785
        %v1072 = vpack.c.b16 %v808, %v786
        %v1073 = vpack.c.b16 %v809, %v787
        %v1074 = vpack.c.b16 %v810, %v788
        %v1075 = vpack.c.b16 %v811, %v789
        %v1076 = vpack.c.b16 %v812, %v790
        %v1077 = vpack.c.b16 %v813, %v791
        %v1078 = vpack.c.b16 %v814, %v792
        %v1079 = vpack.c.b16 %v837, %v815
        %v1080 = vpack.c.b16 %v838, %v816
        %v1081 = vpack.c.b16 %v839, %v817
        %v1082 = vpack.c.b16 %v840, %v818
        %v1083 = vpack.c.b16 %v841, %v819
        %v1084 = vpack.c.b16 %v842, %v820
        %v1085 = vpack.c.b16 %v843, %v821
        %v1086 = vpack.c.b16 %v844, %v822
        %v1087 = vpack.c.b16 %v845, %v823
        %v1088 = vpack.c.b16 %v846, %v824
        %v1089 = vpack.c.b16 %v847, %v825
        %v1090 = vpack.c.b16 %v848, %v826
        %v1091 = vpack.c.b16 %v849, %v827
        %v1092 = vpack.c.b16 %v850, %v828
        %v1093 = vpack.c.b16 %v851, %v829
        %v1094 = vpack.c.b16 %v852, %v830
        %v1095 = vpack.c.b16 %v853, %v831
        %v1096 = vpack.c.b16 %v854, %v832
        %v1097 = vpack.c.b16 %v855, %v833
        %v1098 = vpack.c.b16 %v856, %v834
        %v1099 = vpack.c.b16 %v857, %v835
        %v1100 = vpack.c.b16 %v858, %v836
        %v1101 = vpack.c.b16 %v881, %v859
        %v1102 = vpack.c.b16 %v882, %v860
        %v1103 = vpack.c.b16 %v883, %v861
        %v1104 = vpack.c.b16 %v884, %v862
        %v1105 = vpack.c.b16 %v885, %v863
        %v1106 = vpack.c.b16 %v886, %v864
        %v1107 = vpack.c.b16 %v887, %v865
        %v1108 = vpack.c.b16 %v888, %v866
        %v1109 = vpack.c.b16 %v889, %v867
        %v1110 = vpack.c.b16 %v890, %v868
        %v1111 = vpack.c.b16 %v891, %v869
        %v1112 = vpack.c.b16 %v892, %v870
        %v1113 = vpack.c.b16 %v893, %v871
        %v1114 = vpack.c.b16 %v894, %v872
        %v1115 = vpack.c.b16 %v895, %v873
        %v1116 = vpack.c.b16 %v896, %v874
        %v1117 = vpack.c.b16 %v897, %v875
        %v1118 = vpack.c.b16 %v898, %v876
        %v1119 = vpack.c.b16 %v899, %v877
        %v1120 = vpack.c.b16 %v900, %v878
        %v1121 = vpack.c.b16 %v901, %v879
        %v1122 = vpack.c.b16 %v902, %v880
        %v1123 = vpack.c.b16 %v925, %v903
        %v1124 = vpack.c.b16 %v926, %v904
        %v1125 = vpack.c.b16 %v927, %v905
        %v1126 = vpack.c.b16 %v928, %v906
        %v1127 = vpack.c.b16 %v929, %v907
        %v1128 = vpack.c.b16 %v930, %v908
        %v1129 = vpack.c.b16 %v931, %v909
        %v1130 = vpack.c.b16 %v932, %v910
        %v1131 = vpack.c.b16 %v933, %v911
        %v1132 = vpack.c.b16 %v934, %v912
        %v1133 = vpack.c.b16 %v935, %v913
        %v1134 = vpack.c.b16 %v936, %v914
        %v1135 = vpack.c.b16 %v937, %v915
        %v1136 = vpack.c.b16 %v938, %v916
        %v1137 = vpack.c.b16 %v939, %v917
        %v1138 = vpack.c.b16 %v940, %v918
        %v1139 = vpack.c.b16 %v941, %v919
        %v1140 = vpack.c.b16 %v942, %v920
        %v1141 = vpack.c.b16 %v943, %v921
        %v1142 = vpack.c.b16 %v944, %v922
        %v1143 = vpack.c.b16 %v945, %v923
        %v1144 = vpack.c.b16 %v946, %v924
        %v1145 = vpack.c.b16 %v969, %v947
        %v1146 = vpack.c.b16 %v970, %v948
        %v1147 = vpack.c.b16 %v971, %v949
        %v1148 = vpack.c.b16 %v972, %v950
        %v1149 = vpack.c.b16 %v973, %v951
        %v1150 = vpack.c.b16 %v974, %v952
        %v1151 = vpack.c.b16 %v975, %v953
        %v1152 = vpack.c.b16 %v976, %v954
        %v1153 = vpack.c.b16 %v977, %v955
        %v1154 = vpack.c.b16 %v978, %v956
        %v1155 = vpack.c.b16 %v979, %v957
        %v1156 = vpack.c.b16 %v980, %v958
        %v1157 = vpack.c.b16 %v981, %v959
        %v1158 = vpack.c.b16 %v982, %v960
        %v1159 = vpack.c.b16 %v983, %v961
        %v1160 = vpack.c.b16 %v984, %v962
        %v1161 = vpack.c.b16 %v985, %v963
        %v1162 = vpack.c.b16 %v986, %v964
        %v1163 = vpack.c.b16 %v987, %v965
        %v1164 = vpack.c.b16 %v988, %v966
        %v1165 = vpack.c.b16 %v989, %v967
        %v1166 = vpack.c.b16 %v990, %v968
        %1343 = vmatpush.bf16.msra.mxu0 %v1145
        %1344 = vmatpush.bf16.msra.mxu0 %v1123
        %1345 = vmatpush.bf16.msra.mxu0 %v1101
        %1346 = vmatpush.bf16.msra.mxu0 %v1079
        %1347 = vmatpush.bf16.msra.mxu0 %v1057
        %1348 = vmatpush.bf16.msra.mxu0 %v1035
        %1349 = vmatpush.bf16.msra.mxu0 %v1013
        %1350 = vmatpush.bf16.msra.mxu0 %v991
        %1351 = vmatmul.bf16.gmra.mxu0 %v236
        %v1352 = vpop.f32.mrf.mxu0
        %v1353 = vadd.f32 %v419, %v1352
        %v1354 = vpop.f32.mrf.mxu0
        %1355 = vdwg.mxu0
        %1356 = vmatpush.bf16.msra.mxu0 %v1146
        %1357 = vmatpush.bf16.msra.mxu0 %v1124
        %1358 = vmatpush.bf16.msra.mxu0 %v1102
        %1359 = vmatpush.bf16.msra.mxu0 %v1080
        %1360 = vmatpush.bf16.msra.mxu0 %v1058
        %1361 = vmatpush.bf16.msra.mxu0 %v1036
        %1362 = vmatpush.bf16.msra.mxu0 %v1014
        %1363 = vmatpush.bf16.msra.mxu0 %v992
        %1364 = vmatmul.bf16.gmra.mxu0 %v236
        %v1365 = vpop.f32.mrf.mxu0
        %v1366 = vadd.f32 %v420, %v1365
        %v1367 = vpop.f32.mrf.mxu0
        %1368 = vdwg.mxu0
        %1369 = vmatpush.bf16.msra.mxu0 %v1147
        %1370 = vmatpush.bf16.msra.mxu0 %v1125
        %1371 = vmatpush.bf16.msra.mxu0 %v1103
        %1372 = vmatpush.bf16.msra.mxu0 %v1081
        %1373 = vmatpush.bf16.msra.mxu0 %v1059
        %1374 = vmatpush.bf16.msra.mxu0 %v1037
        %1375 = vmatpush.bf16.msra.mxu0 %v1015
        %1376 = vmatpush.bf16.msra.mxu0 %v993
        %1377 = vmatmul.bf16.gmra.mxu0 %v236
        %v1378 = vpop.f32.mrf.mxu0
        %v1379 = vadd.f32 %v421, %v1378
        %v1380 = vpop.f32.mrf.mxu0
        %1381 = vdwg.mxu0
        %1382 = vmatpush.bf16.msra.mxu0 %v1148
        %1383 = vmatpush.bf16.msra.mxu0 %v1126
        %1384 = vmatpush.bf16.msra.mxu0 %v1104
        %1385 = vmatpush.bf16.msra.mxu0 %v1082
        %1386 = vmatpush.bf16.msra.mxu0 %v1060
        %1387 = vmatpush.bf16.msra.mxu0 %v1038
        %1388 = vmatpush.bf16.msra.mxu0 %v1016
        %1389 = vmatpush.bf16.msra.mxu0 %v994
        %1390 = vmatmul.bf16.gmra.mxu0 %v236
        %v1391 = vpop.f32.mrf.mxu0
        %v1392 = vadd.f32 %v422, %v1391
        %v1393 = vpop.f32.mrf.mxu0
        %1394 = vdwg.mxu0
        %1395 = vmatpush.bf16.msra.mxu0 %v1149
        %1396 = vmatpush.bf16.msra.mxu0 %v1127
        %1397 = vmatpush.bf16.msra.mxu0 %v1105
        %1398 = vmatpush.bf16.msra.mxu0 %v1083
        %1399 = vmatpush.bf16.msra.mxu0 %v1061
        %1400 = vmatpush.bf16.msra.mxu0 %v1039
        %1401 = vmatpush.bf16.msra.mxu0 %v1017
        %1402 = vmatpush.bf16.msra.mxu0 %v995
        %1403 = vmatmul.bf16.gmra.mxu0 %v236
        %v1404 = vpop.f32.mrf.mxu0
        %v1405 = vadd.f32 %v423, %v1404
        %v1406 = vpop.f32.mrf.mxu0
        %1407 = vdwg.mxu0
        %1408 = vmatpush.bf16.msra.mxu0 %v1150
        %1409 = vmatpush.bf16.msra.mxu0 %v1128
        %1410 = vmatpush.bf16.msra.mxu0 %v1106
        %1411 = vmatpush.bf16.msra.mxu0 %v1084
        %1412 = vmatpush.bf16.msra.mxu0 %v1062
        %1413 = vmatpush.bf16.msra.mxu0 %v1040
        %1414 = vmatpush.bf16.msra.mxu0 %v1018
        %1415 = vmatpush.bf16.msra.mxu0 %v996
        %1416 = vmatmul.bf16.gmra.mxu0 %v236
        %v1417 = vpop.f32.mrf.mxu0
        %v1418 = vadd.f32 %v424, %v1417
        %v1419 = vpop.f32.mrf.mxu0
        %1420 = vdwg.mxu0
        %1421 = vmatpush.bf16.msra.mxu0 %v1151
        %1422 = vmatpush.bf16.msra.mxu0 %v1129
        %1423 = vmatpush.bf16.msra.mxu0 %v1107
        %1424 = vmatpush.bf16.msra.mxu0 %v1085
        %1425 = vmatpush.bf16.msra.mxu0 %v1063
        %1426 = vmatpush.bf16.msra.mxu0 %v1041
        %1427 = vmatpush.bf16.msra.mxu0 %v1019
        %1428 = vmatpush.bf16.msra.mxu0 %v997
        %1429 = vmatmul.bf16.gmra.mxu0 %v236
        %v1430 = vpop.f32.mrf.mxu0
        %v1431 = vadd.f32 %v425, %v1430
        %v1432 = vpop.f32.mrf.mxu0
        %1433 = vdwg.mxu0
        %1434 = vmatpush.bf16.msra.mxu0 %v1152
        %1435 = vmatpush.bf16.msra.mxu0 %v1130
        %1436 = vmatpush.bf16.msra.mxu0 %v1108
        %1437 = vmatpush.bf16.msra.mxu0 %v1086
        %1438 = vmatpush.bf16.msra.mxu0 %v1064
        %1439 = vmatpush.bf16.msra.mxu0 %v1042
        %1440 = vmatpush.bf16.msra.mxu0 %v1020
        %1441 = vmatpush.bf16.msra.mxu0 %v998
        %1442 = vmatmul.bf16.gmra.mxu0 %v236
        %v1443 = vpop.f32.mrf.mxu0
        %v1444 = vadd.f32 %v426, %v1443
        %v1445 = vpop.f32.mrf.mxu0
        %1446 = vdwg.mxu0
        %1447 = vmatpush.bf16.msra.mxu0 %v1153
        %1448 = vmatpush.bf16.msra.mxu0 %v1131
        %1449 = vmatpush.bf16.msra.mxu0 %v1109
        %1450 = vmatpush.bf16.msra.mxu0 %v1087
        %1451 = vmatpush.bf16.msra.mxu0 %v1065
        %1452 = vmatpush.bf16.msra.mxu0 %v1043
        %1453 = vmatpush.bf16.msra.mxu0 %v1021
        %1454 = vmatpush.bf16.msra.mxu0 %v999
        %1455 = vmatmul.bf16.gmra.mxu0 %v236
        %v1456 = vpop.f32.mrf.mxu0
        %v1457 = vadd.f32 %v427, %v1456
        %v1458 = vpop.f32.mrf.mxu0
        %1459 = vdwg.mxu0
        %1460 = vmatpush.bf16.msra.mxu0 %v1154
        %1461 = vmatpush.bf16.msra.mxu0 %v1132
        %1462 = vmatpush.bf16.msra.mxu0 %v1110
        %1463 = vmatpush.bf16.msra.mxu0 %v1088
        %1464 = vmatpush.bf16.msra.mxu0 %v1066
        %1465 = vmatpush.bf16.msra.mxu0 %v1044
        %1466 = vmatpush.bf16.msra.mxu0 %v1022
        %1467 = vmatpush.bf16.msra.mxu0 %v1000
        %1468 = vmatmul.bf16.gmra.mxu0 %v236
        %v1469 = vpop.f32.mrf.mxu0
        %v1470 = vadd.f32 %v428, %v1469
        %v1471 = vpop.f32.mrf.mxu0
        %1472 = vdwg.mxu0
        %1473 = vmatpush.bf16.msra.mxu0 %v1155
        %1474 = vmatpush.bf16.msra.mxu0 %v1133
        %1475 = vmatpush.bf16.msra.mxu0 %v1111
        %1476 = vmatpush.bf16.msra.mxu0 %v1089
        %1477 = vmatpush.bf16.msra.mxu0 %v1067
        %1478 = vmatpush.bf16.msra.mxu0 %v1045
        %1479 = vmatpush.bf16.msra.mxu0 %v1023
        %1480 = vmatpush.bf16.msra.mxu0 %v1001
        %1481 = vmatmul.bf16.gmra.mxu0 %v236
        %v1482 = vpop.f32.mrf.mxu0
        %v1483 = vadd.f32 %v429, %v1482
        %v1484 = vpop.f32.mrf.mxu0
        %1485 = vdwg.mxu0
        %1486 = vmatpush.bf16.msra.mxu0 %v1156
        %1487 = vmatpush.bf16.msra.mxu0 %v1134
        %1488 = vmatpush.bf16.msra.mxu0 %v1112
        %1489 = vmatpush.bf16.msra.mxu0 %v1090
        %1490 = vmatpush.bf16.msra.mxu0 %v1068
        %1491 = vmatpush.bf16.msra.mxu0 %v1046
        %1492 = vmatpush.bf16.msra.mxu0 %v1024
        %1493 = vmatpush.bf16.msra.mxu0 %v1002
        %1494 = vmatmul.bf16.gmra.mxu0 %v236
        %v1495 = vpop.f32.mrf.mxu0
        %v1496 = vadd.f32 %v430, %v1495
        %v1497 = vpop.f32.mrf.mxu0
        %1498 = vdwg.mxu0
        %1499 = vmatpush.bf16.msra.mxu0 %v1157
        %1500 = vmatpush.bf16.msra.mxu0 %v1135
        %1501 = vmatpush.bf16.msra.mxu0 %v1113
        %1502 = vmatpush.bf16.msra.mxu0 %v1091
        %1503 = vmatpush.bf16.msra.mxu0 %v1069
        %1504 = vmatpush.bf16.msra.mxu0 %v1047
        %1505 = vmatpush.bf16.msra.mxu0 %v1025
        %1506 = vmatpush.bf16.msra.mxu0 %v1003
        %1507 = vmatmul.bf16.gmra.mxu0 %v236
        %v1508 = vpop.f32.mrf.mxu0
        %v1509 = vadd.f32 %v431, %v1508
        %v1510 = vpop.f32.mrf.mxu0
        %1511 = vdwg.mxu0
        %1512 = vmatpush.bf16.msra.mxu0 %v1158
        %1513 = vmatpush.bf16.msra.mxu0 %v1136
        %1514 = vmatpush.bf16.msra.mxu0 %v1114
        %1515 = vmatpush.bf16.msra.mxu0 %v1092
        %1516 = vmatpush.bf16.msra.mxu0 %v1070
        %1517 = vmatpush.bf16.msra.mxu0 %v1048
        %1518 = vmatpush.bf16.msra.mxu0 %v1026
        %1519 = vmatpush.bf16.msra.mxu0 %v1004
        %1520 = vmatmul.bf16.gmra.mxu0 %v236
        %v1521 = vpop.f32.mrf.mxu0
        %v1522 = vadd.f32 %v432, %v1521
        %v1523 = vpop.f32.mrf.mxu0
        %1524 = vdwg.mxu0
        %1525 = vmatpush.bf16.msra.mxu0 %v1159
        %1526 = vmatpush.bf16.msra.mxu0 %v1137
        %1527 = vmatpush.bf16.msra.mxu0 %v1115
        %1528 = vmatpush.bf16.msra.mxu0 %v1093
        %1529 = vmatpush.bf16.msra.mxu0 %v1071
        %1530 = vmatpush.bf16.msra.mxu0 %v1049
        %1531 = vmatpush.bf16.msra.mxu0 %v1027
        %1532 = vmatpush.bf16.msra.mxu0 %v1005
        %1533 = vmatmul.bf16.gmra.mxu0 %v236
        %v1534 = vpop.f32.mrf.mxu0
        %v1535 = vadd.f32 %v433, %v1534
        %v1536 = vpop.f32.mrf.mxu0
        %1537 = vdwg.mxu0
        %1538 = vmatpush.bf16.msra.mxu0 %v1160
        %1539 = vmatpush.bf16.msra.mxu0 %v1138
        %1540 = vmatpush.bf16.msra.mxu0 %v1116
        %1541 = vmatpush.bf16.msra.mxu0 %v1094
        %1542 = vmatpush.bf16.msra.mxu0 %v1072
        %1543 = vmatpush.bf16.msra.mxu0 %v1050
        %1544 = vmatpush.bf16.msra.mxu0 %v1028
        %1545 = vmatpush.bf16.msra.mxu0 %v1006
        %1546 = vmatmul.bf16.gmra.mxu0 %v236
        %v1547 = vpop.f32.mrf.mxu0
        %v1548 = vadd.f32 %v434, %v1547
        %v1549 = vpop.f32.mrf.mxu0
        %1550 = vdwg.mxu0
        %1551 = vmatpush.bf16.msra.mxu0 %v1161
        %1552 = vmatpush.bf16.msra.mxu0 %v1139
        %1553 = vmatpush.bf16.msra.mxu0 %v1117
        %1554 = vmatpush.bf16.msra.mxu0 %v1095
        %1555 = vmatpush.bf16.msra.mxu0 %v1073
        %1556 = vmatpush.bf16.msra.mxu0 %v1051
        %1557 = vmatpush.bf16.msra.mxu0 %v1029
        %1558 = vmatpush.bf16.msra.mxu0 %v1007
        %1559 = vmatmul.bf16.gmra.mxu0 %v236
        %v1560 = vpop.f32.mrf.mxu0
        %v1561 = vadd.f32 %v435, %v1560
        %v1562 = vpop.f32.mrf.mxu0
        %1563 = vdwg.mxu0
        %1564 = vmatpush.bf16.msra.mxu0 %v1162
        %1565 = vmatpush.bf16.msra.mxu0 %v1140
        %1566 = vmatpush.bf16.msra.mxu0 %v1118
        %1567 = vmatpush.bf16.msra.mxu0 %v1096
        %1568 = vmatpush.bf16.msra.mxu0 %v1074
        %1569 = vmatpush.bf16.msra.mxu0 %v1052
        %1570 = vmatpush.bf16.msra.mxu0 %v1030
        %1571 = vmatpush.bf16.msra.mxu0 %v1008
        %1572 = vmatmul.bf16.gmra.mxu0 %v236
        %v1573 = vpop.f32.mrf.mxu0
        %v1574 = vadd.f32 %v436, %v1573
        %v1575 = vpop.f32.mrf.mxu0
        %1576 = vdwg.mxu0
        %1577 = vmatpush.bf16.msra.mxu0 %v1163
        %1578 = vmatpush.bf16.msra.mxu0 %v1141
        %1579 = vmatpush.bf16.msra.mxu0 %v1119
        %1580 = vmatpush.bf16.msra.mxu0 %v1097
        %1581 = vmatpush.bf16.msra.mxu0 %v1075
        %1582 = vmatpush.bf16.msra.mxu0 %v1053
        %1583 = vmatpush.bf16.msra.mxu0 %v1031
        %1584 = vmatpush.bf16.msra.mxu0 %v1009
        %1585 = vmatmul.bf16.gmra.mxu0 %v236
        %v1586 = vpop.f32.mrf.mxu0
        %v1587 = vadd.f32 %v437, %v1586
        %v1588 = vpop.f32.mrf.mxu0
        %1589 = vdwg.mxu0
        %1590 = vmatpush.bf16.msra.mxu0 %v1164
        %1591 = vmatpush.bf16.msra.mxu0 %v1142
        %1592 = vmatpush.bf16.msra.mxu0 %v1120
        %1593 = vmatpush.bf16.msra.mxu0 %v1098
        %1594 = vmatpush.bf16.msra.mxu0 %v1076
        %1595 = vmatpush.bf16.msra.mxu0 %v1054
        %1596 = vmatpush.bf16.msra.mxu0 %v1032
        %1597 = vmatpush.bf16.msra.mxu0 %v1010
        %1598 = vmatmul.bf16.gmra.mxu0 %v236
        %v1599 = vpop.f32.mrf.mxu0
        %v1600 = vadd.f32 %v438, %v1599
        %v1601 = vpop.f32.mrf.mxu0
        %1602 = vdwg.mxu0
        %1603 = vmatpush.bf16.msra.mxu0 %v1165
        %1604 = vmatpush.bf16.msra.mxu0 %v1143
        %1605 = vmatpush.bf16.msra.mxu0 %v1121
        %1606 = vmatpush.bf16.msra.mxu0 %v1099
        %1607 = vmatpush.bf16.msra.mxu0 %v1077
        %1608 = vmatpush.bf16.msra.mxu0 %v1055
        %1609 = vmatpush.bf16.msra.mxu0 %v1033
        %1610 = vmatpush.bf16.msra.mxu0 %v1011
        %1611 = vmatmul.bf16.gmra.mxu0 %v236
        %v1612 = vpop.f32.mrf.mxu0
        %v1613 = vadd.f32 %v439, %v1612
        %v1614 = vpop.f32.mrf.mxu0
        %1615 = vdwg.mxu0
        %1616 = vmatpush.bf16.msra.mxu0 %v1166
        %1617 = vmatpush.bf16.msra.mxu0 %v1144
        %1618 = vmatpush.bf16.msra.mxu0 %v1122
        %1619 = vmatpush.bf16.msra.mxu0 %v1100
        %1620 = vmatpush.bf16.msra.mxu0 %v1078
        %1621 = vmatpush.bf16.msra.mxu0 %v1056
        %1622 = vmatpush.bf16.msra.mxu0 %v1034
        %1623 = vmatpush.bf16.msra.mxu0 %v1012
        %1624 = vmatmul.bf16.gmra.mxu0 %v236
        %v1625 = vpop.f32.mrf.mxu0
        %v1626 = vadd.f32 %v440, %v1625
        %v1627 = vpop.f32.mrf.mxu0
        %1628 = vdwg.mxu0
        %v1629 = vtanh.pop %v1353
        %v1630 = vtanh.pop %v1366
        %v1631 = vtanh.pop %v1379
        %v1632 = vtanh.pop %v1392
        %v1633 = vtanh.pop %v1405
        %v1634 = vtanh.pop %v1418
        %v1635 = vtanh.pop %v1431
        %v1636 = vtanh.pop %v1444
        %v1637 = vtanh.pop %v1457
        %v1638 = vtanh.pop %v1470
        %v1639 = vtanh.pop %v1483
        %v1640 = vtanh.pop %v1496
        %v1641 = vtanh.pop %v1509
        %v1642 = vtanh.pop %v1522
        %v1643 = vtanh.pop %v1535
        %v1644 = vtanh.pop %v1548
        %v1645 = vtanh.pop %v1561
        %v1646 = vtanh.pop %v1574
        %v1647 = vtanh.pop %v1587
        %v1648 = vtanh.pop %v1600
        %v1649 = vtanh.pop %v1613
        %v1650 = vtanh.pop %v1626
        %1651 = vst [vmem:[%s233] sm:$0xff] %v1629
        %1652 = vst [vmem:[%s233 + $0x8] sm:$0xff] %v1630
        %1653 = vst [vmem:[%s233 + $0x10] sm:$0xff] %v1631
        %1654 = vst [vmem:[%s233 + $0x18] sm:$0xff] %v1632
        %1655 = vst [vmem:[%s233 + $0x20] sm:$0xff] %v1633
        %1656 = vst [vmem:[%s233 + $0x28] sm:$0xff] %v1634
        %1657 = vst [vmem:[%s233 + $0x30] sm:$0xff] %v1635
        %1658 = vst [vmem:[%s233 + $0x38] sm:$0xff] %v1636
        %1659 = vst [vmem:[%s233 + $0x40] sm:$0xff] %v1637
        %1660 = vst [vmem:[%s233 + $0x48] sm:$0xff] %v1638
        %1661 = vst [vmem:[%s233 + $0x50] sm:$0xff] %v1639
        %1662 = vst [vmem:[%s233 + $0x58] sm:$0xff] %v1640
        %1663 = vst [vmem:[%s233 + $0x60] sm:$0xff] %v1641
        %1664 = vst [vmem:[%s233 + $0x68] sm:$0xff] %v1642
        %1665 = vst [vmem:[%s233 + $0x70] sm:$0xff] %v1643
        %1666 = vst [vmem:[%s233 + $0x78] sm:$0xff] %v1644
        %1667 = vst [vmem:[%s233 + $0x80] sm:$0xff] %v1645
        %1668 = vst [vmem:[%s233 + $0x88] sm:$0xff] %v1646
        %1669 = vst [vmem:[%s233 + $0x90] sm:$0xff] %v1647
        %1670 = vst [vmem:[%s233 + $0x98] sm:$0xff] %v1648
        %1671 = vst [vmem:[%s233 + $0xa0] sm:$0xff] %v1649
        %1672 = vst [vmem:[%s233 + $0xa8] sm:$0xff] %v1650
        %s1673 = smul.u32 22, %s20
        %p1674 = scmp.lt.s32.totalorder %s1673, 131
        %s1675 = scalar_select %p1674, %s1673, 131
        %s1676 = smul.addr %s1675, 8
        %s1677 = scalar_lea.vmem %s3, %s1676
        // Predicated region
        $region41: #{autoencoder_forward.3} parent=31 // pred_check
          %p1678 = pneg %p111
        $region42: #{autoencoder_forward.3} parent=31 // pred_check_branch
          %1680 = sbr.rel (%p1678) target = $region44
        $region43: #{autoencoder_forward.3} parent=31 // pred_region
          %s1681 = smul.u32 22, %s20
        $region44: #{autoencoder_forward.3} parent=31 // pred_fallthru
          _
      $region32: #{autoencoder_forward.3} parent=5 // pred_fallthru
        _
      %p1682 = scmp.le.s32.totalorder 2, %s15
      // Predicated region
      $region45: #{autoencoder_forward.3} parent=5 // pred_check
        %p1683 = pneg %p1682
      $region46: #{autoencoder_forward.3} parent=5 // pred_check_branch
        %1685 = sbr.rel (%p1683) target = $region48
      $region47: #{autoencoder_forward.3} parent=5 // pred_region
        %s1686 = ssub.s32 %s15, 2
        // Predicated region
        $region49: #{autoencoder_forward.3} parent=47 // pred_check
          %p1687 = pneg %p117
        $region50: #{autoencoder_forward.3} parent=47 // pred_check_branch
          %1689 = sbr.rel (%p1687) target = $region52
        $region51: #{autoencoder_forward.3} parent=47 // pred_region
          %s1690 = smul.u32 22, %s21
          %p1691 = scmp.lt.s32.totalorder %s1690, 131
          %s1692 = scalar_select %p1691, %s1690, 131
          %s1693 = smul.addr %s1692, 8
          %s1694 = scalar_lea.vmem %s3, %s1693
        $region52: #{autoencoder_forward.3} parent=47 // pred_fallthru
          _
      $region48: #{autoencoder_forward.3} parent=5 // pred_fallthru
        _
    $region6: #{autoencoder_forward.3} parent=1 // loop_footer
      %s19 = sadd.s32 1, %s15
    $region7: #{autoencoder_forward.3} parent=1 // loop_footer_branch
      %14 = sbr.rel target = $region3
    $region8: #{autoencoder_forward.3} parent=1 // loop_exit
      _
    %1695 = vsyncpa [#allocation3], 1
    %s1696 = scalar_lea.sflag [#allocation3], 1
    %1697 = vsyncpa %s1696, 1
    %1698 = vsyncpa [#allocation5], 1
    %s1699 = scalar_lea.sflag [#allocation5], 1
    %1700 = vsyncpa %s1699, 1

</llo_original>
